<compile_context>
chip_gen: v6e
topology: v6e:2x2x1
jax: 0.10.0
libtpu: 0.0.40
codegen_flags: <defaults>
</compile_context>

<pallas_src>
import jax
import jax.numpy as jnp
from jax.experimental import pallas as pl
from jax.experimental.pallas import tpu as pltpu

# Logical sizes from the PyTorch module.
D_IN, D_H1, D_H2, D_H3, D_OUT = 2800, 512, 256, 128, 28
N_PAD = 128          # 28 -> 128 output lanes (sliced back in the wrapper)
MAX_TILE = 1024      # batch-tile cap (perf review: 512-1024)


def _round_up(n, m):
    return ((n + m - 1) // m) * m


def _cdiv(a, b):
    return -(-a // b)


def _choose_tile(batch):
    """Batch tile: tiny batches in one tile; medium batches in exactly two
    tiles (v7x megacore gets both TCs busy); large batches in 1024-row tiles."""
    b8 = _round_up(batch, 8)
    if b8 <= 256:
        return b8
    if b8 <= 2 * MAX_TILE:
        return _round_up(_cdiv(b8, 2), 8)
    return MAX_TILE


def encoder_kernel(alphas_ref,            # SMEM (3,) f32 : PReLU alphas (scalar prefetch)
                   x_ref,                 # VMEM (TB, 2800) f32
                   w1_ref, b1_ref,
                   w2_ref, b2_ref,
                   w3_ref, b3_ref,
                   w4_ref, b4_ref,
                   out_ref):              # VMEM (TB, 128) bf16
    """4-layer MLP forward for one batch tile; f32 accumulation on the MXU."""
    a1 = alphas_ref[0]
    a2 = alphas_ref[1]
    a3 = alphas_ref[2]

    # In-kernel f32 -> bf16 cast (no wrapper-side pad/cast pass over x).
    x = x_ref[...].astype(jnp.bfloat16)                              # (TB, 2800)

    # Linear(2800 -> 512) + PReLU   (bf16 operands, f32 accumulation)
    h = jnp.dot(x, w1_ref[...], preferred_element_type=jnp.float32) + b1_ref[...]
    h = jnp.where(h >= 0, h, a1 * h)

    # Linear(512 -> 256) + PReLU
    h = jnp.dot(h.astype(jnp.bfloat16), w2_ref[...],
                preferred_element_type=jnp.float32) + b2_ref[...]
    h = jnp.where(h >= 0, h, a2 * h)

    # Linear(256 -> 128) + PReLU
    h = jnp.dot(h.astype(jnp.bfloat16), w3_ref[...],
                preferred_element_type=jnp.float32) + b3_ref[...]
    h = jnp.where(h >= 0, h, a3 * h)

    # Linear(128 -> 28) (output lanes padded to 128)
    out = jnp.dot(h.astype(jnp.bfloat16), w4_ref[...],
                  preferred_element_type=jnp.float32) + b4_ref[...]
    out_ref[...] = out.astype(out_ref.dtype)


def pack_params(params):
    """One-time prep: bf16 weights (w1 kept at K=2800), lane-padded w4/b4."""
    bf16, f32 = jnp.bfloat16, jnp.float32
    w4 = jnp.zeros((D_H3, N_PAD), bf16).at[:, :D_OUT].set(params["w4"].astype(bf16))
    b4 = jnp.zeros((1, N_PAD), f32).at[:, :D_OUT].set(params["b4"].astype(f32))
    alphas = jnp.stack([params["a1"].reshape(()),
                        params["a2"].reshape(()),
                        params["a3"].reshape(())]).astype(f32)       # (3,) for SMEM
    return {
        "alphas": alphas,
        "w1": params["w1"].astype(bf16), "b1": params["b1"].astype(f32),
        "w2": params["w2"].astype(bf16), "b2": params["b2"].astype(f32),
        "w3": params["w3"].astype(bf16), "b3": params["b3"].astype(f32),
        "w4": w4, "b4": b4,
    }


@jax.jit
def encoder_forward(x, packed):
    """x: (B, 2800) f32.  packed: output of pack_params().  Returns (B, 28) f32."""
    B = x.shape[0]
    TB = _choose_tile(B)
    B_pad = _round_up(B, TB)

    # Pad only the batch-row remainder (static no-op when B_pad == B).
    if B_pad != B:
        x = jnp.pad(x, ((0, B_pad - B), (0, 0)))

    tile = lambda i, _alphas: (i, 0)     # batch-tiled operands
    const = lambda i, _alphas: (0, 0)    # resident weights/biases

    def resident(shape):
        # Constant block index -> single-buffered: saves VMEM, one fill DMA.
        return pl.BlockSpec(shape, const, pipeline_mode=pl.Buffered(1))

    grid_spec = pltpu.PrefetchScalarGridSpec(
        num_scalar_prefetch=1,                     # alphas -> SMEM
        grid=(B_pad // TB,),
        in_specs=[
            pl.BlockSpec((TB, D_IN), tile),        # x (unpadded K=2800, f32)
            resident((D_IN, D_H1)),                # w1
            resident((1, D_H1)),                   # b1
            resident((D_H1, D_H2)),                # w2
            resident((1, D_H2)),                   # b2
            resident((D_H2, D_H3)),                # w3
            resident((1, D_H3)),                   # b3
            resident((D_H3, N_PAD)),               # w4 (output-padded)
            resident((1, N_PAD)),                  # b4 (output-padded)
        ],
        out_specs=pl.BlockSpec((TB, N_PAD), tile),
    )

    param_bytes = sum(int(v.size) * int(v.dtype.itemsize)
                      for k, v in packed.items() if k != "alphas")
    flops = 2 * B_pad * (D_IN * D_H1 + D_H1 * D_H2 + D_H2 * D_H3 + D_H3 * N_PAD)
    bytes_accessed = B_pad * D_IN * 4 + param_bytes + B_pad * N_PAD * 2

    out_pad = pl.pallas_call(
        encoder_kernel,
        out_shape=jax.ShapeDtypeStruct((B_pad, N_PAD), jnp.bfloat16),
        grid_spec=grid_spec,
        compiler_params=pltpu.CompilerParams(
            dimension_semantics=("parallel",),     # megacore-shard the batch axis
            vmem_limit_bytes=48 << 20,             # headroom on v7x's 64 MiB/TC
        ),
        cost_estimate=pl.CostEstimate(
            flops=flops, transcendentals=0, bytes_accessed=bytes_accessed),
    )(packed["alphas"], x,
      packed["w1"], packed["b1"],
      packed["w2"], packed["b2"],
      packed["w3"], packed["b3"],
      packed["w4"], packed["b4"])

    return out_pad[:B, :D_OUT].astype(jnp.float32)


def init_params(key):
    """Deterministic synthetic parameters with the shapes nn.Module implies."""
    dims = [D_IN, D_H1, D_H2, D_H3, D_OUT]
    params = {}
    keys = jax.random.split(key, 8)
    ki = 0
    for layer in range(4):
        fan_in, fan_out = dims[layer], dims[layer + 1]
        bound = 1.0 / jnp.sqrt(fan_in)
        # weight stored as (in, out) so the kernel does x @ W
        params[f"w{layer+1}"] = jax.random.uniform(
            keys[ki], (fan_in, fan_out), jnp.float32, -bound, bound)
        ki += 1
        params[f"b{layer+1}"] = jax.random.uniform(
            keys[ki], (1, fan_out), jnp.float32, -bound, bound)
        ki += 1
    # PReLU: single learnable alpha, PyTorch default init 0.25
    for i in (1, 2, 3):
        params[f"a{i}"] = jnp.full((1, 1), 0.25, jnp.float32)
    return params


def encoder_ref(x, p):
    """Plain-JAX reference with the same precision policy as the kernel
    (bf16 matmul operands, f32 accumulation, f32 bias/PReLU)."""
    bf16 = jnp.bfloat16

    def lin(h, w, b):
        return jnp.dot(h.astype(bf16), w.astype(bf16),
                       preferred_element_type=jnp.float32) + b.astype(jnp.float32)

    def prelu(h, a):
        return jnp.where(h >= 0, h, a.reshape(()) * h)

    h = prelu(lin(x, p["w1"], p["b1"]), p["a1"])
    h = prelu(lin(h, p["w2"], p["b2"]), p["a2"])
    h = prelu(lin(h, p["w3"], p["b3"]), p["a3"])
    return lin(h, p["w4"], p["b4"])


if __name__ == "__main__":
    key = jax.random.PRNGKey(0)
    k_params, k_x = jax.random.split(key)

    params = init_params(k_params)
    packed = pack_params(params)

    batch = 8
    x = jax.random.normal(k_x, (batch, D_IN), jnp.float32)

    out = encoder_forward(x, packed)
    out = jax.block_until_ready(out)

    ref = encoder_ref(x, params)
    assert out.shape == (batch, D_OUT), out.shape
    max_err = float(jnp.max(jnp.abs(out - ref)))
    assert jnp.allclose(out, ref, atol=1e-2, rtol=1e-2), f"mismatch vs reference ({max_err})"

    print("KERNEL_OK")
</pallas_src>

<mosaic_0001>
module attributes {stable_mosaic.version = 11 : i64} {
  func.func @encoder_kernel(%arg0: i32, %arg1: memref<3xf32, #tpu.memory_space<smem>>, %arg2: memref<8x2800xf32, #tpu.memory_space<vmem>>, %arg3: memref<2800x512xbf16, #tpu.memory_space<vmem>>, %arg4: memref<1x512xf32, #tpu.memory_space<vmem>>, %arg5: memref<512x256xbf16, #tpu.memory_space<vmem>>, %arg6: memref<1x256xf32, #tpu.memory_space<vmem>>, %arg7: memref<256x128xbf16, #tpu.memory_space<vmem>>, %arg8: memref<1x128xf32, #tpu.memory_space<vmem>>, %arg9: memref<128x128xbf16, #tpu.memory_space<vmem>>, %arg10: memref<1x128xf32, #tpu.memory_space<vmem>>, %arg11: memref<8x128xbf16, #tpu.memory_space<vmem>>) attributes {dimension_semantics = [#tpu.dimension_semantics<parallel>], iteration_bounds = array<i64: 1>, scalar_prefetch = 1 : i64, scratch_operands = 0 : i64, tpu.core_type = #tpu.core_type<tc>, window_params = [{transform_indices = @transform_0, window_bounds = array<i64: 8, 2800>}, {pipeline_mode = #tpu.pipeline_mode<synchronous>, transform_indices = @transform_1, window_bounds = array<i64: 2800, 512>}, {pipeline_mode = #tpu.pipeline_mode<synchronous>, transform_indices = @transform_2, window_bounds = array<i64: 1, 512>}, {pipeline_mode = #tpu.pipeline_mode<synchronous>, transform_indices = @transform_3, window_bounds = array<i64: 512, 256>}, {pipeline_mode = #tpu.pipeline_mode<synchronous>, transform_indices = @transform_4, window_bounds = array<i64: 1, 256>}, {pipeline_mode = #tpu.pipeline_mode<synchronous>, transform_indices = @transform_5, window_bounds = array<i64: 256, 128>}, {pipeline_mode = #tpu.pipeline_mode<synchronous>, transform_indices = @transform_6, window_bounds = array<i64: 1, 128>}, {pipeline_mode = #tpu.pipeline_mode<synchronous>, transform_indices = @transform_7, window_bounds = array<i64: 128, 128>}, {pipeline_mode = #tpu.pipeline_mode<synchronous>, transform_indices = @transform_8, window_bounds = array<i64: 1, 128>}, {transform_indices = @transform_9, window_bounds = array<i64: 8, 128>}]} {
    %c0 = arith.constant 0 : index
    %0 = memref.load %arg1[%c0] : memref<3xf32, #tpu.memory_space<smem>>
    %c1 = arith.constant 1 : index
    %1 = memref.load %arg1[%c1] : memref<3xf32, #tpu.memory_space<smem>>
    %c2 = arith.constant 2 : index
    %2 = memref.load %arg1[%c2] : memref<3xf32, #tpu.memory_space<smem>>
    %c0_0 = arith.constant 0 : index
    %c0_1 = arith.constant 0 : index
    %3 = vector.load %arg2[%c0_0, %c0_1] : memref<8x2800xf32, #tpu.memory_space<vmem>>, vector<8x2800xf32>
    %4 = arith.truncf %3 : vector<8x2800xf32> to vector<8x2800xbf16>
    %c0_2 = arith.constant 0 : index
    %c0_3 = arith.constant 0 : index
    %5 = vector.load %arg3[%c0_2, %c0_3] : memref<2800x512xbf16, #tpu.memory_space<vmem>>, vector<2800x512xbf16>
    %cst = arith.constant dense<0.000000e+00> : vector<8x512xf32>
    %6 = tpu.matmul %4, %5, %cst {dimension_numbers = #tpu.dot_dimension_numbers<[1], [0], [0], [1], [0, 0, 1, 1], [], []>} : vector<8x2800xbf16>, vector<2800x512xbf16>, vector<8x512xf32> -> vector<8x512xf32>
    %c0_4 = arith.constant 0 : index
    %c0_5 = arith.constant 0 : index
    %7 = vector.load %arg4[%c0_4, %c0_5] : memref<1x512xf32, #tpu.memory_space<vmem>>, vector<1x512xf32>
    %8 = vector.broadcast %7 : vector<1x512xf32> to vector<8x512xf32>
    %9 = arith.addf %6, %8 : vector<8x512xf32>
    %cst_6 = arith.constant 0.000000e+00 : f32
    %10 = vector.broadcast %cst_6 : f32 to vector<8x512xf32>
    %11 = arith.cmpf oge, %9, %10 : vector<8x512xf32>
    %12 = vector.broadcast %0 : f32 to vector<8x512xf32>
    %13 = arith.mulf %12, %9 : vector<8x512xf32>
    %14 = arith.select %11, %9, %13 : vector<8x512xi1>, vector<8x512xf32>
    %15 = arith.truncf %14 : vector<8x512xf32> to vector<8x512xbf16>
    %c0_7 = arith.constant 0 : index
    %c0_8 = arith.constant 0 : index
    %16 = vector.load %arg5[%c0_7, %c0_8] : memref<512x256xbf16, #tpu.memory_space<vmem>>, vector<512x256xbf16>
    %cst_9 = arith.constant dense<0.000000e+00> : vector<8x256xf32>
    %17 = tpu.matmul %15, %16, %cst_9 {dimension_numbers = #tpu.dot_dimension_numbers<[1], [0], [0], [1], [0, 0, 1, 1], [], []>} : vector<8x512xbf16>, vector<512x256xbf16>, vector<8x256xf32> -> vector<8x256xf32>
    %c0_10 = arith.constant 0 : index
    %c0_11 = arith.constant 0 : index
    %18 = vector.load %arg6[%c0_10, %c0_11] : memref<1x256xf32, #tpu.memory_space<vmem>>, vector<1x256xf32>
    %19 = vector.broadcast %18 : vector<1x256xf32> to vector<8x256xf32>
    %20 = arith.addf %17, %19 : vector<8x256xf32>
    %cst_12 = arith.constant 0.000000e+00 : f32
    %21 = vector.broadcast %cst_12 : f32 to vector<8x256xf32>
    %22 = arith.cmpf oge, %20, %21 : vector<8x256xf32>
    %23 = vector.broadcast %1 : f32 to vector<8x256xf32>
    %24 = arith.mulf %23, %20 : vector<8x256xf32>
    %25 = arith.select %22, %20, %24 : vector<8x256xi1>, vector<8x256xf32>
    %26 = arith.truncf %25 : vector<8x256xf32> to vector<8x256xbf16>
    %c0_13 = arith.constant 0 : index
    %c0_14 = arith.constant 0 : index
    %27 = vector.load %arg7[%c0_13, %c0_14] : memref<256x128xbf16, #tpu.memory_space<vmem>>, vector<256x128xbf16>
    %cst_15 = arith.constant dense<0.000000e+00> : vector<8x128xf32>
    %28 = tpu.matmul %26, %27, %cst_15 {dimension_numbers = #tpu.dot_dimension_numbers<[1], [0], [0], [1], [0, 0, 1, 1], [], []>} : vector<8x256xbf16>, vector<256x128xbf16>, vector<8x128xf32> -> vector<8x128xf32>
    %c0_16 = arith.constant 0 : index
    %c0_17 = arith.constant 0 : index
    %29 = vector.load %arg8[%c0_16, %c0_17] : memref<1x128xf32, #tpu.memory_space<vmem>>, vector<1x128xf32>
    %30 = vector.broadcast %29 : vector<1x128xf32> to vector<8x128xf32>
    %31 = arith.addf %28, %30 : vector<8x128xf32>
    %cst_18 = arith.constant 0.000000e+00 : f32
    %32 = vector.broadcast %cst_18 : f32 to vector<8x128xf32>
    %33 = arith.cmpf oge, %31, %32 : vector<8x128xf32>
    %34 = vector.broadcast %2 : f32 to vector<8x128xf32>
    %35 = arith.mulf %34, %31 : vector<8x128xf32>
    %36 = arith.select %33, %31, %35 : vector<8x128xi1>, vector<8x128xf32>
    %37 = arith.truncf %36 : vector<8x128xf32> to vector<8x128xbf16>
    %c0_19 = arith.constant 0 : index
    %c0_20 = arith.constant 0 : index
    %38 = vector.load %arg9[%c0_19, %c0_20] : memref<128x128xbf16, #tpu.memory_space<vmem>>, vector<128x128xbf16>
    %cst_21 = arith.constant dense<0.000000e+00> : vector<8x128xf32>
    %39 = tpu.matmul %37, %38, %cst_21 {dimension_numbers = #tpu.dot_dimension_numbers<[1], [0], [0], [1], [0, 0, 1, 1], [], []>} : vector<8x128xbf16>, vector<128x128xbf16>, vector<8x128xf32> -> vector<8x128xf32>
    %c0_22 = arith.constant 0 : index
    %c0_23 = arith.constant 0 : index
    %40 = vector.load %arg10[%c0_22, %c0_23] : memref<1x128xf32, #tpu.memory_space<vmem>>, vector<1x128xf32>
    %41 = vector.broadcast %40 : vector<1x128xf32> to vector<8x128xf32>
    %42 = arith.addf %39, %41 : vector<8x128xf32>
    %43 = arith.truncf %42 : vector<8x128xf32> to vector<8x128xbf16>
    %c0_24 = arith.constant 0 : index
    %c0_25 = arith.constant 0 : index
    %44 = vector.load %arg11[%c0_24, %c0_25] : memref<8x128xbf16, #tpu.memory_space<vmem>>, vector<8x128xbf16>
    tpu.vector_store %arg11[%c0_24, %c0_25], %43 {strides = array<i32>} : memref<8x128xbf16, #tpu.memory_space<vmem>>, vector<8x128xbf16>,
    return
  }
  func.func @transform_0(%arg0: i32, %arg1: memref<3xf32, #tpu.memory_space<smem>>) -> (i32, i32) {
    %c0_i32 = arith.constant 0 : i32
    %c0_i32_0 = arith.constant 0 : i32
    return %arg0, %c0_i32 : i32, i32
  }
  func.func @transform_1(%arg0: i32, %arg1: memref<3xf32, #tpu.memory_space<smem>>) -> (i32, i32) {
    %c0_i32 = arith.constant 0 : i32
    %c0_i32_0 = arith.constant 0 : i32
    %c0_i32_1 = arith.constant 0 : i32
    return %c0_i32, %c0_i32_0 : i32, i32
  }
  func.func @transform_2(%arg0: i32, %arg1: memref<3xf32, #tpu.memory_space<smem>>) -> (i32, i32) {
    %c0_i32 = arith.constant 0 : i32
    %c0_i32_0 = arith.constant 0 : i32
    %c0_i32_1 = arith.constant 0 : i32
    return %c0_i32, %c0_i32_0 : i32, i32
  }
  func.func @transform_3(%arg0: i32, %arg1: memref<3xf32, #tpu.memory_space<smem>>) -> (i32, i32) {
    %c0_i32 = arith.constant 0 : i32
    %c0_i32_0 = arith.constant 0 : i32
    %c0_i32_1 = arith.constant 0 : i32
    return %c0_i32, %c0_i32_0 : i32, i32
  }
  func.func @transform_4(%arg0: i32, %arg1: memref<3xf32, #tpu.memory_space<smem>>) -> (i32, i32) {
    %c0_i32 = arith.constant 0 : i32
    %c0_i32_0 = arith.constant 0 : i32
    %c0_i32_1 = arith.constant 0 : i32
    return %c0_i32, %c0_i32_0 : i32, i32
  }
  func.func @transform_5(%arg0: i32, %arg1: memref<3xf32, #tpu.memory_space<smem>>) -> (i32, i32) {
    %c0_i32 = arith.constant 0 : i32
    %c0_i32_0 = arith.constant 0 : i32
    %c0_i32_1 = arith.constant 0 : i32
    return %c0_i32, %c0_i32_0 : i32, i32
  }
  func.func @transform_6(%arg0: i32, %arg1: memref<3xf32, #tpu.memory_space<smem>>) -> (i32, i32) {
    %c0_i32 = arith.constant 0 : i32
    %c0_i32_0 = arith.constant 0 : i32
    %c0_i32_1 = arith.constant 0 : i32
    return %c0_i32, %c0_i32_0 : i32, i32
  }
  func.func @transform_7(%arg0: i32, %arg1: memref<3xf32, #tpu.memory_space<smem>>) -> (i32, i32) {
    %c0_i32 = arith.constant 0 : i32
    %c0_i32_0 = arith.constant 0 : i32
    %c0_i32_1 = arith.constant 0 : i32
    return %c0_i32, %c0_i32_0 : i32, i32
  }
  func.func @transform_8(%arg0: i32, %arg1: memref<3xf32, #tpu.memory_space<smem>>) -> (i32, i32) {
    %c0_i32 = arith.constant 0 : i32
    %c0_i32_0 = arith.constant 0 : i32
    %c0_i32_1 = arith.constant 0 : i32
    return %c0_i32, %c0_i32_0 : i32, i32
  }
  func.func @transform_9(%arg0: i32, %arg1: memref<3xf32, #tpu.memory_space<smem>>) -> (i32, i32) {
    %c0_i32 = arith.constant 0 : i32
    %c0_i32_0 = arith.constant 0 : i32
    return %arg0, %c0_i32 : i32, i32
  }
}

</mosaic_0001>

<llo_original>
// kernel: encoder_forward.1
$region0: #{encoder_forward.1}
  #allocation0 [shape = 'u32[]', space=smem, size = 0x4, offset = 0x4, fixed_abs, tag = 'smem constant byte address 0x4 - core index']
  #allocation1 [shape = 'u32[144,128]{1,0:T(1,128)}', space=vmem, size = 0x12000, scoped, tag = 'internal scratch']
  #allocation2 [shape = 's32[1]{0}', space=sflag, size = 0x4, scoped, tag = 'scoped memory for encoder_forward.1']
  #allocation3 [shape = 'u8[512]{0}', space=smem, size = 0x200, scoped, tag = 'prefetched SMEM operand 0']
  %s0 = inlined_call_operand.hbm [shape: f32[3], index: 0, kind: input, shape index: {}]
  %s1 = inlined_call_operand.hbm [shape: f32[8,2800], index: 1, kind: input, shape index: {}]
  %s2 = inlined_call_operand.hbm [shape: bf16[2800,512], index: 2, kind: input, shape index: {}]
  %s3 = inlined_call_operand.hbm [shape: f32[1,512], index: 3, kind: input, shape index: {}]
  %s4 = inlined_call_operand.hbm [shape: bf16[512,256], index: 4, kind: input, shape index: {}]
  %s5 = inlined_call_operand.hbm [shape: f32[1,256], index: 5, kind: input, shape index: {}]
  %s6 = inlined_call_operand.hbm [shape: bf16[256,128], index: 6, kind: input, shape index: {}]
  %s7 = inlined_call_operand.hbm [shape: f32[1,128], index: 7, kind: input, shape index: {}]
  %s8 = inlined_call_operand.hbm [shape: bf16[128,128], index: 8, kind: input, shape index: {}]
  %s9 = inlined_call_operand.hbm [shape: f32[1,128], index: 9, kind: input, shape index: {}]
  %s10 = inlined_call_operand.vmem [shape: bf16[8,128], index: 10, kind: output, shape index: {}]
  %s11 = sld [smem:[#allocation0]]
  $region82: #{encoder_forward.1} parent=0
    _
  %s13 = ssub.s32 1, %s11
  %s14 = scalar_select 0, %s13, %s11
  %16 = dma.hbm_to_smem %s0, 16, [#allocation3], [#allocation2]
  %17 = dma.done [#allocation2], 16
  %18 = sfence
  $region1: #{encoder_forward.1} parent=0
    #allocation4 [shape = 'u8[90112]{0}', space=vmem, size = 0x16000, scoped, tag = 'input window, operand 1, single buffered']
    #allocation5 [shape = 's32[1]{0}', space=sflag, size = 0x4, scoped, tag = 'scoped memory for encoder_forward.1']
    #allocation6 [shape = 'u8[2867200]{0}', space=vmem, size = 0x2bc000, scoped, tag = 'input window, operand 2, single buffered']
    #allocation7 [shape = 's32[1]{0}', space=sflag, size = 0x4, scoped, tag = 'scoped memory for encoder_forward.1']
    #allocation8 [shape = 'u8[2048]{0}', space=vmem, size = 0x800, scoped, tag = 'input window, operand 3, single buffered']
    #allocation9 [shape = 'u8[262144]{0}', space=vmem, size = 0x40000, scoped, tag = 'input window, operand 4, single buffered']
    #allocation10 [shape = 's32[1]{0}', space=sflag, size = 0x4, scoped, tag = 'scoped memory for encoder_forward.1']
    #allocation11 [shape = 'u8[1024]{0}', space=vmem, size = 0x400, scoped, tag = 'input window, operand 5, single buffered']
    #allocation12 [shape = 'u8[65536]{0}', space=vmem, size = 0x10000, scoped, tag = 'input window, operand 6, single buffered']
    #allocation13 [shape = 's32[1]{0}', space=sflag, size = 0x4, scoped, tag = 'scoped memory for encoder_forward.1']
    #allocation14 [shape = 'u8[512]{0}', space=vmem, size = 0x400, scoped, tag = 'input window, operand 7, single buffered']
    #allocation15 [shape = 'u8[32768]{0}', space=vmem, size = 0x8000, scoped, tag = 'input window, operand 8, single buffered']
    #allocation16 [shape = 's32[1]{0}', space=sflag, size = 0x4, scoped, tag = 'scoped memory for encoder_forward.1']
    #allocation17 [shape = 'u8[512]{0}', space=vmem, size = 0x400, scoped, tag = 'input window, operand 9, single buffered']
    %19 = vsyncpa [#allocation5], 0
    %20 = vsyncpa [#allocation7], 0
    %21 = vsyncpa [#allocation10], 0
    %22 = vsyncpa [#allocation13], 0
    %23 = vsyncpa [#allocation16], 0
    // Predicated region
    $region2: #{encoder_forward.1} parent=1 // pred_check
      _
    $region3: #{encoder_forward.1} parent=1 // pred_check_branch
      %25 = sbr.rel (0) target = $region5
    $region4: #{encoder_forward.1} parent=1 // pred_region
      %s27 = ssub.s32 2816, 2816
      %28 = vsyncadd [#allocation5], %s27
      %s30 = sshll.u32 [#allocation4], 4
      %s31 = int_to_ptr.vmem [resolvable:$true] %s30
      %33 = dma.hbm_to_vmem [thread:$0]  %s1, 2816, %s31, [#allocation5]
    $region5: #{encoder_forward.1} parent=1 // pred_fallthru
      _
    // Predicated region
    $region6: #{encoder_forward.1} parent=1 // pred_check
      _
    $region7: #{encoder_forward.1} parent=1 // pred_check_branch
      %35 = sbr.rel (0) target = $region9
    $region8: #{encoder_forward.1} parent=1 // pred_region
      %s37 = ssub.s32 89600, 89600
      %38 = vsyncadd [#allocation7], %s37
      %s39 = sshll.u32 [#allocation6], 4
      %s40 = int_to_ptr.vmem [resolvable:$true] %s39
      %45 = dma.hbm_to_vmem [thread:$0]  %s2, 89600, %s40, [#allocation7], 256, 256, 16
    $region9: #{encoder_forward.1} parent=1 // pred_fallthru
      _
    // Predicated region
    $region10: #{encoder_forward.1} parent=1 // pred_check
      _
    $region11: #{encoder_forward.1} parent=1 // pred_check_branch
      %47 = sbr.rel (0) target = $region13
    $region12: #{encoder_forward.1} parent=1 // pred_region
      %s49 = ssub.s32 64, 64
      %50 = vsyncadd [#allocation7], %s49
      %s52 = sshll.u32 [#allocation8], 4
      %s53 = int_to_ptr.vmem [resolvable:$true] %s52
      %55 = dma.hbm_to_vmem [thread:$0]  %s3, 64, %s53, [#allocation7]
    $region13: #{encoder_forward.1} parent=1 // pred_fallthru
      _
    // Predicated region
    $region14: #{encoder_forward.1} parent=1 // pred_check
      _
    $region15: #{encoder_forward.1} parent=1 // pred_check_branch
      %57 = sbr.rel (0) target = $region17
    $region16: #{encoder_forward.1} parent=1 // pred_region
      %s59 = ssub.s32 8192, 8192
      %60 = vsyncadd [#allocation10], %s59
      %s61 = sshll.u32 [#allocation9], 4
      %s62 = int_to_ptr.vmem [resolvable:$true] %s61
      %67 = dma.hbm_to_vmem [thread:$0]  %s4, 8192, %s62, [#allocation10], 128, 128, 8
    $region17: #{encoder_forward.1} parent=1 // pred_fallthru
      _
    // Predicated region
    $region18: #{encoder_forward.1} parent=1 // pred_check
      _
    $region19: #{encoder_forward.1} parent=1 // pred_check_branch
      %69 = sbr.rel (0) target = $region21
    $region20: #{encoder_forward.1} parent=1 // pred_region
      %s71 = ssub.s32 32, 32
      %72 = vsyncadd [#allocation10], %s71
      %s74 = sshll.u32 [#allocation11], 4
      %s75 = int_to_ptr.vmem [resolvable:$true] %s74
      %77 = dma.hbm_to_vmem [thread:$0]  %s5, 32, %s75, [#allocation10]
    $region21: #{encoder_forward.1} parent=1 // pred_fallthru
      _
    // Predicated region
    $region22: #{encoder_forward.1} parent=1 // pred_check
      _
    $region23: #{encoder_forward.1} parent=1 // pred_check_branch
      %79 = sbr.rel (0) target = $region25
    $region24: #{encoder_forward.1} parent=1 // pred_region
      %s81 = ssub.s32 2048, 2048
      %82 = vsyncadd [#allocation13], %s81
      %s83 = sshll.u32 [#allocation12], 4
      %s84 = int_to_ptr.vmem [resolvable:$true] %s83
      %89 = dma.hbm_to_vmem [thread:$0]  %s6, 2048, %s84, [#allocation13], 64, 64, 4
    $region25: #{encoder_forward.1} parent=1 // pred_fallthru
      _
    // Predicated region
    $region26: #{encoder_forward.1} parent=1 // pred_check
      _
    $region27: #{encoder_forward.1} parent=1 // pred_check_branch
      %91 = sbr.rel (0) target = $region29
    $region28: #{encoder_forward.1} parent=1 // pred_region
      %s93 = ssub.s32 16, 16
      %94 = vsyncadd [#allocation13], %s93
      %s96 = sshll.u32 [#allocation14], 4
      %s97 = int_to_ptr.vmem [resolvable:$true] %s96
      %99 = dma.hbm_to_vmem [thread:$0]  %s7, 16, %s97, [#allocation13]
    $region29: #{encoder_forward.1} parent=1 // pred_fallthru
      _
    // Predicated region
    $region30: #{encoder_forward.1} parent=1 // pred_check
      _
    $region31: #{encoder_forward.1} parent=1 // pred_check_branch
      %101 = sbr.rel (0) target = $region33
    $region32: #{encoder_forward.1} parent=1 // pred_region
      %s103 = ssub.s32 1024, 1024
      %104 = vsyncadd [#allocation16], %s103
      %s105 = sshll.u32 [#allocation15], 4
      %s106 = int_to_ptr.vmem [resolvable:$true] %s105
      %111 = dma.hbm_to_vmem [thread:$0]  %s8, 1024, %s106, [#allocation16], 64, 64, 4
    $region33: #{encoder_forward.1} parent=1 // pred_fallthru
      _
    // Predicated region
    $region34: #{encoder_forward.1} parent=1 // pred_check
      _
    $region35: #{encoder_forward.1} parent=1 // pred_check_branch
      %113 = sbr.rel (0) target = $region37
    $region36: #{encoder_forward.1} parent=1 // pred_region
      %s115 = ssub.s32 16, 16
      %116 = vsyncadd [#allocation16], %s115
      %s118 = sshll.u32 [#allocation17], 4
      %s119 = int_to_ptr.vmem [resolvable:$true] %s118
      %121 = dma.hbm_to_vmem [thread:$0]  %s9, 16, %s119, [#allocation16]
    $region37: #{encoder_forward.1} parent=1 // pred_fallthru
      _
    // Predicated region
    $region38: #{encoder_forward.1} parent=1 // pred_check
      _
    $region39: #{encoder_forward.1} parent=1 // pred_check_branch
      %123 = sbr.rel (0) target = $region41
    $region40: #{encoder_forward.1} parent=1 // pred_region
      %124 = dma.done [#allocation5], 2816
    $region41: #{encoder_forward.1} parent=1 // pred_fallthru
      _
    // Predicated region
    $region42: #{encoder_forward.1} parent=1 // pred_check
      _
    $region43: #{encoder_forward.1} parent=1 // pred_check_branch
      %126 = sbr.rel (0) target = $region45
    $region44: #{encoder_forward.1} parent=1 // pred_region
      %127 = dma.done [#allocation7], 89600
    $region45: #{encoder_forward.1} parent=1 // pred_fallthru
      _
    // Predicated region
    $region46: #{encoder_forward.1} parent=1 // pred_check
      _
    $region47: #{encoder_forward.1} parent=1 // pred_check_branch
      %129 = sbr.rel (0) target = $region49
    $region48: #{encoder_forward.1} parent=1 // pred_region
      %130 = dma.done [#allocation7], 64
    $region49: #{encoder_forward.1} parent=1 // pred_fallthru
      _
    // Predicated region
    $region50: #{encoder_forward.1} parent=1 // pred_check
      _
    $region51: #{encoder_forward.1} parent=1 // pred_check_branch
      %132 = sbr.rel (0) target = $region53
    $region52: #{encoder_forward.1} parent=1 // pred_region
      %133 = dma.done [#allocation10], 8192
    $region53: #{encoder_forward.1} parent=1 // pred_fallthru
      _
    // Predicated region
    $region54: #{encoder_forward.1} parent=1 // pred_check
      _
    $region55: #{encoder_forward.1} parent=1 // pred_check_branch
      %135 = sbr.rel (0) target = $region57
    $region56: #{encoder_forward.1} parent=1 // pred_region
      %136 = dma.done [#allocation10], 32
    $region57: #{encoder_forward.1} parent=1 // pred_fallthru
      _
    // Predicated region
    $region58: #{encoder_forward.1} parent=1 // pred_check
      _
    $region59: #{encoder_forward.1} parent=1 // pred_check_branch
      %138 = sbr.rel (0) target = $region61
    $region60: #{encoder_forward.1} parent=1 // pred_region
      %139 = dma.done [#allocation13], 2048
    $region61: #{encoder_forward.1} parent=1 // pred_fallthru
      _
    // Predicated region
    $region62: #{encoder_forward.1} parent=1 // pred_check
      _
    $region63: #{encoder_forward.1} parent=1 // pred_check_branch
      %141 = sbr.rel (0) target = $region65
    $region64: #{encoder_forward.1} parent=1 // pred_region
      %142 = dma.done [#allocation13], 16
    $region65: #{encoder_forward.1} parent=1 // pred_fallthru
      _
    // Predicated region
    $region66: #{encoder_forward.1} parent=1 // pred_check
      _
    $region67: #{encoder_forward.1} parent=1 // pred_check_branch
      %144 = sbr.rel (0) target = $region69
    $region68: #{encoder_forward.1} parent=1 // pred_region
      %145 = dma.done [#allocation16], 1024
    $region69: #{encoder_forward.1} parent=1 // pred_fallthru
      _
    // Predicated region
    $region70: #{encoder_forward.1} parent=1 // pred_check
      _
    $region71: #{encoder_forward.1} parent=1 // pred_check_branch
      %147 = sbr.rel (0) target = $region73
    $region72: #{encoder_forward.1} parent=1 // pred_region
      %148 = dma.done [#allocation16], 16
    $region73: #{encoder_forward.1} parent=1 // pred_fallthru
      _
    %s150 = sld [smem:[#allocation3]]
    %s151 = sld [smem:[#allocation3 + $0x1]]
    %s152 = sld [smem:[#allocation3 + $0x2]]
    %v153 = vld [vmem:[#allocation4] sm:$0xff]
    %v154 = vld [vmem:[#allocation4 + $0x8] sm:$0xff]
    %v155 = vld [vmem:[#allocation4 + $0x10] sm:$0xff]
    %v156 = vld [vmem:[#allocation4 + $0x18] sm:$0xff]
    %v157 = vld [vmem:[#allocation4 + $0x20] sm:$0xff]
    %v158 = vld [vmem:[#allocation4 + $0x28] sm:$0xff]
    %v159 = vld [vmem:[#allocation4 + $0x30] sm:$0xff]
    %v160 = vld [vmem:[#allocation4 + $0x38] sm:$0xff]
    %v161 = vld [vmem:[#allocation4 + $0x40] sm:$0xff]
    %v162 = vld [vmem:[#allocation4 + $0x48] sm:$0xff]
    %v163 = vld [vmem:[#allocation4 + $0x50] sm:$0xff]
    %v164 = vld [vmem:[#allocation4 + $0x58] sm:$0xff]
    %v165 = vld [vmem:[#allocation4 + $0x60] sm:$0xff]
    %v166 = vld [vmem:[#allocation4 + $0x68] sm:$0xff]
    %v167 = vld [vmem:[#allocation4 + $0x70] sm:$0xff]
    %v168 = vld [vmem:[#allocation4 + $0x78] sm:$0xff]
    %v169 = vld [vmem:[#allocation4 + $0x80] sm:$0xff]
    %v170 = vld [vmem:[#allocation4 + $0x88] sm:$0xff]
    %v171 = vld [vmem:[#allocation4 + $0x90] sm:$0xff]
    %v172 = vld [vmem:[#allocation4 + $0x98] sm:$0xff]
    %v173 = vld [vmem:[#allocation4 + $0xa0] sm:$0xff]
    %v174 = vld [vmem:[#allocation4 + $0xa8] sm:$0xff]
    %v175 = vpack.c.bf16 %v153, %v153
    %v176 = vpack.c.bf16 %v154, %v154
    %v177 = vpack.c.bf16 %v155, %v155
    %v178 = vpack.c.bf16 %v156, %v156
    %v179 = vpack.c.bf16 %v157, %v157
    %v180 = vpack.c.bf16 %v158, %v158
    %v181 = vpack.c.bf16 %v159, %v159
    %v182 = vpack.c.bf16 %v160, %v160
    %v183 = vpack.c.bf16 %v161, %v161
    %v184 = vpack.c.bf16 %v162, %v162
    %v185 = vpack.c.bf16 %v163, %v163
    %v186 = vpack.c.bf16 %v164, %v164
    %v187 = vpack.c.bf16 %v165, %v165
    %v188 = vpack.c.bf16 %v166, %v166
    %v189 = vpack.c.bf16 %v167, %v167
    %v190 = vpack.c.bf16 %v168, %v168
    %v191 = vpack.c.bf16 %v169, %v169
    %v192 = vpack.c.bf16 %v170, %v170
    %v193 = vpack.c.bf16 %v171, %v171
    %v194 = vpack.c.bf16 %v172, %v172
    %v195 = vpack.c.bf16 %v173, %v173
    %v196 = vpack.c.bf16 %v174, %v174
    %v197 = vld [vmem:[#allocation6] sm:$0xff]
    %v198 = vld [vmem:[#allocation6 + $0x8] sm:$0xff]
    %v199 = vld [vmem:[#allocation6 + $0x10] sm:$0xff]
    %v200 = vld [vmem:[#allocation6 + $0x18] sm:$0xff]
    %v201 = vld [vmem:[#allocation6 + $0x20] sm:$0xff]
    %v202 = vld [vmem:[#allocation6 + $0x28] sm:$0xff]
    %v203 = vld [vmem:[#allocation6 + $0x30] sm:$0xff]
    %v204 = vld [vmem:[#allocation6 + $0x38] sm:$0xff]
    %v205 = vld [vmem:[#allocation6 + $0x40] sm:$0xff]
    %v206 = vld [vmem:[#allocation6 + $0x48] sm:$0xff]
    %v207 = vld [vmem:[#allocation6 + $0x50] sm:$0xff]
    %v208 = vld [vmem:[#allocation6 + $0x58] sm:$0xff]
    %v209 = vld [vmem:[#allocation6 + $0x60] sm:$0xff]
    %v210 = vld [vmem:[#allocation6 + $0x68] sm:$0xff]
    %v211 = vld [vmem:[#allocation6 + $0x70] sm:$0xff]
    %v212 = vld [vmem:[#allocation6 + $0x78] sm:$0xff]
    %v213 = vld [vmem:[#allocation6 + $0x80] sm:$0xff]
    %v214 = vld [vmem:[#allocation6 + $0x88] sm:$0xff]
    %v215 = vld [vmem:[#allocation6 + $0x90] sm:$0xff]
    %v216 = vld [vmem:[#allocation6 + $0x98] sm:$0xff]
    %v217 = vld [vmem:[#allocation6 + $0xa0] sm:$0xff]
    %v218 = vld [vmem:[#allocation6 + $0xa8] sm:$0xff]
    %v219 = vld [vmem:[#allocation6 + $0xb0] sm:$0xff]
    %v220 = vld [vmem:[#allocation6 + $0xb8] sm:$0xff]
    %v221 = vld [vmem:[#allocation6 + $0xc0] sm:$0xff]
    %v222 = vld [vmem:[#allocation6 + $0xc8] sm:$0xff]
    %v223 = vld [vmem:[#allocation6 + $0xd0] sm:$0xff]
    %v224 = vld [vmem:[#allocation6 + $0xd8] sm:$0xff]
    %v225 = vld [vmem:[#allocation6 + $0xe0] sm:$0xff]
    %v226 = vld [vmem:[#allocation6 + $0xe8] sm:$0xff]
    %v227 = vld [vmem:[#allocation6 + $0xf0] sm:$0xff]
    %v228 = vld [vmem:[#allocation6 + $0xf8] sm:$0xff]
    %v229 = vld [vmem:[#allocation6 + $0x100] sm:$0xff]
    %v230 = vld [vmem:[#allocation6 + $0x108] sm:$0xff]
    %v231 = vld [vmem:[#allocation6 + $0x110] sm:$0xff]
    %v232 = vld [vmem:[#allocation6 + $0x118] sm:$0xff]
    %v233 = vld [vmem:[#allocation6 + $0x120] sm:$0xff]
    %v234 = vld [vmem:[#allocation6 + $0x128] sm:$0xff]
    %v235 = vld [vmem:[#allocation6 + $0x130] sm:$0xff]
    %v236 = vld [vmem:[#allocation6 + $0x138] sm:$0xff]
    %v237 = vld [vmem:[#allocation6 + $0x140] sm:$0xff]
    %v238 = vld [vmem:[#allocation6 + $0x148] sm:$0xff]
    %v239 = vld [vmem:[#allocation6 + $0x150] sm:$0xff]
    %v240 = vld [vmem:[#allocation6 + $0x158] sm:$0xff]
    %v241 = vld [vmem:[#allocation6 + $0x160] sm:$0xff]
    %v242 = vld [vmem:[#allocation6 + $0x168] sm:$0xff]
    %v243 = vld [vmem:[#allocation6 + $0x170] sm:$0xff]
    %v244 = vld [vmem:[#allocation6 + $0x178] sm:$0xff]
    %v245 = vld [vmem:[#allocation6 + $0x180] sm:$0xff]
    %v246 = vld [vmem:[#allocation6 + $0x188] sm:$0xff]
    %v247 = vld [vmem:[#allocation6 + $0x190] sm:$0xff]
    %v248 = vld [vmem:[#allocation6 + $0x198] sm:$0xff]
    %v249 = vld [vmem:[#allocation6 + $0x1a0] sm:$0xff]
    %v250 = vld [vmem:[#allocation6 + $0x1a8] sm:$0xff]
    %v251 = vld [vmem:[#allocation6 + $0x1b0] sm:$0xff]
    %v252 = vld [vmem:[#allocation6 + $0x1b8] sm:$0xff]
    %v253 = vld [vmem:[#allocation6 + $0x1c0] sm:$0xff]
    %v254 = vld [vmem:[#allocation6 + $0x1c8] sm:$0xff]
    %v255 = vld [vmem:[#allocation6 + $0x1d0] sm:$0xff]
    %v256 = vld [vmem:[#allocation6 + $0x1d8] sm:$0xff]
    %v257 = vld [vmem:[#allocation6 + $0x1e0] sm:$0xff]
    %v258 = vld [vmem:[#allocation6 + $0x1e8] sm:$0xff]
    %v259 = vld [vmem:[#allocation6 + $0x1f0] sm:$0xff]
    %v260 = vld [vmem:[#allocation6 + $0x1f8] sm:$0xff]
    %v261 = vld [vmem:[#allocation6 + $0x200] sm:$0xff]
    %v262 = vld [vmem:[#allocation6 + $0x208] sm:$0xff]
    %v263 = vld [vmem:[#allocation6 + $0x210] sm:$0xff]
    %v264 = vld [vmem:[#allocation6 + $0x218] sm:$0xff]
    %v265 = vld [vmem:[#allocation6 + $0x220] sm:$0xff]
    %v266 = vld [vmem:[#allocation6 + $0x228] sm:$0xff]
    %v267 = vld [vmem:[#allocation6 + $0x230] sm:$0xff]
    %v268 = vld [vmem:[#allocation6 + $0x238] sm:$0xff]
    %v269 = vld [vmem:[#allocation6 + $0x240] sm:$0xff]
    %v270 = vld [vmem:[#allocation6 + $0x248] sm:$0xff]
    %v271 = vld [vmem:[#allocation6 + $0x250] sm:$0xff]
    %v272 = vld [vmem:[#allocation6 + $0x258] sm:$0xff]
    %v273 = vld [vmem:[#allocation6 + $0x260] sm:$0xff]
    %v274 = vld [vmem:[#allocation6 + $0x268] sm:$0xff]
    %v275 = vld [vmem:[#allocation6 + $0x270] sm:$0xff]
    %v276 = vld [vmem:[#allocation6 + $0x278] sm:$0xff]
    %v277 = vld [vmem:[#allocation6 + $0x280] sm:$0xff]
    %v278 = vld [vmem:[#allocation6 + $0x288] sm:$0xff]
    %v279 = vld [vmem:[#allocation6 + $0x290] sm:$0xff]
    %v280 = vld [vmem:[#allocation6 + $0x298] sm:$0xff]
    %v281 = vld [vmem:[#allocation6 + $0x2a0] sm:$0xff]
    %v282 = vld [vmem:[#allocation6 + $0x2a8] sm:$0xff]
    %v283 = vld [vmem:[#allocation6 + $0x2b0] sm:$0xff]
    %v284 = vld [vmem:[#allocation6 + $0x2b8] sm:$0xff]
    %v285 = vld [vmem:[#allocation6 + $0x2c0] sm:$0xff]
    %v286 = vld [vmem:[#allocation6 + $0x2c8] sm:$0xff]
    %v287 = vld [vmem:[#allocation6 + $0x2d0] sm:$0xff]
    %v288 = vld [vmem:[#allocation6 + $0x2d8] sm:$0xff]
    %v289 = vld [vmem:[#allocation6 + $0x2e0] sm:$0xff]
    %v290 = vld [vmem:[#allocation6 + $0x2e8] sm:$0xff]
    %v291 = vld [vmem:[#allocation6 + $0x2f0] sm:$0xff]
    %v292 = vld [vmem:[#allocation6 + $0x2f8] sm:$0xff]
    %v293 = vld [vmem:[#allocation6 + $0x300] sm:$0xff]
    %v294 = vld [vmem:[#allocation6 + $0x308] sm:$0xff]
    %v295 = vld [vmem:[#allocation6 + $0x310] sm:$0xff]
    %v296 = vld [vmem:[#allocation6 + $0x318] sm:$0xff]
    %v297 = vld [vmem:[#allocation6 + $0x320] sm:$0xff]
    %v298 = vld [vmem:[#allocation6 + $0x328] sm:$0xff]
    %v299 = vld [vmem:[#allocation6 + $0x330] sm:$0xff]
    %v300 = vld [vmem:[#allocation6 + $0x338] sm:$0xff]
    %v301 = vld [vmem:[#allocation6 + $0x340] sm:$0xff]
    %v302 = vld [vmem:[#allocation6 + $0x348] sm:$0xff]
    %v303 = vld [vmem:[#allocation6 + $0x350] sm:$0xff]
    %v304 = vld [vmem:[#allocation6 + $0x358] sm:$0xff]
    %v305 = vld [vmem:[#allocation6 + $0x360] sm:$0xff]
    %v306 = vld [vmem:[#allocation6 + $0x368] sm:$0xff]
    %v307 = vld [vmem:[#allocation6 + $0x370] sm:$0xff]
    %v308 = vld [vmem:[#allocation6 + $0x378] sm:$0xff]
    %v309 = vld [vmem:[#allocation6 + $0x380] sm:$0xff]
    %v310 = vld [vmem:[#allocation6 + $0x388] sm:$0xff]
    %v311 = vld [vmem:[#allocation6 + $0x390] sm:$0xff]
    %v312 = vld [vmem:[#allocation6 + $0x398] sm:$0xff]
    %v313 = vld [vmem:[#allocation6 + $0x3a0] sm:$0xff]
    %v314 = vld [vmem:[#allocation6 + $0x3a8] sm:$0xff]
    %v315 = vld [vmem:[#allocation6 + $0x3b0] sm:$0xff]
    %v316 = vld [vmem:[#allocation6 + $0x3b8] sm:$0xff]
    %v317 = vld [vmem:[#allocation6 + $0x3c0] sm:$0xff]
    %v318 = vld [vmem:[#allocation6 + $0x3c8] sm:$0xff]
    %v319 = vld [vmem:[#allocation6 + $0x3d0] sm:$0xff]
    %v320 = vld [vmem:[#allocation6 + $0x3d8] sm:$0xff]
    %v321 = vld [vmem:[#allocation6 + $0x3e0] sm:$0xff]
    %v322 = vld [vmem:[#allocation6 + $0x3e8] sm:$0xff]
    %v323 = vld [vmem:[#allocation6 + $0x3f0] sm:$0xff]
    %v324 = vld [vmem:[#allocation6 + $0x3f8] sm:$0xff]
    %v325 = vld [vmem:[#allocation6 + $0x400] sm:$0xff]
    %v326 = vld [vmem:[#allocation6 + $0x408] sm:$0xff]
    %v327 = vld [vmem:[#allocation6 + $0x410] sm:$0xff]
    %v328 = vld [vmem:[#allocation6 + $0x418] sm:$0xff]
    %v329 = vld [vmem:[#allocation6 + $0x420] sm:$0xff]
    %v330 = vld [vmem:[#allocation6 + $0x428] sm:$0xff]
    %v331 = vld [vmem:[#allocation6 + $0x430] sm:$0xff]
    %v332 = vld [vmem:[#allocation6 + $0x438] sm:$0xff]
    %v333 = vld [vmem:[#allocation6 + $0x440] sm:$0xff]
    %v334 = vld [vmem:[#allocation6 + $0x448] sm:$0xff]
    %v335 = vld [vmem:[#allocation6 + $0x450] sm:$0xff]
    %v336 = vld [vmem:[#allocation6 + $0x458] sm:$0xff]
    %v337 = vld [vmem:[#allocation6 + $0x460] sm:$0xff]
    %v338 = vld [vmem:[#allocation6 + $0x468] sm:$0xff]
    %v339 = vld [vmem:[#allocation6 + $0x470] sm:$0xff]
    %v340 = vld [vmem:[#allocation6 + $0x478] sm:$0xff]
    %v341 = vld [vmem:[#allocation6 + $0x480] sm:$0xff]
    %v342 = vld [vmem:[#allocation6 + $0x488] sm:$0xff]
    %v343 = vld [vmem:[#allocation6 + $0x490] sm:$0xff]
    %v344 = vld [vmem:[#allocation6 + $0x498] sm:$0xff]
    %v345 = vld [vmem:[#allocation6 + $0x4a0] sm:$0xff]
    %v346 = vld [vmem:[#allocation6 + $0x4a8] sm:$0xff]
    %v347 = vld [vmem:[#allocation6 + $0x4b0] sm:$0xff]
    %v348 = vld [vmem:[#allocation6 + $0x4b8] sm:$0xff]
    %v349 = vld [vmem:[#allocation6 + $0x4c0] sm:$0xff]
    %v350 = vld [vmem:[#allocation6 + $0x4c8] sm:$0xff]
    %v351 = vld [vmem:[#allocation6 + $0x4d0] sm:$0xff]
    %v352 = vld [vmem:[#allocation6 + $0x4d8] sm:$0xff]
    %v353 = vld [vmem:[#allocation6 + $0x4e0] sm:$0xff]
    %v354 = vld [vmem:[#allocation6 + $0x4e8] sm:$0xff]
    %v355 = vld [vmem:[#allocation6 + $0x4f0] sm:$0xff]
    %v356 = vld [vmem:[#allocation6 + $0x4f8] sm:$0xff]
    %v357 = vld [vmem:[#allocation6 + $0x500] sm:$0xff]
    %v358 = vld [vmem:[#allocation6 + $0x508] sm:$0xff]
    %v359 = vld [vmem:[#allocation6 + $0x510] sm:$0xff]
    %v360 = vld [vmem:[#allocation6 + $0x518] sm:$0xff]
    %v361 = vld [vmem:[#allocation6 + $0x520] sm:$0xff]
    %v362 = vld [vmem:[#allocation6 + $0x528] sm:$0xff]
    %v363 = vld [vmem:[#allocation6 + $0x530] sm:$0xff]
    %v364 = vld [vmem:[#allocation6 + $0x538] sm:$0xff]
    %v365 = vld [vmem:[#allocation6 + $0x540] sm:$0xff]
    %v366 = vld [vmem:[#allocation6 + $0x548] sm:$0xff]
    %v367 = vld [vmem:[#allocation6 + $0x550] sm:$0xff]
    %v368 = vld [vmem:[#allocation6 + $0x558] sm:$0xff]
    %v369 = vld [vmem:[#allocation6 + $0x560] sm:$0xff]
    %v370 = vld [vmem:[#allocation6 + $0x568] sm:$0xff]
    %v371 = vld [vmem:[#allocation6 + $0x570] sm:$0xff]
    %v372 = vld [vmem:[#allocation6 + $0x578] sm:$0xff]
    %v373 = vld [vmem:[#allocation6 + $0x580] sm:$0xff]
    %v374 = vld [vmem:[#allocation6 + $0x588] sm:$0xff]
    %v375 = vld [vmem:[#allocation6 + $0x590] sm:$0xff]
    %v376 = vld [vmem:[#allocation6 + $0x598] sm:$0xff]
    %v377 = vld [vmem:[#allocation6 + $0x5a0] sm:$0xff]
    %v378 = vld [vmem:[#allocation6 + $0x5a8] sm:$0xff]
    %v379 = vld [vmem:[#allocation6 + $0x5b0] sm:$0xff]
    %v380 = vld [vmem:[#allocation6 + $0x5b8] sm:$0xff]
    %v381 = vld [vmem:[#allocation6 + $0x5c0] sm:$0xff]
    %v382 = vld [vmem:[#allocation6 + $0x5c8] sm:$0xff]
    %v383 = vld [vmem:[#allocation6 + $0x5d0] sm:$0xff]
    %v384 = vld [vmem:[#allocation6 + $0x5d8] sm:$0xff]
    %v385 = vld [vmem:[#allocation6 + $0x5e0] sm:$0xff]
    %v386 = vld [vmem:[#allocation6 + $0x5e8] sm:$0xff]
    %v387 = vld [vmem:[#allocation6 + $0x5f0] sm:$0xff]
    %v388 = vld [vmem:[#allocation6 + $0x5f8] sm:$0xff]
    %v389 = vld [vmem:[#allocation6 + $0x600] sm:$0xff]
    %v390 = vld [vmem:[#allocation6 + $0x608] sm:$0xff]
    %v391 = vld [vmem:[#allocation6 + $0x610] sm:$0xff]
    %v392 = vld [vmem:[#allocation6 + $0x618] sm:$0xff]
    %v393 = vld [vmem:[#allocation6 + $0x620] sm:$0xff]
    %v394 = vld [vmem:[#allocation6 + $0x628] sm:$0xff]
    %v395 = vld [vmem:[#allocation6 + $0x630] sm:$0xff]
    %v396 = vld [vmem:[#allocation6 + $0x638] sm:$0xff]
    %v397 = vld [vmem:[#allocation6 + $0x640] sm:$0xff]
    %v398 = vld [vmem:[#allocation6 + $0x648] sm:$0xff]
    %v399 = vld [vmem:[#allocation6 + $0x650] sm:$0xff]
    %v400 = vld [vmem:[#allocation6 + $0x658] sm:$0xff]
    %v401 = vld [vmem:[#allocation6 + $0x660] sm:$0xff]
    %v402 = vld [vmem:[#allocation6 + $0x668] sm:$0xff]
    %v403 = vld [vmem:[#allocation6 + $0x670] sm:$0xff]
    %v404 = vld [vmem:[#allocation6 + $0x678] sm:$0xff]
    %v405 = vld [vmem:[#allocation6 + $0x680] sm:$0xff]
    %v406 = vld [vmem:[#allocation6 + $0x688] sm:$0xff]
    %v407 = vld [vmem:[#allocation6 + $0x690] sm:$0xff]
    %v408 = vld [vmem:[#allocation6 + $0x698] sm:$0xff]
    %v409 = vld [vmem:[#allocation6 + $0x6a0] sm:$0xff]
    %v410 = vld [vmem:[#allocation6 + $0x6a8] sm:$0xff]
    %v411 = vld [vmem:[#allocation6 + $0x6b0] sm:$0xff]
    %v412 = vld [vmem:[#allocation6 + $0x6b8] sm:$0xff]
    %v413 = vld [vmem:[#allocation6 + $0x6c0] sm:$0xff]
    %v414 = vld [vmem:[#allocation6 + $0x6c8] sm:$0xff]
    %v415 = vld [vmem:[#allocation6 + $0x6d0] sm:$0xff]
    %v416 = vld [vmem:[#allocation6 + $0x6d8] sm:$0xff]
    %v417 = vld [vmem:[#allocation6 + $0x6e0] sm:$0xff]
    %v418 = vld [vmem:[#allocation6 + $0x6e8] sm:$0xff]
    %v419 = vld [vmem:[#allocation6 + $0x6f0] sm:$0xff]
    %v420 = vld [vmem:[#allocation6 + $0x6f8] sm:$0xff]
    %v421 = vld [vmem:[#allocation6 + $0x700] sm:$0xff]
    %v422 = vld [vmem:[#allocation6 + $0x708] sm:$0xff]
    %v423 = vld [vmem:[#allocation6 + $0x710] sm:$0xff]
    %v424 = vld [vmem:[#allocation6 + $0x718] sm:$0xff]
    %v425 = vld [vmem:[#allocation6 + $0x720] sm:$0xff]
    %v426 = vld [vmem:[#allocation6 + $0x728] sm:$0xff]
    %v427 = vld [vmem:[#allocation6 + $0x730] sm:$0xff]
    %v428 = vld [vmem:[#allocation6 + $0x738] sm:$0xff]
    %v429 = vld [vmem:[#allocation6 + $0x740] sm:$0xff]
    %v430 = vld [vmem:[#allocation6 + $0x748] sm:$0xff]
    %v431 = vld [vmem:[#allocation6 + $0x750] sm:$0xff]
    %v432 = vld [vmem:[#allocation6 + $0x758] sm:$0xff]
    %v433 = vld [vmem:[#allocation6 + $0x760] sm:$0xff]
    %v434 = vld [vmem:[#allocation6 + $0x768] sm:$0xff]
    %v435 = vld [vmem:[#allocation6 + $0x770] sm:$0xff]
    %v436 = vld [vmem:[#allocation6 + $0x778] sm:$0xff]
    %v437 = vld [vmem:[#allocation6 + $0x780] sm:$0xff]
    %v438 = vld [vmem:[#allocation6 + $0x788] sm:$0xff]
    %v439 = vld [vmem:[#allocation6 + $0x790] sm:$0xff]
    %v440 = vld [vmem:[#allocation6 + $0x798] sm:$0xff]
    %v441 = vld [vmem:[#allocation6 + $0x7a0] sm:$0xff]
    %v442 = vld [vmem:[#allocation6 + $0x7a8] sm:$0xff]
    %v443 = vld [vmem:[#allocation6 + $0x7b0] sm:$0xff]
    %v444 = vld [vmem:[#allocation6 + $0x7b8] sm:$0xff]
    %v445 = vld [vmem:[#allocation6 + $0x7c0] sm:$0xff]
    %v446 = vld [vmem:[#allocation6 + $0x7c8] sm:$0xff]
    %v447 = vld [vmem:[#allocation6 + $0x7d0] sm:$0xff]
    %v448 = vld [vmem:[#allocation6 + $0x7d8] sm:$0xff]
    %v449 = vld [vmem:[#allocation6 + $0x7e0] sm:$0xff]
    %v450 = vld [vmem:[#allocation6 + $0x7e8] sm:$0xff]
    %v451 = vld [vmem:[#allocation6 + $0x7f0] sm:$0xff]
    %v452 = vld [vmem:[#allocation6 + $0x7f8] sm:$0xff]
    %v453 = vld [vmem:[#allocation6 + $0x800] sm:$0xff]
    %v454 = vld [vmem:[#allocation6 + $0x808] sm:$0xff]
    %v455 = vld [vmem:[#allocation6 + $0x810] sm:$0xff]
    %v456 = vld [vmem:[#allocation6 + $0x818] sm:$0xff]
    %v457 = vld [vmem:[#allocation6 + $0x820] sm:$0xff]
    %v458 = vld [vmem:[#allocation6 + $0x828] sm:$0xff]
    %v459 = vld [vmem:[#allocation6 + $0x830] sm:$0xff]
    %v460 = vld [vmem:[#allocation6 + $0x838] sm:$0xff]
    %v461 = vld [vmem:[#allocation6 + $0x840] sm:$0xff]
    %v462 = vld [vmem:[#allocation6 + $0x848] sm:$0xff]
    %v463 = vld [vmem:[#allocation6 + $0x850] sm:$0xff]
    %v464 = vld [vmem:[#allocation6 + $0x858] sm:$0xff]
    %v465 = vld [vmem:[#allocation6 + $0x860] sm:$0xff]
    %v466 = vld [vmem:[#allocation6 + $0x868] sm:$0xff]
    %v467 = vld [vmem:[#allocation6 + $0x870] sm:$0xff]
    %v468 = vld [vmem:[#allocation6 + $0x878] sm:$0xff]
    %v469 = vld [vmem:[#allocation6 + $0x880] sm:$0xff]
    %v470 = vld [vmem:[#allocation6 + $0x888] sm:$0xff]
    %v471 = vld [vmem:[#allocation6 + $0x890] sm:$0xff]
    %v472 = vld [vmem:[#allocation6 + $0x898] sm:$0xff]
    %v473 = vld [vmem:[#allocation6 + $0x8a0] sm:$0xff]
    %v474 = vld [vmem:[#allocation6 + $0x8a8] sm:$0xff]
    %v475 = vld [vmem:[#allocation6 + $0x8b0] sm:$0xff]
    %v476 = vld [vmem:[#allocation6 + $0x8b8] sm:$0xff]
    %v477 = vld [vmem:[#allocation6 + $0x8c0] sm:$0xff]
    %v478 = vld [vmem:[#allocation6 + $0x8c8] sm:$0xff]
    %v479 = vld [vmem:[#allocation6 + $0x8d0] sm:$0xff]
    %v480 = vld [vmem:[#allocation6 + $0x8d8] sm:$0xff]
    %v481 = vld [vmem:[#allocation6 + $0x8e0] sm:$0xff]
    %v482 = vld [vmem:[#allocation6 + $0x8e8] sm:$0xff]
    %v483 = vld [vmem:[#allocation6 + $0x8f0] sm:$0xff]
    %v484 = vld [vmem:[#allocation6 + $0x8f8] sm:$0xff]
    %v485 = vld [vmem:[#allocation6 + $0x900] sm:$0xff]
    %v486 = vld [vmem:[#allocation6 + $0x908] sm:$0xff]
    %v487 = vld [vmem:[#allocation6 + $0x910] sm:$0xff]
    %v488 = vld [vmem:[#allocation6 + $0x918] sm:$0xff]
    %v489 = vld [vmem:[#allocation6 + $0x920] sm:$0xff]
    %v490 = vld [vmem:[#allocation6 + $0x928] sm:$0xff]
    %v491 = vld [vmem:[#allocation6 + $0x930] sm:$0xff]
    %v492 = vld [vmem:[#allocation6 + $0x938] sm:$0xff]
    %v493 = vld [vmem:[#allocation6 + $0x940] sm:$0xff]
    %v494 = vld [vmem:[#allocation6 + $0x948] sm:$0xff]
    %v495 = vld [vmem:[#allocation6 + $0x950] sm:$0xff]
    %v496 = vld [vmem:[#allocation6 + $0x958] sm:$0xff]
    %v497 = vld [vmem:[#allocation6 + $0x960] sm:$0xff]
    %v498 = vld [vmem:[#allocation6 + $0x968] sm:$0xff]
    %v499 = vld [vmem:[#allocation6 + $0x970] sm:$0xff]
    %v500 = vld [vmem:[#allocation6 + $0x978] sm:$0xff]
    %v501 = vld [vmem:[#allocation6 + $0x980] sm:$0xff]
    %v502 = vld [vmem:[#allocation6 + $0x988] sm:$0xff]
    %v503 = vld [vmem:[#allocation6 + $0x990] sm:$0xff]
    %v504 = vld [vmem:[#allocation6 + $0x998] sm:$0xff]
    %v505 = vld [vmem:[#allocation6 + $0x9a0] sm:$0xff]
    %v506 = vld [vmem:[#allocation6 + $0x9a8] sm:$0xff]
    %v507 = vld [vmem:[#allocation6 + $0x9b0] sm:$0xff]
    %v508 = vld [vmem:[#allocation6 + $0x9b8] sm:$0xff]
    %v509 = vld [vmem:[#allocation6 + $0x9c0] sm:$0xff]
    %v510 = vld [vmem:[#allocation6 + $0x9c8] sm:$0xff]
    %v511 = vld [vmem:[#allocation6 + $0x9d0] sm:$0xff]
    %v512 = vld [vmem:[#allocation6 + $0x9d8] sm:$0xff]
    %v513 = vld [vmem:[#allocation6 + $0x9e0] sm:$0xff]
    %v514 = vld [vmem:[#allocation6 + $0x9e8] sm:$0xff]
    %v515 = vld [vmem:[#allocation6 + $0x9f0] sm:$0xff]
    %v516 = vld [vmem:[#allocation6 + $0x9f8] sm:$0xff]
    %v517 = vld [vmem:[#allocation6 + $0xa00] sm:$0xff]
    %v518 = vld [vmem:[#allocation6 + $0xa08] sm:$0xff]
    %v519 = vld [vmem:[#allocation6 + $0xa10] sm:$0xff]
    %v520 = vld [vmem:[#allocation6 + $0xa18] sm:$0xff]
    %v521 = vld [vmem:[#allocation6 + $0xa20] sm:$0xff]
    %v522 = vld [vmem:[#allocation6 + $0xa28] sm:$0xff]
    %v523 = vld [vmem:[#allocation6 + $0xa30] sm:$0xff]
    %v524 = vld [vmem:[#allocation6 + $0xa38] sm:$0xff]
    %v525 = vld [vmem:[#allocation6 + $0xa40] sm:$0xff]
    %v526 = vld [vmem:[#allocation6 + $0xa48] sm:$0xff]
    %v527 = vld [vmem:[#allocation6 + $0xa50] sm:$0xff]
    %v528 = vld [vmem:[#allocation6 + $0xa58] sm:$0xff]
    %v529 = vld [vmem:[#allocation6 + $0xa60] sm:$0xff]
    %v530 = vld [vmem:[#allocation6 + $0xa68] sm:$0xff]
    %v531 = vld [vmem:[#allocation6 + $0xa70] sm:$0xff]
    %v532 = vld [vmem:[#allocation6 + $0xa78] sm:$0xff]
    %v533 = vld [vmem:[#allocation6 + $0xa80] sm:$0xff]
    %v534 = vld [vmem:[#allocation6 + $0xa88] sm:$0xff]
    %v535 = vld [vmem:[#allocation6 + $0xa90] sm:$0xff]
    %v536 = vld [vmem:[#allocation6 + $0xa98] sm:$0xff]
    %v537 = vld [vmem:[#allocation6 + $0xaa0] sm:$0xff]
    %v538 = vld [vmem:[#allocation6 + $0xaa8] sm:$0xff]
    %v539 = vld [vmem:[#allocation6 + $0xab0] sm:$0xff]
    %v540 = vld [vmem:[#allocation6 + $0xab8] sm:$0xff]
    %v541 = vld [vmem:[#allocation6 + $0xac0] sm:$0xff]
    %v542 = vld [vmem:[#allocation6 + $0xac8] sm:$0xff]
    %v543 = vld [vmem:[#allocation6 + $0xad0] sm:$0xff]
    %v544 = vld [vmem:[#allocation6 + $0xad8] sm:$0xff]
    %v545 = vld [vmem:[#allocation6 + $0xae0] sm:$0xff]
    %v546 = vld [vmem:[#allocation6 + $0xae8] sm:$0xff]
    %v547 = vld [vmem:[#allocation6 + $0xaf0] sm:$0xff]
    %v548 = vld [vmem:[#allocation6 + $0xaf8] sm:$0xff]
    %v549 = vld [vmem:[#allocation6 + $0xb00] sm:$0xff]
    %v550 = vld [vmem:[#allocation6 + $0xb08] sm:$0xff]
    %v551 = vld [vmem:[#allocation6 + $0xb10] sm:$0xff]
    %v552 = vld [vmem:[#allocation6 + $0xb18] sm:$0xff]
    %v553 = vld [vmem:[#allocation6 + $0xb20] sm:$0xff]
    %v554 = vld [vmem:[#allocation6 + $0xb28] sm:$0xff]
    %v555 = vld [vmem:[#allocation6 + $0xb30] sm:$0xff]
    %v556 = vld [vmem:[#allocation6 + $0xb38] sm:$0xff]
    %v557 = vld [vmem:[#allocation6 + $0xb40] sm:$0xff]
    %v558 = vld [vmem:[#allocation6 + $0xb48] sm:$0xff]
    %v559 = vld [vmem:[#allocation6 + $0xb50] sm:$0xff]
    %v560 = vld [vmem:[#allocation6 + $0xb58] sm:$0xff]
    %v561 = vld [vmem:[#allocation6 + $0xb60] sm:$0xff]
    %v562 = vld [vmem:[#allocation6 + $0xb68] sm:$0xff]
    %v563 = vld [vmem:[#allocation6 + $0xb70] sm:$0xff]
    %v564 = vld [vmem:[#allocation6 + $0xb78] sm:$0xff]
    %v565 = vld [vmem:[#allocation6 + $0xb80] sm:$0xff]
    %v566 = vld [vmem:[#allocation6 + $0xb88] sm:$0xff]
    %v567 = vld [vmem:[#allocation6 + $0xb90] sm:$0xff]
    %v568 = vld [vmem:[#allocation6 + $0xb98] sm:$0xff]
    %v569 = vld [vmem:[#allocation6 + $0xba0] sm:$0xff]
    %v570 = vld [vmem:[#allocation6 + $0xba8] sm:$0xff]
    %v571 = vld [vmem:[#allocation6 + $0xbb0] sm:$0xff]
    %v572 = vld [vmem:[#allocation6 + $0xbb8] sm:$0xff]
    %v573 = vld [vmem:[#allocation6 + $0xbc0] sm:$0xff]
    %v574 = vld [vmem:[#allocation6 + $0xbc8] sm:$0xff]
    %v575 = vld [vmem:[#allocation6 + $0xbd0] sm:$0xff]
    %v576 = vld [vmem:[#allocation6 + $0xbd8] sm:$0xff]
    %v577 = vld [vmem:[#allocation6 + $0xbe0] sm:$0xff]
    %v578 = vld [vmem:[#allocation6 + $0xbe8] sm:$0xff]
    %v579 = vld [vmem:[#allocation6 + $0xbf0] sm:$0xff]
    %v580 = vld [vmem:[#allocation6 + $0xbf8] sm:$0xff]
    %v581 = vld [vmem:[#allocation6 + $0xc00] sm:$0xff]
    %v582 = vld [vmem:[#allocation6 + $0xc08] sm:$0xff]
    %v583 = vld [vmem:[#allocation6 + $0xc10] sm:$0xff]
    %v584 = vld [vmem:[#allocation6 + $0xc18] sm:$0xff]
    %v585 = vld [vmem:[#allocation6 + $0xc20] sm:$0xff]
    %v586 = vld [vmem:[#allocation6 + $0xc28] sm:$0xff]
    %v587 = vld [vmem:[#allocation6 + $0xc30] sm:$0xff]
    %v588 = vld [vmem:[#allocation6 + $0xc38] sm:$0xff]
    %v589 = vld [vmem:[#allocation6 + $0xc40] sm:$0xff]
    %v590 = vld [vmem:[#allocation6 + $0xc48] sm:$0xff]
    %v591 = vld [vmem:[#allocation6 + $0xc50] sm:$0xff]
    %v592 = vld [vmem:[#allocation6 + $0xc58] sm:$0xff]
    %v593 = vld [vmem:[#allocation6 + $0xc60] sm:$0xff]
    %v594 = vld [vmem:[#allocation6 + $0xc68] sm:$0xff]
    %v595 = vld [vmem:[#allocation6 + $0xc70] sm:$0xff]
    %v596 = vld [vmem:[#allocation6 + $0xc78] sm:$0xff]
    %v597 = vld [vmem:[#allocation6 + $0xc80] sm:$0xff]
    %v598 = vld [vmem:[#allocation6 + $0xc88] sm:$0xff]
    %v599 = vld [vmem:[#allocation6 + $0xc90] sm:$0xff]
    %v600 = vld [vmem:[#allocation6 + $0xc98] sm:$0xff]
    %v601 = vld [vmem:[#allocation6 + $0xca0] sm:$0xff]
    %v602 = vld [vmem:[#allocation6 + $0xca8] sm:$0xff]
    %v603 = vld [vmem:[#allocation6 + $0xcb0] sm:$0xff]
    %v604 = vld [vmem:[#allocation6 + $0xcb8] sm:$0xff]
    %v605 = vld [vmem:[#allocation6 + $0xcc0] sm:$0xff]
    %v606 = vld [vmem:[#allocation6 + $0xcc8] sm:$0xff]
    %v607 = vld [vmem:[#allocation6 + $0xcd0] sm:$0xff]
    %v608 = vld [vmem:[#allocation6 + $0xcd8] sm:$0xff]
    %v609 = vld [vmem:[#allocation6 + $0xce0] sm:$0xff]
    %v610 = vld [vmem:[#allocation6 + $0xce8] sm:$0xff]
    %v611 = vld [vmem:[#allocation6 + $0xcf0] sm:$0xff]
    %v612 = vld [vmem:[#allocation6 + $0xcf8] sm:$0xff]
    %v613 = vld [vmem:[#allocation6 + $0xd00] sm:$0xff]
    %v614 = vld [vmem:[#allocation6 + $0xd08] sm:$0xff]
    %v615 = vld [vmem:[#allocation6 + $0xd10] sm:$0xff]
    %v616 = vld [vmem:[#allocation6 + $0xd18] sm:$0xff]
    %v617 = vld [vmem:[#allocation6 + $0xd20] sm:$0xff]
    %v618 = vld [vmem:[#allocation6 + $0xd28] sm:$0xff]
    %v619 = vld [vmem:[#allocation6 + $0xd30] sm:$0xff]
    %v620 = vld [vmem:[#allocation6 + $0xd38] sm:$0xff]
    %v621 = vld [vmem:[#allocation6 + $0xd40] sm:$0xff]
    %v622 = vld [vmem:[#allocation6 + $0xd48] sm:$0xff]
    %v623 = vld [vmem:[#allocation6 + $0xd50] sm:$0xff]
    %v624 = vld [vmem:[#allocation6 + $0xd58] sm:$0xff]
    %v625 = vld [vmem:[#allocation6 + $0xd60] sm:$0xff]
    %v626 = vld [vmem:[#allocation6 + $0xd68] sm:$0xff]
    %v627 = vld [vmem:[#allocation6 + $0xd70] sm:$0xff]
    %v628 = vld [vmem:[#allocation6 + $0xd78] sm:$0xff]
    %v629 = vld [vmem:[#allocation6 + $0xd80] sm:$0xff]
    %v630 = vld [vmem:[#allocation6 + $0xd88] sm:$0xff]
    %v631 = vld [vmem:[#allocation6 + $0xd90] sm:$0xff]
    %v632 = vld [vmem:[#allocation6 + $0xd98] sm:$0xff]
    %v633 = vld [vmem:[#allocation6 + $0xda0] sm:$0xff]
    %v634 = vld [vmem:[#allocation6 + $0xda8] sm:$0xff]
    %v635 = vld [vmem:[#allocation6 + $0xdb0] sm:$0xff]
    %v636 = vld [vmem:[#allocation6 + $0xdb8] sm:$0xff]
    %v637 = vld [vmem:[#allocation6 + $0xdc0] sm:$0xff]
    %v638 = vld [vmem:[#allocation6 + $0xdc8] sm:$0xff]
    %v639 = vld [vmem:[#allocation6 + $0xdd0] sm:$0xff]
    %v640 = vld [vmem:[#allocation6 + $0xdd8] sm:$0xff]
    %v641 = vld [vmem:[#allocation6 + $0xde0] sm:$0xff]
    %v642 = vld [vmem:[#allocation6 + $0xde8] sm:$0xff]
    %v643 = vld [vmem:[#allocation6 + $0xdf0] sm:$0xff]
    %v644 = vld [vmem:[#allocation6 + $0xdf8] sm:$0xff]
    %v645 = vld [vmem:[#allocation6 + $0xe00] sm:$0xff]
    %v646 = vld [vmem:[#allocation6 + $0xe08] sm:$0xff]
    %v647 = vld [vmem:[#allocation6 + $0xe10] sm:$0xff]
    %v648 = vld [vmem:[#allocation6 + $0xe18] sm:$0xff]
    %v649 = vld [vmem:[#allocation6 + $0xe20] sm:$0xff]
    %v650 = vld [vmem:[#allocation6 + $0xe28] sm:$0xff]
    %v651 = vld [vmem:[#allocation6 + $0xe30] sm:$0xff]
    %v652 = vld [vmem:[#allocation6 + $0xe38] sm:$0xff]
    %v653 = vld [vmem:[#allocation6 + $0xe40] sm:$0xff]
    %v654 = vld [vmem:[#allocation6 + $0xe48] sm:$0xff]
    %v655 = vld [vmem:[#allocation6 + $0xe50] sm:$0xff]
    %v656 = vld [vmem:[#allocation6 + $0xe58] sm:$0xff]
    %v657 = vld [vmem:[#allocation6 + $0xe60] sm:$0xff]
    %v658 = vld [vmem:[#allocation6 + $0xe68] sm:$0xff]
    %v659 = vld [vmem:[#allocation6 + $0xe70] sm:$0xff]
    %v660 = vld [vmem:[#allocation6 + $0xe78] sm:$0xff]
    %v661 = vld [vmem:[#allocation6 + $0xe80] sm:$0xff]
    %v662 = vld [vmem:[#allocation6 + $0xe88] sm:$0xff]
    %v663 = vld [vmem:[#allocation6 + $0xe90] sm:$0xff]
    %v664 = vld [vmem:[#allocation6 + $0xe98] sm:$0xff]
    %v665 = vld [vmem:[#allocation6 + $0xea0] sm:$0xff]
    %v666 = vld [vmem:[#allocation6 + $0xea8] sm:$0xff]
    %v667 = vld [vmem:[#allocation6 + $0xeb0] sm:$0xff]
    %v668 = vld [vmem:[#allocation6 + $0xeb8] sm:$0xff]
    %v669 = vld [vmem:[#allocation6 + $0xec0] sm:$0xff]
    %v670 = vld [vmem:[#allocation6 + $0xec8] sm:$0xff]
    %v671 = vld [vmem:[#allocation6 + $0xed0] sm:$0xff]
    %v672 = vld [vmem:[#allocation6 + $0xed8] sm:$0xff]
    %v673 = vld [vmem:[#allocation6 + $0xee0] sm:$0xff]
    %v674 = vld [vmem:[#allocation6 + $0xee8] sm:$0xff]
    %v675 = vld [vmem:[#allocation6 + $0xef0] sm:$0xff]
    %v676 = vld [vmem:[#allocation6 + $0xef8] sm:$0xff]
    %v677 = vld [vmem:[#allocation6 + $0xf00] sm:$0xff]
    %v678 = vld [vmem:[#allocation6 + $0xf08] sm:$0xff]
    %v679 = vld [vmem:[#allocation6 + $0xf10] sm:$0xff]
    %v680 = vld [vmem:[#allocation6 + $0xf18] sm:$0xff]
    %v681 = vld [vmem:[#allocation6 + $0xf20] sm:$0xff]
    %v682 = vld [vmem:[#allocation6 + $0xf28] sm:$0xff]
    %v683 = vld [vmem:[#allocation6 + $0xf30] sm:$0xff]
    %v684 = vld [vmem:[#allocation6 + $0xf38] sm:$0xff]
    %v685 = vld [vmem:[#allocation6 + $0xf40] sm:$0xff]
    %v686 = vld [vmem:[#allocation6 + $0xf48] sm:$0xff]
    %v687 = vld [vmem:[#allocation6 + $0xf50] sm:$0xff]
    %v688 = vld [vmem:[#allocation6 + $0xf58] sm:$0xff]
    %v689 = vld [vmem:[#allocation6 + $0xf60] sm:$0xff]
    %v690 = vld [vmem:[#allocation6 + $0xf68] sm:$0xff]
    %v691 = vld [vmem:[#allocation6 + $0xf70] sm:$0xff]
    %v692 = vld [vmem:[#allocation6 + $0xf78] sm:$0xff]
    %v693 = vld [vmem:[#allocation6 + $0xf80] sm:$0xff]
    %v694 = vld [vmem:[#allocation6 + $0xf88] sm:$0xff]
    %v695 = vld [vmem:[#allocation6 + $0xf90] sm:$0xff]
    %v696 = vld [vmem:[#allocation6 + $0xf98] sm:$0xff]
    %v697 = vld [vmem:[#allocation6 + $0xfa0] sm:$0xff]
    %v698 = vld [vmem:[#allocation6 + $0xfa8] sm:$0xff]
    %v699 = vld [vmem:[#allocation6 + $0xfb0] sm:$0xff]
    %v700 = vld [vmem:[#allocation6 + $0xfb8] sm:$0xff]
    %v701 = vld [vmem:[#allocation6 + $0xfc0] sm:$0xff]
    %v702 = vld [vmem:[#allocation6 + $0xfc8] sm:$0xff]
    %v703 = vld [vmem:[#allocation6 + $0xfd0] sm:$0xff]
    %v704 = vld [vmem:[#allocation6 + $0xfd8] sm:$0xff]
    %v705 = vld [vmem:[#allocation6 + $0xfe0] sm:$0xff]
    %v706 = vld [vmem:[#allocation6 + $0xfe8] sm:$0xff]
    %v707 = vld [vmem:[#allocation6 + $0xff0] sm:$0xff]
    %v708 = vld [vmem:[#allocation6 + $0xff8] sm:$0xff]
    %v709 = vld [vmem:[#allocation6 + $0x1000] sm:$0xff]
    %v710 = vld [vmem:[#allocation6 + $0x1008] sm:$0xff]
    %v711 = vld [vmem:[#allocation6 + $0x1010] sm:$0xff]
    %v712 = vld [vmem:[#allocation6 + $0x1018] sm:$0xff]
    %v713 = vld [vmem:[#allocation6 + $0x1020] sm:$0xff]
    %v714 = vld [vmem:[#allocation6 + $0x1028] sm:$0xff]
    %v715 = vld [vmem:[#allocation6 + $0x1030] sm:$0xff]
    %v716 = vld [vmem:[#allocation6 + $0x1038] sm:$0xff]
    %v717 = vld [vmem:[#allocation6 + $0x1040] sm:$0xff]
    %v718 = vld [vmem:[#allocation6 + $0x1048] sm:$0xff]
    %v719 = vld [vmem:[#allocation6 + $0x1050] sm:$0xff]
    %v720 = vld [vmem:[#allocation6 + $0x1058] sm:$0xff]
    %v721 = vld [vmem:[#allocation6 + $0x1060] sm:$0xff]
    %v722 = vld [vmem:[#allocation6 + $0x1068] sm:$0xff]
    %v723 = vld [vmem:[#allocation6 + $0x1070] sm:$0xff]
    %v724 = vld [vmem:[#allocation6 + $0x1078] sm:$0xff]
    %v725 = vld [vmem:[#allocation6 + $0x1080] sm:$0xff]
    %v726 = vld [vmem:[#allocation6 + $0x1088] sm:$0xff]
    %v727 = vld [vmem:[#allocation6 + $0x1090] sm:$0xff]
    %v728 = vld [vmem:[#allocation6 + $0x1098] sm:$0xff]
    %v729 = vld [vmem:[#allocation6 + $0x10a0] sm:$0xff]
    %v730 = vld [vmem:[#allocation6 + $0x10a8] sm:$0xff]
    %v731 = vld [vmem:[#allocation6 + $0x10b0] sm:$0xff]
    %v732 = vld [vmem:[#allocation6 + $0x10b8] sm:$0xff]
    %v733 = vld [vmem:[#allocation6 + $0x10c0] sm:$0xff]
    %v734 = vld [vmem:[#allocation6 + $0x10c8] sm:$0xff]
    %v735 = vld [vmem:[#allocation6 + $0x10d0] sm:$0xff]
    %v736 = vld [vmem:[#allocation6 + $0x10d8] sm:$0xff]
    %v737 = vld [vmem:[#allocation6 + $0x10e0] sm:$0xff]
    %v738 = vld [vmem:[#allocation6 + $0x10e8] sm:$0xff]
    %v739 = vld [vmem:[#allocation6 + $0x10f0] sm:$0xff]
    %v740 = vld [vmem:[#allocation6 + $0x10f8] sm:$0xff]
    %v741 = vld [vmem:[#allocation6 + $0x1100] sm:$0xff]
    %v742 = vld [vmem:[#allocation6 + $0x1108] sm:$0xff]
    %v743 = vld [vmem:[#allocation6 + $0x1110] sm:$0xff]
    %v744 = vld [vmem:[#allocation6 + $0x1118] sm:$0xff]
    %v745 = vld [vmem:[#allocation6 + $0x1120] sm:$0xff]
    %v746 = vld [vmem:[#allocation6 + $0x1128] sm:$0xff]
    %v747 = vld [vmem:[#allocation6 + $0x1130] sm:$0xff]
    %v748 = vld [vmem:[#allocation6 + $0x1138] sm:$0xff]
    %v749 = vld [vmem:[#allocation6 + $0x1140] sm:$0xff]
    %v750 = vld [vmem:[#allocation6 + $0x1148] sm:$0xff]
    %v751 = vld [vmem:[#allocation6 + $0x1150] sm:$0xff]
    %v752 = vld [vmem:[#allocation6 + $0x1158] sm:$0xff]
    %v753 = vld [vmem:[#allocation6 + $0x1160] sm:$0xff]
    %v754 = vld [vmem:[#allocation6 + $0x1168] sm:$0xff]
    %v755 = vld [vmem:[#allocation6 + $0x1170] sm:$0xff]
    %v756 = vld [vmem:[#allocation6 + $0x1178] sm:$0xff]
    %v757 = vld [vmem:[#allocation6 + $0x1180] sm:$0xff]
    %v758 = vld [vmem:[#allocation6 + $0x1188] sm:$0xff]
    %v759 = vld [vmem:[#allocation6 + $0x1190] sm:$0xff]
    %v760 = vld [vmem:[#allocation6 + $0x1198] sm:$0xff]
    %v761 = vld [vmem:[#allocation6 + $0x11a0] sm:$0xff]
    %v762 = vld [vmem:[#allocation6 + $0x11a8] sm:$0xff]
    %v763 = vld [vmem:[#allocation6 + $0x11b0] sm:$0xff]
    %v764 = vld [vmem:[#allocation6 + $0x11b8] sm:$0xff]
    %v765 = vld [vmem:[#allocation6 + $0x11c0] sm:$0xff]
    %v766 = vld [vmem:[#allocation6 + $0x11c8] sm:$0xff]
    %v767 = vld [vmem:[#allocation6 + $0x11d0] sm:$0xff]
    %v768 = vld [vmem:[#allocation6 + $0x11d8] sm:$0xff]
    %v769 = vld [vmem:[#allocation6 + $0x11e0] sm:$0xff]
    %v770 = vld [vmem:[#allocation6 + $0x11e8] sm:$0xff]
    %v771 = vld [vmem:[#allocation6 + $0x11f0] sm:$0xff]
    %v772 = vld [vmem:[#allocation6 + $0x11f8] sm:$0xff]
    %v773 = vld [vmem:[#allocation6 + $0x1200] sm:$0xff]
    %v774 = vld [vmem:[#allocation6 + $0x1208] sm:$0xff]
    %v775 = vld [vmem:[#allocation6 + $0x1210] sm:$0xff]
    %v776 = vld [vmem:[#allocation6 + $0x1218] sm:$0xff]
    %v777 = vld [vmem:[#allocation6 + $0x1220] sm:$0xff]
    %v778 = vld [vmem:[#allocation6 + $0x1228] sm:$0xff]
    %v779 = vld [vmem:[#allocation6 + $0x1230] sm:$0xff]
    %v780 = vld [vmem:[#allocation6 + $0x1238] sm:$0xff]
    %v781 = vld [vmem:[#allocation6 + $0x1240] sm:$0xff]
    %v782 = vld [vmem:[#allocation6 + $0x1248] sm:$0xff]
    %v783 = vld [vmem:[#allocation6 + $0x1250] sm:$0xff]
    %v784 = vld [vmem:[#allocation6 + $0x1258] sm:$0xff]
    %v785 = vld [vmem:[#allocation6 + $0x1260] sm:$0xff]
    %v786 = vld [vmem:[#allocation6 + $0x1268] sm:$0xff]
    %v787 = vld [vmem:[#allocation6 + $0x1270] sm:$0xff]
    %v788 = vld [vmem:[#allocation6 + $0x1278] sm:$0xff]
    %v789 = vld [vmem:[#allocation6 + $0x1280] sm:$0xff]
    %v790 = vld [vmem:[#allocation6 + $0x1288] sm:$0xff]
    %v791 = vld [vmem:[#allocation6 + $0x1290] sm:$0xff]
    %v792 = vld [vmem:[#allocation6 + $0x1298] sm:$0xff]
    %v793 = vld [vmem:[#allocation6 + $0x12a0] sm:$0xff]
    %v794 = vld [vmem:[#allocation6 + $0x12a8] sm:$0xff]
    %v795 = vld [vmem:[#allocation6 + $0x12b0] sm:$0xff]
    %v796 = vld [vmem:[#allocation6 + $0x12b8] sm:$0xff]
    %v797 = vld [vmem:[#allocation6 + $0x12c0] sm:$0xff]
    %v798 = vld [vmem:[#allocation6 + $0x12c8] sm:$0xff]
    %v799 = vld [vmem:[#allocation6 + $0x12d0] sm:$0xff]
    %v800 = vld [vmem:[#allocation6 + $0x12d8] sm:$0xff]
    %v801 = vld [vmem:[#allocation6 + $0x12e0] sm:$0xff]
    %v802 = vld [vmem:[#allocation6 + $0x12e8] sm:$0xff]
    %v803 = vld [vmem:[#allocation6 + $0x12f0] sm:$0xff]
    %v804 = vld [vmem:[#allocation6 + $0x12f8] sm:$0xff]
    %v805 = vld [vmem:[#allocation6 + $0x1300] sm:$0xff]
    %v806 = vld [vmem:[#allocation6 + $0x1308] sm:$0xff]
    %v807 = vld [vmem:[#allocation6 + $0x1310] sm:$0xff]
    %v808 = vld [vmem:[#allocation6 + $0x1318] sm:$0xff]
    %v809 = vld [vmem:[#allocation6 + $0x1320] sm:$0xff]
    %v810 = vld [vmem:[#allocation6 + $0x1328] sm:$0xff]
    %v811 = vld [vmem:[#allocation6 + $0x1330] sm:$0xff]
    %v812 = vld [vmem:[#allocation6 + $0x1338] sm:$0xff]
    %v813 = vld [vmem:[#allocation6 + $0x1340] sm:$0xff]
    %v814 = vld [vmem:[#allocation6 + $0x1348] sm:$0xff]
    %v815 = vld [vmem:[#allocation6 + $0x1350] sm:$0xff]
    %v816 = vld [vmem:[#allocation6 + $0x1358] sm:$0xff]
    %v817 = vld [vmem:[#allocation6 + $0x1360] sm:$0xff]
    %v818 = vld [vmem:[#allocation6 + $0x1368] sm:$0xff]
    %v819 = vld [vmem:[#allocation6 + $0x1370] sm:$0xff]
    %v820 = vld [vmem:[#allocation6 + $0x1378] sm:$0xff]
    %v821 = vld [vmem:[#allocation6 + $0x1380] sm:$0xff]
    %v822 = vld [vmem:[#allocation6 + $0x1388] sm:$0xff]
    %v823 = vld [vmem:[#allocation6 + $0x1390] sm:$0xff]
    %v824 = vld [vmem:[#allocation6 + $0x1398] sm:$0xff]
    %v825 = vld [vmem:[#allocation6 + $0x13a0] sm:$0xff]
    %v826 = vld [vmem:[#allocation6 + $0x13a8] sm:$0xff]
    %v827 = vld [vmem:[#allocation6 + $0x13b0] sm:$0xff]
    %v828 = vld [vmem:[#allocation6 + $0x13b8] sm:$0xff]
    %v829 = vld [vmem:[#allocation6 + $0x13c0] sm:$0xff]
    %v830 = vld [vmem:[#allocation6 + $0x13c8] sm:$0xff]
    %v831 = vld [vmem:[#allocation6 + $0x13d0] sm:$0xff]
    %v832 = vld [vmem:[#allocation6 + $0x13d8] sm:$0xff]
    %v833 = vld [vmem:[#allocation6 + $0x13e0] sm:$0xff]
    %v834 = vld [vmem:[#allocation6 + $0x13e8] sm:$0xff]
    %v835 = vld [vmem:[#allocation6 + $0x13f0] sm:$0xff]
    %v836 = vld [vmem:[#allocation6 + $0x13f8] sm:$0xff]
    %v837 = vld [vmem:[#allocation6 + $0x1400] sm:$0xff]
    %v838 = vld [vmem:[#allocation6 + $0x1408] sm:$0xff]
    %v839 = vld [vmem:[#allocation6 + $0x1410] sm:$0xff]
    %v840 = vld [vmem:[#allocation6 + $0x1418] sm:$0xff]
    %v841 = vld [vmem:[#allocation6 + $0x1420] sm:$0xff]
    %v842 = vld [vmem:[#allocation6 + $0x1428] sm:$0xff]
    %v843 = vld [vmem:[#allocation6 + $0x1430] sm:$0xff]
    %v844 = vld [vmem:[#allocation6 + $0x1438] sm:$0xff]
    %v845 = vld [vmem:[#allocation6 + $0x1440] sm:$0xff]
    %v846 = vld [vmem:[#allocation6 + $0x1448] sm:$0xff]
    %v847 = vld [vmem:[#allocation6 + $0x1450] sm:$0xff]
    %v848 = vld [vmem:[#allocation6 + $0x1458] sm:$0xff]
    %v849 = vld [vmem:[#allocation6 + $0x1460] sm:$0xff]
    %v850 = vld [vmem:[#allocation6 + $0x1468] sm:$0xff]
    %v851 = vld [vmem:[#allocation6 + $0x1470] sm:$0xff]
    %v852 = vld [vmem:[#allocation6 + $0x1478] sm:$0xff]
    %v853 = vld [vmem:[#allocation6 + $0x1480] sm:$0xff]
    %v854 = vld [vmem:[#allocation6 + $0x1488] sm:$0xff]
    %v855 = vld [vmem:[#allocation6 + $0x1490] sm:$0xff]
    %v856 = vld [vmem:[#allocation6 + $0x1498] sm:$0xff]
    %v857 = vld [vmem:[#allocation6 + $0x14a0] sm:$0xff]
    %v858 = vld [vmem:[#allocation6 + $0x14a8] sm:$0xff]
    %v859 = vld [vmem:[#allocation6 + $0x14b0] sm:$0xff]
    %v860 = vld [vmem:[#allocation6 + $0x14b8] sm:$0xff]
    %v861 = vld [vmem:[#allocation6 + $0x14c0] sm:$0xff]
    %v862 = vld [vmem:[#allocation6 + $0x14c8] sm:$0xff]
    %v863 = vld [vmem:[#allocation6 + $0x14d0] sm:$0xff]
    %v864 = vld [vmem:[#allocation6 + $0x14d8] sm:$0xff]
    %v865 = vld [vmem:[#allocation6 + $0x14e0] sm:$0xff]
    %v866 = vld [vmem:[#allocation6 + $0x14e8] sm:$0xff]
    %v867 = vld [vmem:[#allocation6 + $0x14f0] sm:$0xff]
    %v868 = vld [vmem:[#allocation6 + $0x14f8] sm:$0xff]
    %v869 = vld [vmem:[#allocation6 + $0x1500] sm:$0xff]
    %v870 = vld [vmem:[#allocation6 + $0x1508] sm:$0xff]
    %v871 = vld [vmem:[#allocation6 + $0x1510] sm:$0xff]
    %v872 = vld [vmem:[#allocation6 + $0x1518] sm:$0xff]
    %v873 = vld [vmem:[#allocation6 + $0x1520] sm:$0xff]
    %v874 = vld [vmem:[#allocation6 + $0x1528] sm:$0xff]
    %v875 = vld [vmem:[#allocation6 + $0x1530] sm:$0xff]
    %v876 = vld [vmem:[#allocation6 + $0x1538] sm:$0xff]
    %v877 = vld [vmem:[#allocation6 + $0x1540] sm:$0xff]
    %v878 = vld [vmem:[#allocation6 + $0x1548] sm:$0xff]
    %v879 = vld [vmem:[#allocation6 + $0x1550] sm:$0xff]
    %v880 = vld [vmem:[#allocation6 + $0x1558] sm:$0xff]
    %v881 = vld [vmem:[#allocation6 + $0x1560] sm:$0xff]
    %v882 = vld [vmem:[#allocation6 + $0x1568] sm:$0xff]
    %v883 = vld [vmem:[#allocation6 + $0x1570] sm:$0xff]
    %v884 = vld [vmem:[#allocation6 + $0x1578] sm:$0xff]
    %v885 = vld [vmem:[#allocation6 + $0x1580] sm:$0xff]
    %v886 = vld [vmem:[#allocation6 + $0x1588] sm:$0xff]
    %v887 = vld [vmem:[#allocation6 + $0x1590] sm:$0xff]
    %v888 = vld [vmem:[#allocation6 + $0x1598] sm:$0xff]
    %v889 = vld [vmem:[#allocation6 + $0x15a0] sm:$0xff]
    %v890 = vld [vmem:[#allocation6 + $0x15a8] sm:$0xff]
    %v891 = vld [vmem:[#allocation6 + $0x15b0] sm:$0xff]
    %v892 = vld [vmem:[#allocation6 + $0x15b8] sm:$0xff]
    %v893 = vld [vmem:[#allocation6 + $0x15c0] sm:$0xff]
    %v894 = vld [vmem:[#allocation6 + $0x15c8] sm:$0xff]
    %v895 = vld [vmem:[#allocation6 + $0x15d0] sm:$0xff]
    %v896 = vld [vmem:[#allocation6 + $0x15d8] sm:$0xff]
    %v897 = vld [vmem:[#allocation8] sm:$0xf]
    %v899 = vlaneseq
    %v900 = vshrl.u32 %v899, 7
    %v901 = vsub.s32 0, %v900
    %v902 = vrot.slane %v897, %v901
    %v903 = vlaneseq
    %v904 = vshrl.u32 %v903, 7
    %v905 = vsub.s32 1, %v904
    %v906 = vrot.slane %v897, %v905
    %v907 = vlaneseq
    %v908 = vshrl.u32 %v907, 7
    %v909 = vsub.s32 2, %v908
    %v910 = vrot.slane %v897, %v909
    %v911 = vlaneseq
    %v912 = vshrl.u32 %v911, 7
    %v913 = vsub.s32 3, %v912
    %v914 = vrot.slane %v897, %v913
    %v1619 = vunpack.c.l.b16 %v197
    %v1620 = vunpack.c.h.b16 %v197
    %v1621 = vunpack.c.l.b16 %v198
    %v1622 = vunpack.c.h.b16 %v198
    %v1623 = vunpack.c.l.b16 %v199
    %v1624 = vunpack.c.h.b16 %v199
    %v1625 = vunpack.c.l.b16 %v200
    %v1626 = vunpack.c.h.b16 %v200
    %v1627 = vunpack.c.l.b16 %v201
    %v1628 = vunpack.c.h.b16 %v201
    %v1629 = vunpack.c.l.b16 %v202
    %v1630 = vunpack.c.h.b16 %v202
    %v1631 = vunpack.c.l.b16 %v203
    %v1632 = vunpack.c.h.b16 %v203
    %v1633 = vunpack.c.l.b16 %v204
    %v1634 = vunpack.c.h.b16 %v204
    %v1635 = vunpack.c.l.b16 %v205
    %v1636 = vunpack.c.h.b16 %v205
    %v1637 = vunpack.c.l.b16 %v206
    %v1638 = vunpack.c.h.b16 %v206
    %v1639 = vunpack.c.l.b16 %v207
    %v1640 = vunpack.c.h.b16 %v207
    %v1641 = vunpack.c.l.b16 %v208
    %v1642 = vunpack.c.h.b16 %v208
    %v1643 = vunpack.c.l.b16 %v209
    %v1644 = vunpack.c.h.b16 %v209
    %v1645 = vunpack.c.l.b16 %v210
    %v1646 = vunpack.c.h.b16 %v210
    %v1647 = vunpack.c.l.b16 %v211
    %v1648 = vunpack.c.h.b16 %v211
    %v1649 = vunpack.c.l.b16 %v212
    %v1650 = vunpack.c.h.b16 %v212
    %v1651 = vunpack.c.l.b16 %v213
    %v1652 = vunpack.c.h.b16 %v213
    %v1653 = vunpack.c.l.b16 %v214
    %v1654 = vunpack.c.h.b16 %v214
    %v1655 = vunpack.c.l.b16 %v215
    %v1656 = vunpack.c.h.b16 %v215
    %v1657 = vunpack.c.l.b16 %v216
    %v1658 = vunpack.c.h.b16 %v216
    %v1659 = vunpack.c.l.b16 %v217
    %v1660 = vunpack.c.h.b16 %v217
    %v1661 = vunpack.c.l.b16 %v218
    %v1662 = vunpack.c.h.b16 %v218
    %v1663 = vunpack.c.l.b16 %v219
    %v1664 = vunpack.c.h.b16 %v219
    %v1665 = vunpack.c.l.b16 %v220
    %v1666 = vunpack.c.h.b16 %v220
    %v1667 = vunpack.c.l.b16 %v221
    %v1668 = vunpack.c.h.b16 %v221
    %v1669 = vunpack.c.l.b16 %v222
    %v1670 = vunpack.c.h.b16 %v222
    %v1671 = vunpack.c.l.b16 %v223
    %v1672 = vunpack.c.h.b16 %v223
    %v1673 = vunpack.c.l.b16 %v224
    %v1674 = vunpack.c.h.b16 %v224
    %v1675 = vunpack.c.l.b16 %v225
    %v1676 = vunpack.c.h.b16 %v225
    %v1677 = vunpack.c.l.b16 %v226
    %v1678 = vunpack.c.h.b16 %v226
    %v1679 = vunpack.c.l.b16 %v227
    %v1680 = vunpack.c.h.b16 %v227
    %v1681 = vunpack.c.l.b16 %v228
    %v1682 = vunpack.c.h.b16 %v228
    %v1683 = vunpack.c.l.b16 %v229
    %v1684 = vunpack.c.h.b16 %v229
    %v1685 = vunpack.c.l.b16 %v230
    %v1686 = vunpack.c.h.b16 %v230
    %v1687 = vunpack.c.l.b16 %v231
    %v1688 = vunpack.c.h.b16 %v231
    %v1689 = vunpack.c.l.b16 %v232
    %v1690 = vunpack.c.h.b16 %v232
    %v1691 = vunpack.c.l.b16 %v233
    %v1692 = vunpack.c.h.b16 %v233
    %v1693 = vunpack.c.l.b16 %v234
    %v1694 = vunpack.c.h.b16 %v234
    %v1695 = vunpack.c.l.b16 %v235
    %v1696 = vunpack.c.h.b16 %v235
    %v1697 = vunpack.c.l.b16 %v236
    %v1698 = vunpack.c.h.b16 %v236
    %v1699 = vunpack.c.l.b16 %v237
    %v1700 = vunpack.c.h.b16 %v237
    %v1701 = vunpack.c.l.b16 %v238
    %v1702 = vunpack.c.h.b16 %v238
    %v1703 = vunpack.c.l.b16 %v239
    %v1704 = vunpack.c.h.b16 %v239
    %v1705 = vunpack.c.l.b16 %v240
    %v1706 = vunpack.c.h.b16 %v240
    %v1707 = vunpack.c.l.b16 %v241
    %v1708 = vunpack.c.h.b16 %v241
    %v1709 = vunpack.c.l.b16 %v242
    %v1710 = vunpack.c.h.b16 %v242
    %v1711 = vunpack.c.l.b16 %v243
    %v1712 = vunpack.c.h.b16 %v243
    %v1713 = vunpack.c.l.b16 %v244
    %v1714 = vunpack.c.h.b16 %v244
    %v1715 = vunpack.c.l.b16 %v245
    %v1716 = vunpack.c.h.b16 %v245
    %v1717 = vunpack.c.l.b16 %v246
    %v1718 = vunpack.c.h.b16 %v246
    %v1719 = vunpack.c.l.b16 %v247
    %v1720 = vunpack.c.h.b16 %v247
    %v1721 = vunpack.c.l.b16 %v248
    %v1722 = vunpack.c.h.b16 %v248
    %v1723 = vunpack.c.l.b16 %v249
    %v1724 = vunpack.c.h.b16 %v249
    %v1725 = vunpack.c.l.b16 %v250
    %v1726 = vunpack.c.h.b16 %v250
    %v1727 = vunpack.c.l.b16 %v251
    %v1728 = vunpack.c.h.b16 %v251
    %v1729 = vunpack.c.l.b16 %v252
    %v1730 = vunpack.c.h.b16 %v252
    %v1731 = vunpack.c.l.b16 %v253
    %v1732 = vunpack.c.h.b16 %v253
    %v1733 = vunpack.c.l.b16 %v254
    %v1734 = vunpack.c.h.b16 %v254
    %v1735 = vunpack.c.l.b16 %v255
    %v1736 = vunpack.c.h.b16 %v255
    %v1737 = vunpack.c.l.b16 %v256
    %v1738 = vunpack.c.h.b16 %v256
    %v1739 = vunpack.c.l.b16 %v257
    %v1740 = vunpack.c.h.b16 %v257
    %v1741 = vunpack.c.l.b16 %v258
    %v1742 = vunpack.c.h.b16 %v258
    %v1743 = vunpack.c.l.b16 %v259
    %v1744 = vunpack.c.h.b16 %v259
    %v1745 = vunpack.c.l.b16 %v260
    %v1746 = vunpack.c.h.b16 %v260
    %v1747 = vunpack.c.l.b16 %v261
    %v1748 = vunpack.c.h.b16 %v261
    %v1749 = vunpack.c.l.b16 %v262
    %v1750 = vunpack.c.h.b16 %v262
    %v1751 = vunpack.c.l.b16 %v263
    %v1752 = vunpack.c.h.b16 %v263
    %v1753 = vunpack.c.l.b16 %v264
    %v1754 = vunpack.c.h.b16 %v264
    %v1755 = vunpack.c.l.b16 %v265
    %v1756 = vunpack.c.h.b16 %v265
    %v1757 = vunpack.c.l.b16 %v266
    %v1758 = vunpack.c.h.b16 %v266
    %v1759 = vunpack.c.l.b16 %v267
    %v1760 = vunpack.c.h.b16 %v267
    %v1761 = vunpack.c.l.b16 %v268
    %v1762 = vunpack.c.h.b16 %v268
    %v1763 = vunpack.c.l.b16 %v269
    %v1764 = vunpack.c.h.b16 %v269
    %v1765 = vunpack.c.l.b16 %v270
    %v1766 = vunpack.c.h.b16 %v270
    %v1767 = vunpack.c.l.b16 %v271
    %v1768 = vunpack.c.h.b16 %v271
    %v1769 = vunpack.c.l.b16 %v272
    %v1770 = vunpack.c.h.b16 %v272
    %v1771 = vunpack.c.l.b16 %v273
    %v1772 = vunpack.c.h.b16 %v273
    %v1773 = vunpack.c.l.b16 %v274
    %v1774 = vunpack.c.h.b16 %v274
    %v1775 = vunpack.c.l.b16 %v275
    %v1776 = vunpack.c.h.b16 %v275
    %v1777 = vunpack.c.l.b16 %v276
    %v1778 = vunpack.c.h.b16 %v276
    %v1779 = vunpack.c.l.b16 %v277
    %v1780 = vunpack.c.h.b16 %v277
    %v1781 = vunpack.c.l.b16 %v278
    %v1782 = vunpack.c.h.b16 %v278
    %v1783 = vunpack.c.l.b16 %v279
    %v1784 = vunpack.c.h.b16 %v279
    %v1785 = vunpack.c.l.b16 %v280
    %v1786 = vunpack.c.h.b16 %v280
    %v1787 = vunpack.c.l.b16 %v281
    %v1788 = vunpack.c.h.b16 %v281
    %v1789 = vunpack.c.l.b16 %v282
    %v1790 = vunpack.c.h.b16 %v282
    %v1791 = vunpack.c.l.b16 %v283
    %v1792 = vunpack.c.h.b16 %v283
    %v1793 = vunpack.c.l.b16 %v284
    %v1794 = vunpack.c.h.b16 %v284
    %v1795 = vunpack.c.l.b16 %v285
    %v1796 = vunpack.c.h.b16 %v285
    %v1797 = vunpack.c.l.b16 %v286
    %v1798 = vunpack.c.h.b16 %v286
    %v1799 = vunpack.c.l.b16 %v287
    %v1800 = vunpack.c.h.b16 %v287
    %v1801 = vunpack.c.l.b16 %v288
    %v1802 = vunpack.c.h.b16 %v288
    %v1803 = vunpack.c.l.b16 %v289
    %v1804 = vunpack.c.h.b16 %v289
    %v1805 = vunpack.c.l.b16 %v290
    %v1806 = vunpack.c.h.b16 %v290
    %v1807 = vunpack.c.l.b16 %v291
    %v1808 = vunpack.c.h.b16 %v291
    %v1809 = vunpack.c.l.b16 %v292
    %v1810 = vunpack.c.h.b16 %v292
    %v1811 = vunpack.c.l.b16 %v293
    %v1812 = vunpack.c.h.b16 %v293
    %v1813 = vunpack.c.l.b16 %v294
    %v1814 = vunpack.c.h.b16 %v294
    %v1815 = vunpack.c.l.b16 %v295
    %v1816 = vunpack.c.h.b16 %v295
    %v1817 = vunpack.c.l.b16 %v296
    %v1818 = vunpack.c.h.b16 %v296
    %v1819 = vunpack.c.l.b16 %v297
    %v1820 = vunpack.c.h.b16 %v297
    %v1821 = vunpack.c.l.b16 %v298
    %v1822 = vunpack.c.h.b16 %v298
    %v1823 = vunpack.c.l.b16 %v299
    %v1824 = vunpack.c.h.b16 %v299
    %v1825 = vunpack.c.l.b16 %v300
    %v1826 = vunpack.c.h.b16 %v300
    %v1827 = vunpack.c.l.b16 %v301
    %v1828 = vunpack.c.h.b16 %v301
    %v1829 = vunpack.c.l.b16 %v302
    %v1830 = vunpack.c.h.b16 %v302
    %v1831 = vunpack.c.l.b16 %v303
    %v1832 = vunpack.c.h.b16 %v303
    %v1833 = vunpack.c.l.b16 %v304
    %v1834 = vunpack.c.h.b16 %v304
    %v1835 = vunpack.c.l.b16 %v305
    %v1836 = vunpack.c.h.b16 %v305
    %v1837 = vunpack.c.l.b16 %v306
    %v1838 = vunpack.c.h.b16 %v306
    %v1839 = vunpack.c.l.b16 %v307
    %v1840 = vunpack.c.h.b16 %v307
    %v1841 = vunpack.c.l.b16 %v308
    %v1842 = vunpack.c.h.b16 %v308
    %v1843 = vunpack.c.l.b16 %v309
    %v1844 = vunpack.c.h.b16 %v309
    %v1845 = vunpack.c.l.b16 %v310
    %v1846 = vunpack.c.h.b16 %v310
    %v1847 = vunpack.c.l.b16 %v311
    %v1848 = vunpack.c.h.b16 %v311
    %v1849 = vunpack.c.l.b16 %v312
    %v1850 = vunpack.c.h.b16 %v312
    %v1851 = vunpack.c.l.b16 %v313
    %v1852 = vunpack.c.h.b16 %v313
    %v1853 = vunpack.c.l.b16 %v314
    %v1854 = vunpack.c.h.b16 %v314
    %v1855 = vunpack.c.l.b16 %v315
    %v1856 = vunpack.c.h.b16 %v315
    %v1857 = vunpack.c.l.b16 %v316
    %v1858 = vunpack.c.h.b16 %v316
    %v1859 = vunpack.c.l.b16 %v317
    %v1860 = vunpack.c.h.b16 %v317
    %v1861 = vunpack.c.l.b16 %v318
    %v1862 = vunpack.c.h.b16 %v318
    %v1863 = vunpack.c.l.b16 %v319
    %v1864 = vunpack.c.h.b16 %v319
    %v1865 = vunpack.c.l.b16 %v320
    %v1866 = vunpack.c.h.b16 %v320
    %v1867 = vunpack.c.l.b16 %v321
    %v1868 = vunpack.c.h.b16 %v321
    %v1869 = vunpack.c.l.b16 %v322
    %v1870 = vunpack.c.h.b16 %v322
    %v1871 = vunpack.c.l.b16 %v323
    %v1872 = vunpack.c.h.b16 %v323
    %v1873 = vunpack.c.l.b16 %v324
    %v1874 = vunpack.c.h.b16 %v324
    %v1875 = vunpack.c.l.b16 %v325
    %v1876 = vunpack.c.h.b16 %v325
    %v1877 = vunpack.c.l.b16 %v326
    %v1878 = vunpack.c.h.b16 %v326
    %v1879 = vunpack.c.l.b16 %v327
    %v1880 = vunpack.c.h.b16 %v327
    %v1881 = vunpack.c.l.b16 %v328
    %v1882 = vunpack.c.h.b16 %v328
    %v1883 = vunpack.c.l.b16 %v329
    %v1884 = vunpack.c.h.b16 %v329
    %v1885 = vunpack.c.l.b16 %v330
    %v1886 = vunpack.c.h.b16 %v330
    %v1887 = vunpack.c.l.b16 %v331
    %v1888 = vunpack.c.h.b16 %v331
    %v1889 = vunpack.c.l.b16 %v332
    %v1890 = vunpack.c.h.b16 %v332
    %v1891 = vunpack.c.l.b16 %v333
    %v1892 = vunpack.c.h.b16 %v333
    %v1893 = vunpack.c.l.b16 %v334
    %v1894 = vunpack.c.h.b16 %v334
    %v1895 = vunpack.c.l.b16 %v335
    %v1896 = vunpack.c.h.b16 %v335
    %v1897 = vunpack.c.l.b16 %v336
    %v1898 = vunpack.c.h.b16 %v336
    %v1899 = vunpack.c.l.b16 %v337
    %v1900 = vunpack.c.h.b16 %v337
    %v1901 = vunpack.c.l.b16 %v338
    %v1902 = vunpack.c.h.b16 %v338
    %v1903 = vunpack.c.l.b16 %v339
    %v1904 = vunpack.c.h.b16 %v339
    %v1905 = vunpack.c.l.b16 %v340
    %v1906 = vunpack.c.h.b16 %v340
    %v1907 = vunpack.c.l.b16 %v341
    %v1908 = vunpack.c.h.b16 %v341
    %v1909 = vunpack.c.l.b16 %v342
    %v1910 = vunpack.c.h.b16 %v342
    %v1911 = vunpack.c.l.b16 %v343
    %v1912 = vunpack.c.h.b16 %v343
    %v1913 = vunpack.c.l.b16 %v344
    %v1914 = vunpack.c.h.b16 %v344
    %v1915 = vunpack.c.l.b16 %v345
    %v1916 = vunpack.c.h.b16 %v345
    %v1917 = vunpack.c.l.b16 %v346
    %v1918 = vunpack.c.h.b16 %v346
    %v1919 = vunpack.c.l.b16 %v347
    %v1920 = vunpack.c.h.b16 %v347
    %v1921 = vunpack.c.l.b16 %v348
    %v1922 = vunpack.c.h.b16 %v348
    %v1923 = vunpack.c.l.b16 %v349
    %v1924 = vunpack.c.h.b16 %v349
    %v1925 = vunpack.c.l.b16 %v350
    %v1926 = vunpack.c.h.b16 %v350
    %v1927 = vunpack.c.l.b16 %v351
    %v1928 = vunpack.c.h.b16 %v351
    %v1929 = vunpack.c.l.b16 %v352
    %v1930 = vunpack.c.h.b16 %v352
    %v1931 = vunpack.c.l.b16 %v353
    %v1932 = vunpack.c.h.b16 %v353
    %v1933 = vunpack.c.l.b16 %v354
    %v1934 = vunpack.c.h.b16 %v354
    %v1935 = vunpack.c.l.b16 %v355
    %v1936 = vunpack.c.h.b16 %v355
    %v1937 = vunpack.c.l.b16 %v356
    %v1938 = vunpack.c.h.b16 %v356
    %v1939 = vunpack.c.l.b16 %v357
    %v1940 = vunpack.c.h.b16 %v357
    %v1941 = vunpack.c.l.b16 %v358
    %v1942 = vunpack.c.h.b16 %v358
    %v1943 = vunpack.c.l.b16 %v359
    %v1944 = vunpack.c.h.b16 %v359
    %v1945 = vunpack.c.l.b16 %v360
    %v1946 = vunpack.c.h.b16 %v360
    %v1947 = vunpack.c.l.b16 %v361
    %v1948 = vunpack.c.h.b16 %v361
    %v1949 = vunpack.c.l.b16 %v362
    %v1950 = vunpack.c.h.b16 %v362
    %v1951 = vunpack.c.l.b16 %v363
    %v1952 = vunpack.c.h.b16 %v363
    %v1953 = vunpack.c.l.b16 %v364
    %v1954 = vunpack.c.h.b16 %v364
    %v1955 = vunpack.c.l.b16 %v365
    %v1956 = vunpack.c.h.b16 %v365
    %v1957 = vunpack.c.l.b16 %v366
    %v1958 = vunpack.c.h.b16 %v366
    %v1959 = vunpack.c.l.b16 %v367
    %v1960 = vunpack.c.h.b16 %v367
    %v1961 = vunpack.c.l.b16 %v368
    %v1962 = vunpack.c.h.b16 %v368
    %v1963 = vunpack.c.l.b16 %v369
    %v1964 = vunpack.c.h.b16 %v369
    %v1965 = vunpack.c.l.b16 %v370
    %v1966 = vunpack.c.h.b16 %v370
    %v1967 = vunpack.c.l.b16 %v371
    %v1968 = vunpack.c.h.b16 %v371
    %v1969 = vunpack.c.l.b16 %v372
    %v1970 = vunpack.c.h.b16 %v372
    %v1971 = vunpack.c.l.b16 %v373
    %v1972 = vunpack.c.h.b16 %v373
    %v1973 = vunpack.c.l.b16 %v374
    %v1974 = vunpack.c.h.b16 %v374
    %v1975 = vunpack.c.l.b16 %v375
    %v1976 = vunpack.c.h.b16 %v375
    %v1977 = vunpack.c.l.b16 %v376
    %v1978 = vunpack.c.h.b16 %v376
    %v1979 = vunpack.c.l.b16 %v377
    %v1980 = vunpack.c.h.b16 %v377
    %v1981 = vunpack.c.l.b16 %v378
    %v1982 = vunpack.c.h.b16 %v378
    %v1983 = vunpack.c.l.b16 %v379
    %v1984 = vunpack.c.h.b16 %v379
    %v1985 = vunpack.c.l.b16 %v380
    %v1986 = vunpack.c.h.b16 %v380
    %v1987 = vunpack.c.l.b16 %v381
    %v1988 = vunpack.c.h.b16 %v381
    %v1989 = vunpack.c.l.b16 %v382
    %v1990 = vunpack.c.h.b16 %v382
    %v1991 = vunpack.c.l.b16 %v383
    %v1992 = vunpack.c.h.b16 %v383
    %v1993 = vunpack.c.l.b16 %v384
    %v1994 = vunpack.c.h.b16 %v384
    %v1995 = vunpack.c.l.b16 %v385
    %v1996 = vunpack.c.h.b16 %v385
    %v1997 = vunpack.c.l.b16 %v386
    %v1998 = vunpack.c.h.b16 %v386
    %v1999 = vunpack.c.l.b16 %v387
    %v2000 = vunpack.c.h.b16 %v387
    %v2001 = vunpack.c.l.b16 %v388
    %v2002 = vunpack.c.h.b16 %v388
    %v2003 = vunpack.c.l.b16 %v389
    %v2004 = vunpack.c.h.b16 %v389
    %v2005 = vunpack.c.l.b16 %v390
    %v2006 = vunpack.c.h.b16 %v390
    %v2007 = vunpack.c.l.b16 %v391
    %v2008 = vunpack.c.h.b16 %v391
    %v2009 = vunpack.c.l.b16 %v392
    %v2010 = vunpack.c.h.b16 %v392
    %v2011 = vunpack.c.l.b16 %v393
    %v2012 = vunpack.c.h.b16 %v393
    %v2013 = vunpack.c.l.b16 %v394
    %v2014 = vunpack.c.h.b16 %v394
    %v2015 = vunpack.c.l.b16 %v395
    %v2016 = vunpack.c.h.b16 %v395
    %v2017 = vunpack.c.l.b16 %v396
    %v2018 = vunpack.c.h.b16 %v396
    %v2019 = vunpack.c.l.b16 %v397
    %v2020 = vunpack.c.h.b16 %v397
    %v2021 = vunpack.c.l.b16 %v398
    %v2022 = vunpack.c.h.b16 %v398
    %v2023 = vunpack.c.l.b16 %v399
    %v2024 = vunpack.c.h.b16 %v399
    %v2025 = vunpack.c.l.b16 %v400
    %v2026 = vunpack.c.h.b16 %v400
    %v2027 = vunpack.c.l.b16 %v401
    %v2028 = vunpack.c.h.b16 %v401
    %v2029 = vunpack.c.l.b16 %v402
    %v2030 = vunpack.c.h.b16 %v402
    %v2031 = vunpack.c.l.b16 %v403
    %v2032 = vunpack.c.h.b16 %v403
    %v2033 = vunpack.c.l.b16 %v404
    %v2034 = vunpack.c.h.b16 %v404
    %v2035 = vunpack.c.l.b16 %v405
    %v2036 = vunpack.c.h.b16 %v405
    %v2037 = vunpack.c.l.b16 %v406
    %v2038 = vunpack.c.h.b16 %v406
    %v2039 = vunpack.c.l.b16 %v407
    %v2040 = vunpack.c.h.b16 %v407
    %v2041 = vunpack.c.l.b16 %v408
    %v2042 = vunpack.c.h.b16 %v408
    %v2043 = vunpack.c.l.b16 %v409
    %v2044 = vunpack.c.h.b16 %v409
    %v2045 = vunpack.c.l.b16 %v410
    %v2046 = vunpack.c.h.b16 %v410
    %v2047 = vunpack.c.l.b16 %v411
    %v2048 = vunpack.c.h.b16 %v411
    %v2049 = vunpack.c.l.b16 %v412
    %v2050 = vunpack.c.h.b16 %v412
    %v2051 = vunpack.c.l.b16 %v413
    %v2052 = vunpack.c.h.b16 %v413
    %v2053 = vunpack.c.l.b16 %v414
    %v2054 = vunpack.c.h.b16 %v414
    %v2055 = vunpack.c.l.b16 %v415
    %v2056 = vunpack.c.h.b16 %v415
    %v2057 = vunpack.c.l.b16 %v416
    %v2058 = vunpack.c.h.b16 %v416
    %v2059 = vunpack.c.l.b16 %v417
    %v2060 = vunpack.c.h.b16 %v417
    %v2061 = vunpack.c.l.b16 %v418
    %v2062 = vunpack.c.h.b16 %v418
    %v2063 = vunpack.c.l.b16 %v419
    %v2064 = vunpack.c.h.b16 %v419
    %v2065 = vunpack.c.l.b16 %v420
    %v2066 = vunpack.c.h.b16 %v420
    %v2067 = vunpack.c.l.b16 %v421
    %v2068 = vunpack.c.h.b16 %v421
    %v2069 = vunpack.c.l.b16 %v422
    %v2070 = vunpack.c.h.b16 %v422
    %v2071 = vunpack.c.l.b16 %v423
    %v2072 = vunpack.c.h.b16 %v423
    %v2073 = vunpack.c.l.b16 %v424
    %v2074 = vunpack.c.h.b16 %v424
    %v2075 = vunpack.c.l.b16 %v425
    %v2076 = vunpack.c.h.b16 %v425
    %v2077 = vunpack.c.l.b16 %v426
    %v2078 = vunpack.c.h.b16 %v426
    %v2079 = vunpack.c.l.b16 %v427
    %v2080 = vunpack.c.h.b16 %v427
    %v2081 = vunpack.c.l.b16 %v428
    %v2082 = vunpack.c.h.b16 %v428
    %v2083 = vunpack.c.l.b16 %v429
    %v2084 = vunpack.c.h.b16 %v429
    %v2085 = vunpack.c.l.b16 %v430
    %v2086 = vunpack.c.h.b16 %v430
    %v2087 = vunpack.c.l.b16 %v431
    %v2088 = vunpack.c.h.b16 %v431
    %v2089 = vunpack.c.l.b16 %v432
    %v2090 = vunpack.c.h.b16 %v432
    %v2091 = vunpack.c.l.b16 %v433
    %v2092 = vunpack.c.h.b16 %v433
    %v2093 = vunpack.c.l.b16 %v434
    %v2094 = vunpack.c.h.b16 %v434
    %v2095 = vunpack.c.l.b16 %v435
    %v2096 = vunpack.c.h.b16 %v435
    %v2097 = vunpack.c.l.b16 %v436
    %v2098 = vunpack.c.h.b16 %v436
    %v2099 = vunpack.c.l.b16 %v437
    %v2100 = vunpack.c.h.b16 %v437
    %v2101 = vunpack.c.l.b16 %v438
    %v2102 = vunpack.c.h.b16 %v438
    %v2103 = vunpack.c.l.b16 %v439
    %v2104 = vunpack.c.h.b16 %v439
    %v2105 = vunpack.c.l.b16 %v440
    %v2106 = vunpack.c.h.b16 %v440
    %v2107 = vunpack.c.l.b16 %v441
    %v2108 = vunpack.c.h.b16 %v441
    %v2109 = vunpack.c.l.b16 %v442
    %v2110 = vunpack.c.h.b16 %v442
    %v2111 = vunpack.c.l.b16 %v443
    %v2112 = vunpack.c.h.b16 %v443
    %v2113 = vunpack.c.l.b16 %v444
    %v2114 = vunpack.c.h.b16 %v444
    %v2115 = vunpack.c.l.b16 %v445
    %v2116 = vunpack.c.h.b16 %v445
    %v2117 = vunpack.c.l.b16 %v446
    %v2118 = vunpack.c.h.b16 %v446
    %v2119 = vunpack.c.l.b16 %v447
    %v2120 = vunpack.c.h.b16 %v447
    %v2121 = vunpack.c.l.b16 %v448
    %v2122 = vunpack.c.h.b16 %v448
    %v2123 = vunpack.c.l.b16 %v449
    %v2124 = vunpack.c.h.b16 %v449
    %v2125 = vunpack.c.l.b16 %v450
    %v2126 = vunpack.c.h.b16 %v450
    %v2127 = vunpack.c.l.b16 %v451
    %v2128 = vunpack.c.h.b16 %v451
    %v2129 = vunpack.c.l.b16 %v452
    %v2130 = vunpack.c.h.b16 %v452
    %v2131 = vunpack.c.l.b16 %v453
    %v2132 = vunpack.c.h.b16 %v453
    %v2133 = vunpack.c.l.b16 %v454
    %v2134 = vunpack.c.h.b16 %v454
    %v2135 = vunpack.c.l.b16 %v455
    %v2136 = vunpack.c.h.b16 %v455
    %v2137 = vunpack.c.l.b16 %v456
    %v2138 = vunpack.c.h.b16 %v456
    %v2139 = vunpack.c.l.b16 %v457
    %v2140 = vunpack.c.h.b16 %v457
    %v2141 = vunpack.c.l.b16 %v458
    %v2142 = vunpack.c.h.b16 %v458
    %v2143 = vunpack.c.l.b16 %v459
    %v2144 = vunpack.c.h.b16 %v459
    %v2145 = vunpack.c.l.b16 %v460
    %v2146 = vunpack.c.h.b16 %v460
    %v2147 = vunpack.c.l.b16 %v461
    %v2148 = vunpack.c.h.b16 %v461
    %v2149 = vunpack.c.l.b16 %v462
    %v2150 = vunpack.c.h.b16 %v462
    %v2151 = vunpack.c.l.b16 %v463
    %v2152 = vunpack.c.h.b16 %v463
    %v2153 = vunpack.c.l.b16 %v464
    %v2154 = vunpack.c.h.b16 %v464
    %v2155 = vunpack.c.l.b16 %v465
    %v2156 = vunpack.c.h.b16 %v465
    %v2157 = vunpack.c.l.b16 %v466
    %v2158 = vunpack.c.h.b16 %v466
    %v2159 = vunpack.c.l.b16 %v467
    %v2160 = vunpack.c.h.b16 %v467
    %v2161 = vunpack.c.l.b16 %v468
    %v2162 = vunpack.c.h.b16 %v468
    %v2163 = vunpack.c.l.b16 %v469
    %v2164 = vunpack.c.h.b16 %v469
    %v2165 = vunpack.c.l.b16 %v470
    %v2166 = vunpack.c.h.b16 %v470
    %v2167 = vunpack.c.l.b16 %v471
    %v2168 = vunpack.c.h.b16 %v471
    %v2169 = vunpack.c.l.b16 %v472
    %v2170 = vunpack.c.h.b16 %v472
    %v2171 = vunpack.c.l.b16 %v473
    %v2172 = vunpack.c.h.b16 %v473
    %v2173 = vunpack.c.l.b16 %v474
    %v2174 = vunpack.c.h.b16 %v474
    %v2175 = vunpack.c.l.b16 %v475
    %v2176 = vunpack.c.h.b16 %v475
    %v2177 = vunpack.c.l.b16 %v476
    %v2178 = vunpack.c.h.b16 %v476
    %v2179 = vunpack.c.l.b16 %v477
    %v2180 = vunpack.c.h.b16 %v477
    %v2181 = vunpack.c.l.b16 %v478
    %v2182 = vunpack.c.h.b16 %v478
    %v2183 = vunpack.c.l.b16 %v479
    %v2184 = vunpack.c.h.b16 %v479
    %v2185 = vunpack.c.l.b16 %v480
    %v2186 = vunpack.c.h.b16 %v480
    %v2187 = vunpack.c.l.b16 %v481
    %v2188 = vunpack.c.h.b16 %v481
    %v2189 = vunpack.c.l.b16 %v482
    %v2190 = vunpack.c.h.b16 %v482
    %v2191 = vunpack.c.l.b16 %v483
    %v2192 = vunpack.c.h.b16 %v483
    %v2193 = vunpack.c.l.b16 %v484
    %v2194 = vunpack.c.h.b16 %v484
    %v2195 = vunpack.c.l.b16 %v485
    %v2196 = vunpack.c.h.b16 %v485
    %v2197 = vunpack.c.l.b16 %v486
    %v2198 = vunpack.c.h.b16 %v486
    %v2199 = vunpack.c.l.b16 %v487
    %v2200 = vunpack.c.h.b16 %v487
    %v2201 = vunpack.c.l.b16 %v488
    %v2202 = vunpack.c.h.b16 %v488
    %v2203 = vunpack.c.l.b16 %v489
    %v2204 = vunpack.c.h.b16 %v489
    %v2205 = vunpack.c.l.b16 %v490
    %v2206 = vunpack.c.h.b16 %v490
    %v2207 = vunpack.c.l.b16 %v491
    %v2208 = vunpack.c.h.b16 %v491
    %v2209 = vunpack.c.l.b16 %v492
    %v2210 = vunpack.c.h.b16 %v492
    %v2211 = vunpack.c.l.b16 %v493
    %v2212 = vunpack.c.h.b16 %v493
    %v2213 = vunpack.c.l.b16 %v494
    %v2214 = vunpack.c.h.b16 %v494
    %v2215 = vunpack.c.l.b16 %v495
    %v2216 = vunpack.c.h.b16 %v495
    %v2217 = vunpack.c.l.b16 %v496
    %v2218 = vunpack.c.h.b16 %v496
    %v2219 = vunpack.c.l.b16 %v497
    %v2220 = vunpack.c.h.b16 %v497
    %v2221 = vunpack.c.l.b16 %v498
    %v2222 = vunpack.c.h.b16 %v498
    %v2223 = vunpack.c.l.b16 %v499
    %v2224 = vunpack.c.h.b16 %v499
    %v2225 = vunpack.c.l.b16 %v500
    %v2226 = vunpack.c.h.b16 %v500
    %v2227 = vunpack.c.l.b16 %v501
    %v2228 = vunpack.c.h.b16 %v501
    %v2229 = vunpack.c.l.b16 %v502
    %v2230 = vunpack.c.h.b16 %v502
    %v2231 = vunpack.c.l.b16 %v503
    %v2232 = vunpack.c.h.b16 %v503
    %v2233 = vunpack.c.l.b16 %v504
    %v2234 = vunpack.c.h.b16 %v504
    %v2235 = vunpack.c.l.b16 %v505
    %v2236 = vunpack.c.h.b16 %v505
    %v2237 = vunpack.c.l.b16 %v506
    %v2238 = vunpack.c.h.b16 %v506
    %v2239 = vunpack.c.l.b16 %v507
    %v2240 = vunpack.c.h.b16 %v507
    %v2241 = vunpack.c.l.b16 %v508
    %v2242 = vunpack.c.h.b16 %v508
    %v2243 = vunpack.c.l.b16 %v509
    %v2244 = vunpack.c.h.b16 %v509
    %v2245 = vunpack.c.l.b16 %v510
    %v2246 = vunpack.c.h.b16 %v510
    %v2247 = vunpack.c.l.b16 %v511
    %v2248 = vunpack.c.h.b16 %v511
    %v2249 = vunpack.c.l.b16 %v512
    %v2250 = vunpack.c.h.b16 %v512
    %v2251 = vunpack.c.l.b16 %v513
    %v2252 = vunpack.c.h.b16 %v513
    %v2253 = vunpack.c.l.b16 %v514
    %v2254 = vunpack.c.h.b16 %v514
    %v2255 = vunpack.c.l.b16 %v515
    %v2256 = vunpack.c.h.b16 %v515
    %v2257 = vunpack.c.l.b16 %v516
    %v2258 = vunpack.c.h.b16 %v516
    %v2259 = vunpack.c.l.b16 %v517
    %v2260 = vunpack.c.h.b16 %v517
    %v2261 = vunpack.c.l.b16 %v518
    %v2262 = vunpack.c.h.b16 %v518
    %v2263 = vunpack.c.l.b16 %v519
    %v2264 = vunpack.c.h.b16 %v519
    %v2265 = vunpack.c.l.b16 %v520
    %v2266 = vunpack.c.h.b16 %v520
    %v2267 = vunpack.c.l.b16 %v521
    %v2268 = vunpack.c.h.b16 %v521
    %v2269 = vunpack.c.l.b16 %v522
    %v2270 = vunpack.c.h.b16 %v522
    %v2271 = vunpack.c.l.b16 %v523
    %v2272 = vunpack.c.h.b16 %v523
    %v2273 = vunpack.c.l.b16 %v524
    %v2274 = vunpack.c.h.b16 %v524
    %v2275 = vunpack.c.l.b16 %v525
    %v2276 = vunpack.c.h.b16 %v525
    %v2277 = vunpack.c.l.b16 %v526
    %v2278 = vunpack.c.h.b16 %v526
    %v2279 = vunpack.c.l.b16 %v527
    %v2280 = vunpack.c.h.b16 %v527
    %v2281 = vunpack.c.l.b16 %v528
    %v2282 = vunpack.c.h.b16 %v528
    %v2283 = vunpack.c.l.b16 %v529
    %v2284 = vunpack.c.h.b16 %v529
    %v2285 = vunpack.c.l.b16 %v530
    %v2286 = vunpack.c.h.b16 %v530
    %v2287 = vunpack.c.l.b16 %v531
    %v2288 = vunpack.c.h.b16 %v531
    %v2289 = vunpack.c.l.b16 %v532
    %v2290 = vunpack.c.h.b16 %v532
    %v2291 = vunpack.c.l.b16 %v533
    %v2292 = vunpack.c.h.b16 %v533
    %v2293 = vunpack.c.l.b16 %v534
    %v2294 = vunpack.c.h.b16 %v534
    %v2295 = vunpack.c.l.b16 %v535
    %v2296 = vunpack.c.h.b16 %v535
    %v2297 = vunpack.c.l.b16 %v536
    %v2298 = vunpack.c.h.b16 %v536
    %v2299 = vunpack.c.l.b16 %v537
    %v2300 = vunpack.c.h.b16 %v537
    %v2301 = vunpack.c.l.b16 %v538
    %v2302 = vunpack.c.h.b16 %v538
    %v2303 = vunpack.c.l.b16 %v539
    %v2304 = vunpack.c.h.b16 %v539
    %v2305 = vunpack.c.l.b16 %v540
    %v2306 = vunpack.c.h.b16 %v540
    %v2307 = vunpack.c.l.b16 %v541
    %v2308 = vunpack.c.h.b16 %v541
    %v2309 = vunpack.c.l.b16 %v542
    %v2310 = vunpack.c.h.b16 %v542
    %v2311 = vunpack.c.l.b16 %v543
    %v2312 = vunpack.c.h.b16 %v543
    %v2313 = vunpack.c.l.b16 %v544
    %v2314 = vunpack.c.h.b16 %v544
    %v2315 = vunpack.c.l.b16 %v545
    %v2316 = vunpack.c.h.b16 %v545
    %v2317 = vunpack.c.l.b16 %v546
    %v2318 = vunpack.c.h.b16 %v546
    %v2319 = vunpack.c.l.b16 %v547
    %v2320 = vunpack.c.h.b16 %v547
    %v2321 = vunpack.c.l.b16 %v548
    %v2322 = vunpack.c.h.b16 %v548
    %v2323 = vunpack.c.l.b16 %v549
    %v2324 = vunpack.c.h.b16 %v549
    %v2325 = vunpack.c.l.b16 %v550
    %v2326 = vunpack.c.h.b16 %v550
    %v2327 = vunpack.c.l.b16 %v551
    %v2328 = vunpack.c.h.b16 %v551
    %v2329 = vunpack.c.l.b16 %v552
    %v2330 = vunpack.c.h.b16 %v552
    %v2331 = vunpack.c.l.b16 %v553
    %v2332 = vunpack.c.h.b16 %v553
    %v2333 = vunpack.c.l.b16 %v554
    %v2334 = vunpack.c.h.b16 %v554
    %v2335 = vunpack.c.l.b16 %v555
    %v2336 = vunpack.c.h.b16 %v555
    %v2337 = vunpack.c.l.b16 %v556
    %v2338 = vunpack.c.h.b16 %v556
    %v2339 = vunpack.c.l.b16 %v557
    %v2340 = vunpack.c.h.b16 %v557
    %v2341 = vunpack.c.l.b16 %v558
    %v2342 = vunpack.c.h.b16 %v558
    %v2343 = vunpack.c.l.b16 %v559
    %v2344 = vunpack.c.h.b16 %v559
    %v2345 = vunpack.c.l.b16 %v560
    %v2346 = vunpack.c.h.b16 %v560
    %v2347 = vunpack.c.l.b16 %v561
    %v2348 = vunpack.c.h.b16 %v561
    %v2349 = vunpack.c.l.b16 %v562
    %v2350 = vunpack.c.h.b16 %v562
    %v2351 = vunpack.c.l.b16 %v563
    %v2352 = vunpack.c.h.b16 %v563
    %v2353 = vunpack.c.l.b16 %v564
    %v2354 = vunpack.c.h.b16 %v564
    %v2355 = vunpack.c.l.b16 %v565
    %v2356 = vunpack.c.h.b16 %v565
    %v2357 = vunpack.c.l.b16 %v566
    %v2358 = vunpack.c.h.b16 %v566
    %v2359 = vunpack.c.l.b16 %v567
    %v2360 = vunpack.c.h.b16 %v567
    %v2361 = vunpack.c.l.b16 %v568
    %v2362 = vunpack.c.h.b16 %v568
    %v2363 = vunpack.c.l.b16 %v569
    %v2364 = vunpack.c.h.b16 %v569
    %v2365 = vunpack.c.l.b16 %v570
    %v2366 = vunpack.c.h.b16 %v570
    %v2367 = vunpack.c.l.b16 %v571
    %v2368 = vunpack.c.h.b16 %v571
    %v2369 = vunpack.c.l.b16 %v572
    %v2370 = vunpack.c.h.b16 %v572
    %v2371 = vunpack.c.l.b16 %v573
    %v2372 = vunpack.c.h.b16 %v573
    %v2373 = vunpack.c.l.b16 %v574
    %v2374 = vunpack.c.h.b16 %v574
    %v2375 = vunpack.c.l.b16 %v575
    %v2376 = vunpack.c.h.b16 %v575
    %v2377 = vunpack.c.l.b16 %v576
    %v2378 = vunpack.c.h.b16 %v576
    %v2379 = vunpack.c.l.b16 %v577
    %v2380 = vunpack.c.h.b16 %v577
    %v2381 = vunpack.c.l.b16 %v578
    %v2382 = vunpack.c.h.b16 %v578
    %v2383 = vunpack.c.l.b16 %v579
    %v2384 = vunpack.c.h.b16 %v579
    %v2385 = vunpack.c.l.b16 %v580
    %v2386 = vunpack.c.h.b16 %v580
    %v2387 = vunpack.c.l.b16 %v581
    %v2388 = vunpack.c.h.b16 %v581
    %v2389 = vunpack.c.l.b16 %v582
    %v2390 = vunpack.c.h.b16 %v582
    %v2391 = vunpack.c.l.b16 %v583
    %v2392 = vunpack.c.h.b16 %v583
    %v2393 = vunpack.c.l.b16 %v584
    %v2394 = vunpack.c.h.b16 %v584
    %v2395 = vunpack.c.l.b16 %v585
    %v2396 = vunpack.c.h.b16 %v585
    %v2397 = vunpack.c.l.b16 %v586
    %v2398 = vunpack.c.h.b16 %v586
    %v2399 = vunpack.c.l.b16 %v587
    %v2400 = vunpack.c.h.b16 %v587
    %v2401 = vunpack.c.l.b16 %v588
    %v2402 = vunpack.c.h.b16 %v588
    %v2403 = vunpack.c.l.b16 %v589
    %v2404 = vunpack.c.h.b16 %v589
    %v2405 = vunpack.c.l.b16 %v590
    %v2406 = vunpack.c.h.b16 %v590
    %v2407 = vunpack.c.l.b16 %v591
    %v2408 = vunpack.c.h.b16 %v591
    %v2409 = vunpack.c.l.b16 %v592
    %v2410 = vunpack.c.h.b16 %v592
    %v2411 = vunpack.c.l.b16 %v593
    %v2412 = vunpack.c.h.b16 %v593
    %v2413 = vunpack.c.l.b16 %v594
    %v2414 = vunpack.c.h.b16 %v594
    %v2415 = vunpack.c.l.b16 %v595
    %v2416 = vunpack.c.h.b16 %v595
    %v2417 = vunpack.c.l.b16 %v596
    %v2418 = vunpack.c.h.b16 %v596
    %v2419 = vunpack.c.l.b16 %v597
    %v2420 = vunpack.c.h.b16 %v597
    %v2421 = vunpack.c.l.b16 %v598
    %v2422 = vunpack.c.h.b16 %v598
    %v2423 = vunpack.c.l.b16 %v599
    %v2424 = vunpack.c.h.b16 %v599
    %v2425 = vunpack.c.l.b16 %v600
    %v2426 = vunpack.c.h.b16 %v600
    %v2427 = vunpack.c.l.b16 %v601
    %v2428 = vunpack.c.h.b16 %v601
    %v2429 = vunpack.c.l.b16 %v602
    %v2430 = vunpack.c.h.b16 %v602
    %v2431 = vunpack.c.l.b16 %v603
    %v2432 = vunpack.c.h.b16 %v603
    %v2433 = vunpack.c.l.b16 %v604
    %v2434 = vunpack.c.h.b16 %v604
    %v2435 = vunpack.c.l.b16 %v605
    %v2436 = vunpack.c.h.b16 %v605
    %v2437 = vunpack.c.l.b16 %v606
    %v2438 = vunpack.c.h.b16 %v606
    %v2439 = vunpack.c.l.b16 %v607
    %v2440 = vunpack.c.h.b16 %v607
    %v2441 = vunpack.c.l.b16 %v608
    %v2442 = vunpack.c.h.b16 %v608
    %v2443 = vunpack.c.l.b16 %v609
    %v2444 = vunpack.c.h.b16 %v609
    %v2445 = vunpack.c.l.b16 %v610
    %v2446 = vunpack.c.h.b16 %v610
    %v2447 = vunpack.c.l.b16 %v611
    %v2448 = vunpack.c.h.b16 %v611
    %v2449 = vunpack.c.l.b16 %v612
    %v2450 = vunpack.c.h.b16 %v612
    %v2451 = vunpack.c.l.b16 %v613
    %v2452 = vunpack.c.h.b16 %v613
    %v2453 = vunpack.c.l.b16 %v614
    %v2454 = vunpack.c.h.b16 %v614
    %v2455 = vunpack.c.l.b16 %v615
    %v2456 = vunpack.c.h.b16 %v615
    %v2457 = vunpack.c.l.b16 %v616
    %v2458 = vunpack.c.h.b16 %v616
    %v2459 = vunpack.c.l.b16 %v617
    %v2460 = vunpack.c.h.b16 %v617
    %v2461 = vunpack.c.l.b16 %v618
    %v2462 = vunpack.c.h.b16 %v618
    %v2463 = vunpack.c.l.b16 %v619
    %v2464 = vunpack.c.h.b16 %v619
    %v2465 = vunpack.c.l.b16 %v620
    %v2466 = vunpack.c.h.b16 %v620
    %v2467 = vunpack.c.l.b16 %v621
    %v2468 = vunpack.c.h.b16 %v621
    %v2469 = vunpack.c.l.b16 %v622
    %v2470 = vunpack.c.h.b16 %v622
    %v2471 = vunpack.c.l.b16 %v623
    %v2472 = vunpack.c.h.b16 %v623
    %v2473 = vunpack.c.l.b16 %v624
    %v2474 = vunpack.c.h.b16 %v624
    %v2475 = vunpack.c.l.b16 %v625
    %v2476 = vunpack.c.h.b16 %v625
    %v2477 = vunpack.c.l.b16 %v626
    %v2478 = vunpack.c.h.b16 %v626
    %v2479 = vunpack.c.l.b16 %v627
    %v2480 = vunpack.c.h.b16 %v627
    %v2481 = vunpack.c.l.b16 %v628
    %v2482 = vunpack.c.h.b16 %v628
    %v2483 = vunpack.c.l.b16 %v629
    %v2484 = vunpack.c.h.b16 %v629
    %v2485 = vunpack.c.l.b16 %v630
    %v2486 = vunpack.c.h.b16 %v630
    %v2487 = vunpack.c.l.b16 %v631
    %v2488 = vunpack.c.h.b16 %v631
    %v2489 = vunpack.c.l.b16 %v632
    %v2490 = vunpack.c.h.b16 %v632
    %v2491 = vunpack.c.l.b16 %v633
    %v2492 = vunpack.c.h.b16 %v633
    %v2493 = vunpack.c.l.b16 %v634
    %v2494 = vunpack.c.h.b16 %v634
    %v2495 = vunpack.c.l.b16 %v635
    %v2496 = vunpack.c.h.b16 %v635
    %v2497 = vunpack.c.l.b16 %v636
    %v2498 = vunpack.c.h.b16 %v636
    %v2499 = vunpack.c.l.b16 %v637
    %v2500 = vunpack.c.h.b16 %v637
    %v2501 = vunpack.c.l.b16 %v638
    %v2502 = vunpack.c.h.b16 %v638
    %v2503 = vunpack.c.l.b16 %v639
    %v2504 = vunpack.c.h.b16 %v639
    %v2505 = vunpack.c.l.b16 %v640
    %v2506 = vunpack.c.h.b16 %v640
    %v2507 = vunpack.c.l.b16 %v641
    %v2508 = vunpack.c.h.b16 %v641
    %v2509 = vunpack.c.l.b16 %v642
    %v2510 = vunpack.c.h.b16 %v642
    %v2511 = vunpack.c.l.b16 %v643
    %v2512 = vunpack.c.h.b16 %v643
    %v2513 = vunpack.c.l.b16 %v644
    %v2514 = vunpack.c.h.b16 %v644
    %v2515 = vunpack.c.l.b16 %v645
    %v2516 = vunpack.c.h.b16 %v645
    %v2517 = vunpack.c.l.b16 %v646
    %v2518 = vunpack.c.h.b16 %v646
    %v2519 = vunpack.c.l.b16 %v647
    %v2520 = vunpack.c.h.b16 %v647
    %v2521 = vunpack.c.l.b16 %v648
    %v2522 = vunpack.c.h.b16 %v648
    %v2523 = vunpack.c.l.b16 %v649
    %v2524 = vunpack.c.h.b16 %v649
    %v2525 = vunpack.c.l.b16 %v650
    %v2526 = vunpack.c.h.b16 %v650
    %v2527 = vunpack.c.l.b16 %v651
    %v2528 = vunpack.c.h.b16 %v651
    %v2529 = vunpack.c.l.b16 %v652
    %v2530 = vunpack.c.h.b16 %v652
    %v2531 = vunpack.c.l.b16 %v653
    %v2532 = vunpack.c.h.b16 %v653
    %v2533 = vunpack.c.l.b16 %v654
    %v2534 = vunpack.c.h.b16 %v654
    %v2535 = vunpack.c.l.b16 %v655
    %v2536 = vunpack.c.h.b16 %v655
    %v2537 = vunpack.c.l.b16 %v656
    %v2538 = vunpack.c.h.b16 %v656
    %v2539 = vunpack.c.l.b16 %v657
    %v2540 = vunpack.c.h.b16 %v657
    %v2541 = vunpack.c.l.b16 %v658
    %v2542 = vunpack.c.h.b16 %v658
    %v2543 = vunpack.c.l.b16 %v659
    %v2544 = vunpack.c.h.b16 %v659
    %v2545 = vunpack.c.l.b16 %v660
    %v2546 = vunpack.c.h.b16 %v660
    %v2547 = vunpack.c.l.b16 %v661
    %v2548 = vunpack.c.h.b16 %v661
    %v2549 = vunpack.c.l.b16 %v662
    %v2550 = vunpack.c.h.b16 %v662
    %v2551 = vunpack.c.l.b16 %v663
    %v2552 = vunpack.c.h.b16 %v663
    %v2553 = vunpack.c.l.b16 %v664
    %v2554 = vunpack.c.h.b16 %v664
    %v2555 = vunpack.c.l.b16 %v665
    %v2556 = vunpack.c.h.b16 %v665
    %v2557 = vunpack.c.l.b16 %v666
    %v2558 = vunpack.c.h.b16 %v666
    %v2559 = vunpack.c.l.b16 %v667
    %v2560 = vunpack.c.h.b16 %v667
    %v2561 = vunpack.c.l.b16 %v668
    %v2562 = vunpack.c.h.b16 %v668
    %v2563 = vunpack.c.l.b16 %v669
    %v2564 = vunpack.c.h.b16 %v669
    %v2565 = vunpack.c.l.b16 %v670
    %v2566 = vunpack.c.h.b16 %v670
    %v2567 = vunpack.c.l.b16 %v671
    %v2568 = vunpack.c.h.b16 %v671
    %v2569 = vunpack.c.l.b16 %v672
    %v2570 = vunpack.c.h.b16 %v672
    %v2571 = vunpack.c.l.b16 %v673
    %v2572 = vunpack.c.h.b16 %v673
    %v2573 = vunpack.c.l.b16 %v674
    %v2574 = vunpack.c.h.b16 %v674
    %v2575 = vunpack.c.l.b16 %v675
    %v2576 = vunpack.c.h.b16 %v675
    %v2577 = vunpack.c.l.b16 %v676
    %v2578 = vunpack.c.h.b16 %v676
    %v2579 = vunpack.c.l.b16 %v677
    %v2580 = vunpack.c.h.b16 %v677
    %v2581 = vunpack.c.l.b16 %v678
    %v2582 = vunpack.c.h.b16 %v678
    %v2583 = vunpack.c.l.b16 %v679
    %v2584 = vunpack.c.h.b16 %v679
    %v2585 = vunpack.c.l.b16 %v680
    %v2586 = vunpack.c.h.b16 %v680
    %v2587 = vunpack.c.l.b16 %v681
    %v2588 = vunpack.c.h.b16 %v681
    %v2589 = vunpack.c.l.b16 %v682
    %v2590 = vunpack.c.h.b16 %v682
    %v2591 = vunpack.c.l.b16 %v683
    %v2592 = vunpack.c.h.b16 %v683
    %v2593 = vunpack.c.l.b16 %v684
    %v2594 = vunpack.c.h.b16 %v684
    %v2595 = vunpack.c.l.b16 %v685
    %v2596 = vunpack.c.h.b16 %v685
    %v2597 = vunpack.c.l.b16 %v686
    %v2598 = vunpack.c.h.b16 %v686
    %v2599 = vunpack.c.l.b16 %v687
    %v2600 = vunpack.c.h.b16 %v687
    %v2601 = vunpack.c.l.b16 %v688
    %v2602 = vunpack.c.h.b16 %v688
    %v2603 = vunpack.c.l.b16 %v689
    %v2604 = vunpack.c.h.b16 %v689
    %v2605 = vunpack.c.l.b16 %v690
    %v2606 = vunpack.c.h.b16 %v690
    %v2607 = vunpack.c.l.b16 %v691
    %v2608 = vunpack.c.h.b16 %v691
    %v2609 = vunpack.c.l.b16 %v692
    %v2610 = vunpack.c.h.b16 %v692
    %v2611 = vunpack.c.l.b16 %v693
    %v2612 = vunpack.c.h.b16 %v693
    %v2613 = vunpack.c.l.b16 %v694
    %v2614 = vunpack.c.h.b16 %v694
    %v2615 = vunpack.c.l.b16 %v695
    %v2616 = vunpack.c.h.b16 %v695
    %v2617 = vunpack.c.l.b16 %v696
    %v2618 = vunpack.c.h.b16 %v696
    %v2619 = vunpack.c.l.b16 %v697
    %v2620 = vunpack.c.h.b16 %v697
    %v2621 = vunpack.c.l.b16 %v698
    %v2622 = vunpack.c.h.b16 %v698
    %v2623 = vunpack.c.l.b16 %v699
    %v2624 = vunpack.c.h.b16 %v699
    %v2625 = vunpack.c.l.b16 %v700
    %v2626 = vunpack.c.h.b16 %v700
    %v2627 = vunpack.c.l.b16 %v701
    %v2628 = vunpack.c.h.b16 %v701
    %v2629 = vunpack.c.l.b16 %v702
    %v2630 = vunpack.c.h.b16 %v702
    %v2631 = vunpack.c.l.b16 %v703
    %v2632 = vunpack.c.h.b16 %v703
    %v2633 = vunpack.c.l.b16 %v704
    %v2634 = vunpack.c.h.b16 %v704
    %v2635 = vunpack.c.l.b16 %v705
    %v2636 = vunpack.c.h.b16 %v705
    %v2637 = vunpack.c.l.b16 %v706
    %v2638 = vunpack.c.h.b16 %v706
    %v2639 = vunpack.c.l.b16 %v707
    %v2640 = vunpack.c.h.b16 %v707
    %v2641 = vunpack.c.l.b16 %v708
    %v2642 = vunpack.c.h.b16 %v708
    %v2643 = vunpack.c.l.b16 %v709
    %v2644 = vunpack.c.h.b16 %v709
    %v2645 = vunpack.c.l.b16 %v710
    %v2646 = vunpack.c.h.b16 %v710
    %v2647 = vunpack.c.l.b16 %v711
    %v2648 = vunpack.c.h.b16 %v711
    %v2649 = vunpack.c.l.b16 %v712
    %v2650 = vunpack.c.h.b16 %v712
    %v2651 = vunpack.c.l.b16 %v713
    %v2652 = vunpack.c.h.b16 %v713
    %v2653 = vunpack.c.l.b16 %v714
    %v2654 = vunpack.c.h.b16 %v714
    %v2655 = vunpack.c.l.b16 %v715
    %v2656 = vunpack.c.h.b16 %v715
    %v2657 = vunpack.c.l.b16 %v716
    %v2658 = vunpack.c.h.b16 %v716
    %v2659 = vunpack.c.l.b16 %v717
    %v2660 = vunpack.c.h.b16 %v717
    %v2661 = vunpack.c.l.b16 %v718
    %v2662 = vunpack.c.h.b16 %v718
    %v2663 = vunpack.c.l.b16 %v719
    %v2664 = vunpack.c.h.b16 %v719
    %v2665 = vunpack.c.l.b16 %v720
    %v2666 = vunpack.c.h.b16 %v720
    %v2667 = vunpack.c.l.b16 %v721
    %v2668 = vunpack.c.h.b16 %v721
    %v2669 = vunpack.c.l.b16 %v722
    %v2670 = vunpack.c.h.b16 %v722
    %v2671 = vunpack.c.l.b16 %v723
    %v2672 = vunpack.c.h.b16 %v723
    %v2673 = vunpack.c.l.b16 %v724
    %v2674 = vunpack.c.h.b16 %v724
    %v2675 = vunpack.c.l.b16 %v725
    %v2676 = vunpack.c.h.b16 %v725
    %v2677 = vunpack.c.l.b16 %v726
    %v2678 = vunpack.c.h.b16 %v726
    %v2679 = vunpack.c.l.b16 %v727
    %v2680 = vunpack.c.h.b16 %v727
    %v2681 = vunpack.c.l.b16 %v728
    %v2682 = vunpack.c.h.b16 %v728
    %v2683 = vunpack.c.l.b16 %v729
    %v2684 = vunpack.c.h.b16 %v729
    %v2685 = vunpack.c.l.b16 %v730
    %v2686 = vunpack.c.h.b16 %v730
    %v2687 = vunpack.c.l.b16 %v731
    %v2688 = vunpack.c.h.b16 %v731
    %v2689 = vunpack.c.l.b16 %v732
    %v2690 = vunpack.c.h.b16 %v732
    %v2691 = vunpack.c.l.b16 %v733
    %v2692 = vunpack.c.h.b16 %v733
    %v2693 = vunpack.c.l.b16 %v734
    %v2694 = vunpack.c.h.b16 %v734
    %v2695 = vunpack.c.l.b16 %v735
    %v2696 = vunpack.c.h.b16 %v735
    %v2697 = vunpack.c.l.b16 %v736
    %v2698 = vunpack.c.h.b16 %v736
    %v2699 = vunpack.c.l.b16 %v737
    %v2700 = vunpack.c.h.b16 %v737
    %v2701 = vunpack.c.l.b16 %v738
    %v2702 = vunpack.c.h.b16 %v738
    %v2703 = vunpack.c.l.b16 %v739
    %v2704 = vunpack.c.h.b16 %v739
    %v2705 = vunpack.c.l.b16 %v740
    %v2706 = vunpack.c.h.b16 %v740
    %v2707 = vunpack.c.l.b16 %v741
    %v2708 = vunpack.c.h.b16 %v741
    %v2709 = vunpack.c.l.b16 %v742
    %v2710 = vunpack.c.h.b16 %v742
    %v2711 = vunpack.c.l.b16 %v743
    %v2712 = vunpack.c.h.b16 %v743
    %v2713 = vunpack.c.l.b16 %v744
    %v2714 = vunpack.c.h.b16 %v744
    %v2715 = vunpack.c.l.b16 %v745
    %v2716 = vunpack.c.h.b16 %v745
    %v2717 = vunpack.c.l.b16 %v746
    %v2718 = vunpack.c.h.b16 %v746
    %v2719 = vunpack.c.l.b16 %v747
    %v2720 = vunpack.c.h.b16 %v747
    %v2721 = vunpack.c.l.b16 %v748
    %v2722 = vunpack.c.h.b16 %v748
    %v2723 = vunpack.c.l.b16 %v749
    %v2724 = vunpack.c.h.b16 %v749
    %v2725 = vunpack.c.l.b16 %v750
    %v2726 = vunpack.c.h.b16 %v750
    %v2727 = vunpack.c.l.b16 %v751
    %v2728 = vunpack.c.h.b16 %v751
    %v2729 = vunpack.c.l.b16 %v752
    %v2730 = vunpack.c.h.b16 %v752
    %v2731 = vunpack.c.l.b16 %v753
    %v2732 = vunpack.c.h.b16 %v753
    %v2733 = vunpack.c.l.b16 %v754
    %v2734 = vunpack.c.h.b16 %v754
    %v2735 = vunpack.c.l.b16 %v755
    %v2736 = vunpack.c.h.b16 %v755
    %v2737 = vunpack.c.l.b16 %v756
    %v2738 = vunpack.c.h.b16 %v756
    %v2739 = vunpack.c.l.b16 %v757
    %v2740 = vunpack.c.h.b16 %v757
    %v2741 = vunpack.c.l.b16 %v758
    %v2742 = vunpack.c.h.b16 %v758
    %v2743 = vunpack.c.l.b16 %v759
    %v2744 = vunpack.c.h.b16 %v759
    %v2745 = vunpack.c.l.b16 %v760
    %v2746 = vunpack.c.h.b16 %v760
    %v2747 = vunpack.c.l.b16 %v761
    %v2748 = vunpack.c.h.b16 %v761
    %v2749 = vunpack.c.l.b16 %v762
    %v2750 = vunpack.c.h.b16 %v762
    %v2751 = vunpack.c.l.b16 %v763
    %v2752 = vunpack.c.h.b16 %v763
    %v2753 = vunpack.c.l.b16 %v764
    %v2754 = vunpack.c.h.b16 %v764
    %v2755 = vunpack.c.l.b16 %v765
    %v2756 = vunpack.c.h.b16 %v765
    %v2757 = vunpack.c.l.b16 %v766
    %v2758 = vunpack.c.h.b16 %v766
    %v2759 = vunpack.c.l.b16 %v767
    %v2760 = vunpack.c.h.b16 %v767
    %v2761 = vunpack.c.l.b16 %v768
    %v2762 = vunpack.c.h.b16 %v768
    %v2763 = vunpack.c.l.b16 %v769
    %v2764 = vunpack.c.h.b16 %v769
    %v2765 = vunpack.c.l.b16 %v770
    %v2766 = vunpack.c.h.b16 %v770
    %v2767 = vunpack.c.l.b16 %v771
    %v2768 = vunpack.c.h.b16 %v771
    %v2769 = vunpack.c.l.b16 %v772
    %v2770 = vunpack.c.h.b16 %v772
    %v2771 = vunpack.c.l.b16 %v773
    %v2772 = vunpack.c.h.b16 %v773
    %v2773 = vunpack.c.l.b16 %v774
    %v2774 = vunpack.c.h.b16 %v774
    %v2775 = vunpack.c.l.b16 %v775
    %v2776 = vunpack.c.h.b16 %v775
    %v2777 = vunpack.c.l.b16 %v776
    %v2778 = vunpack.c.h.b16 %v776
    %v2779 = vunpack.c.l.b16 %v777
    %v2780 = vunpack.c.h.b16 %v777
    %v2781 = vunpack.c.l.b16 %v778
    %v2782 = vunpack.c.h.b16 %v778
    %v2783 = vunpack.c.l.b16 %v779
    %v2784 = vunpack.c.h.b16 %v779
    %v2785 = vunpack.c.l.b16 %v780
    %v2786 = vunpack.c.h.b16 %v780
    %v2787 = vunpack.c.l.b16 %v781
    %v2788 = vunpack.c.h.b16 %v781
    %v2789 = vunpack.c.l.b16 %v782
    %v2790 = vunpack.c.h.b16 %v782
    %v2791 = vunpack.c.l.b16 %v783
    %v2792 = vunpack.c.h.b16 %v783
    %v2793 = vunpack.c.l.b16 %v784
    %v2794 = vunpack.c.h.b16 %v784
    %v2795 = vunpack.c.l.b16 %v785
    %v2796 = vunpack.c.h.b16 %v785
    %v2797 = vunpack.c.l.b16 %v786
    %v2798 = vunpack.c.h.b16 %v786
    %v2799 = vunpack.c.l.b16 %v787
    %v2800 = vunpack.c.h.b16 %v787
    %v2801 = vunpack.c.l.b16 %v788
    %v2802 = vunpack.c.h.b16 %v788
    %v2803 = vunpack.c.l.b16 %v789
    %v2804 = vunpack.c.h.b16 %v789
    %v2805 = vunpack.c.l.b16 %v790
    %v2806 = vunpack.c.h.b16 %v790
    %v2807 = vunpack.c.l.b16 %v791
    %v2808 = vunpack.c.h.b16 %v791
    %v2809 = vunpack.c.l.b16 %v792
    %v2810 = vunpack.c.h.b16 %v792
    %v2811 = vunpack.c.l.b16 %v793
    %v2812 = vunpack.c.h.b16 %v793
    %v2813 = vunpack.c.l.b16 %v794
    %v2814 = vunpack.c.h.b16 %v794
    %v2815 = vunpack.c.l.b16 %v795
    %v2816 = vunpack.c.h.b16 %v795
    %v2817 = vunpack.c.l.b16 %v796
    %v2818 = vunpack.c.h.b16 %v796
    %v2819 = vunpack.c.l.b16 %v797
    %v2820 = vunpack.c.h.b16 %v797
    %v2821 = vunpack.c.l.b16 %v798
    %v2822 = vunpack.c.h.b16 %v798
    %v2823 = vunpack.c.l.b16 %v799
    %v2824 = vunpack.c.h.b16 %v799
    %v2825 = vunpack.c.l.b16 %v800
    %v2826 = vunpack.c.h.b16 %v800
    %v2827 = vunpack.c.l.b16 %v801
    %v2828 = vunpack.c.h.b16 %v801
    %v2829 = vunpack.c.l.b16 %v802
    %v2830 = vunpack.c.h.b16 %v802
    %v2831 = vunpack.c.l.b16 %v803
    %v2832 = vunpack.c.h.b16 %v803
    %v2833 = vunpack.c.l.b16 %v804
    %v2834 = vunpack.c.h.b16 %v804
    %v2835 = vunpack.c.l.b16 %v805
    %v2836 = vunpack.c.h.b16 %v805
    %v2837 = vunpack.c.l.b16 %v806
    %v2838 = vunpack.c.h.b16 %v806
    %v2839 = vunpack.c.l.b16 %v807
    %v2840 = vunpack.c.h.b16 %v807
    %v2841 = vunpack.c.l.b16 %v808
    %v2842 = vunpack.c.h.b16 %v808
    %v2843 = vunpack.c.l.b16 %v809
    %v2844 = vunpack.c.h.b16 %v809
    %v2845 = vunpack.c.l.b16 %v810
    %v2846 = vunpack.c.h.b16 %v810
    %v2847 = vunpack.c.l.b16 %v811
    %v2848 = vunpack.c.h.b16 %v811
    %v2849 = vunpack.c.l.b16 %v812
    %v2850 = vunpack.c.h.b16 %v812
    %v2851 = vunpack.c.l.b16 %v813
    %v2852 = vunpack.c.h.b16 %v813
    %v2853 = vunpack.c.l.b16 %v814
    %v2854 = vunpack.c.h.b16 %v814
    %v2855 = vunpack.c.l.b16 %v815
    %v2856 = vunpack.c.h.b16 %v815
    %v2857 = vunpack.c.l.b16 %v816
    %v2858 = vunpack.c.h.b16 %v816
    %v2859 = vunpack.c.l.b16 %v817
    %v2860 = vunpack.c.h.b16 %v817
    %v2861 = vunpack.c.l.b16 %v818
    %v2862 = vunpack.c.h.b16 %v818
    %v2863 = vunpack.c.l.b16 %v819
    %v2864 = vunpack.c.h.b16 %v819
    %v2865 = vunpack.c.l.b16 %v820
    %v2866 = vunpack.c.h.b16 %v820
    %v2867 = vunpack.c.l.b16 %v821
    %v2868 = vunpack.c.h.b16 %v821
    %v2869 = vunpack.c.l.b16 %v822
    %v2870 = vunpack.c.h.b16 %v822
    %v2871 = vunpack.c.l.b16 %v823
    %v2872 = vunpack.c.h.b16 %v823
    %v2873 = vunpack.c.l.b16 %v824
    %v2874 = vunpack.c.h.b16 %v824
    %v2875 = vunpack.c.l.b16 %v825
    %v2876 = vunpack.c.h.b16 %v825
    %v2877 = vunpack.c.l.b16 %v826
    %v2878 = vunpack.c.h.b16 %v826
    %v2879 = vunpack.c.l.b16 %v827
    %v2880 = vunpack.c.h.b16 %v827
    %v2881 = vunpack.c.l.b16 %v828
    %v2882 = vunpack.c.h.b16 %v828
    %v2883 = vunpack.c.l.b16 %v829
    %v2884 = vunpack.c.h.b16 %v829
    %v2885 = vunpack.c.l.b16 %v830
    %v2886 = vunpack.c.h.b16 %v830
    %v2887 = vunpack.c.l.b16 %v831
    %v2888 = vunpack.c.h.b16 %v831
    %v2889 = vunpack.c.l.b16 %v832
    %v2890 = vunpack.c.h.b16 %v832
    %v2891 = vunpack.c.l.b16 %v833
    %v2892 = vunpack.c.h.b16 %v833
    %v2893 = vunpack.c.l.b16 %v834
    %v2894 = vunpack.c.h.b16 %v834
    %v2895 = vunpack.c.l.b16 %v835
    %v2896 = vunpack.c.h.b16 %v835
    %v2897 = vunpack.c.l.b16 %v836
    %v2898 = vunpack.c.h.b16 %v836
    %v2899 = vunpack.c.l.b16 %v837
    %v2900 = vunpack.c.h.b16 %v837
    %v2901 = vunpack.c.l.b16 %v838
    %v2902 = vunpack.c.h.b16 %v838
    %v2903 = vunpack.c.l.b16 %v839
    %v2904 = vunpack.c.h.b16 %v839
    %v2905 = vunpack.c.l.b16 %v840
    %v2906 = vunpack.c.h.b16 %v840
    %v2907 = vunpack.c.l.b16 %v841
    %v2908 = vunpack.c.h.b16 %v841
    %v2909 = vunpack.c.l.b16 %v842
    %v2910 = vunpack.c.h.b16 %v842
    %v2911 = vunpack.c.l.b16 %v843
    %v2912 = vunpack.c.h.b16 %v843
    %v2913 = vunpack.c.l.b16 %v844
    %v2914 = vunpack.c.h.b16 %v844
    %v2915 = vunpack.c.l.b16 %v845
    %v2916 = vunpack.c.h.b16 %v845
    %v2917 = vunpack.c.l.b16 %v846
    %v2918 = vunpack.c.h.b16 %v846
    %v2919 = vunpack.c.l.b16 %v847
    %v2920 = vunpack.c.h.b16 %v847
    %v2921 = vunpack.c.l.b16 %v848
    %v2922 = vunpack.c.h.b16 %v848
    %v2923 = vunpack.c.l.b16 %v849
    %v2924 = vunpack.c.h.b16 %v849
    %v2925 = vunpack.c.l.b16 %v850
    %v2926 = vunpack.c.h.b16 %v850
    %v2927 = vunpack.c.l.b16 %v851
    %v2928 = vunpack.c.h.b16 %v851
    %v2929 = vunpack.c.l.b16 %v852
    %v2930 = vunpack.c.h.b16 %v852
    %v2931 = vunpack.c.l.b16 %v853
    %v2932 = vunpack.c.h.b16 %v853
    %v2933 = vunpack.c.l.b16 %v854
    %v2934 = vunpack.c.h.b16 %v854
    %v2935 = vunpack.c.l.b16 %v855
    %v2936 = vunpack.c.h.b16 %v855
    %v2937 = vunpack.c.l.b16 %v856
    %v2938 = vunpack.c.h.b16 %v856
    %v2939 = vunpack.c.l.b16 %v857
    %v2940 = vunpack.c.h.b16 %v857
    %v2941 = vunpack.c.l.b16 %v858
    %v2942 = vunpack.c.h.b16 %v858
    %v2943 = vunpack.c.l.b16 %v859
    %v2944 = vunpack.c.h.b16 %v859
    %v2945 = vunpack.c.l.b16 %v860
    %v2946 = vunpack.c.h.b16 %v860
    %v2947 = vunpack.c.l.b16 %v861
    %v2948 = vunpack.c.h.b16 %v861
    %v2949 = vunpack.c.l.b16 %v862
    %v2950 = vunpack.c.h.b16 %v862
    %v2951 = vunpack.c.l.b16 %v863
    %v2952 = vunpack.c.h.b16 %v863
    %v2953 = vunpack.c.l.b16 %v864
    %v2954 = vunpack.c.h.b16 %v864
    %v2955 = vunpack.c.l.b16 %v865
    %v2956 = vunpack.c.h.b16 %v865
    %v2957 = vunpack.c.l.b16 %v866
    %v2958 = vunpack.c.h.b16 %v866
    %v2959 = vunpack.c.l.b16 %v867
    %v2960 = vunpack.c.h.b16 %v867
    %v2961 = vunpack.c.l.b16 %v868
    %v2962 = vunpack.c.h.b16 %v868
    %v2963 = vunpack.c.l.b16 %v869
    %v2964 = vunpack.c.h.b16 %v869
    %v2965 = vunpack.c.l.b16 %v870
    %v2966 = vunpack.c.h.b16 %v870
    %v2967 = vunpack.c.l.b16 %v871
    %v2968 = vunpack.c.h.b16 %v871
    %v2969 = vunpack.c.l.b16 %v872
    %v2970 = vunpack.c.h.b16 %v872
    %v2971 = vunpack.c.l.b16 %v873
    %v2972 = vunpack.c.h.b16 %v873
    %v2973 = vunpack.c.l.b16 %v874
    %v2974 = vunpack.c.h.b16 %v874
    %v2975 = vunpack.c.l.b16 %v875
    %v2976 = vunpack.c.h.b16 %v875
    %v2977 = vunpack.c.l.b16 %v876
    %v2978 = vunpack.c.h.b16 %v876
    %v2979 = vunpack.c.l.b16 %v877
    %v2980 = vunpack.c.h.b16 %v877
    %v2981 = vunpack.c.l.b16 %v878
    %v2982 = vunpack.c.h.b16 %v878
    %v2983 = vunpack.c.l.b16 %v879
    %v2984 = vunpack.c.h.b16 %v879
    %v2985 = vunpack.c.l.b16 %v880
    %v2986 = vunpack.c.h.b16 %v880
    %v2987 = vunpack.c.l.b16 %v881
    %v2988 = vunpack.c.h.b16 %v881
    %v2989 = vunpack.c.l.b16 %v882
    %v2990 = vunpack.c.h.b16 %v882
    %v2991 = vunpack.c.l.b16 %v883
    %v2992 = vunpack.c.h.b16 %v883
    %v2993 = vunpack.c.l.b16 %v884
    %v2994 = vunpack.c.h.b16 %v884
    %v2995 = vunpack.c.l.b16 %v885
    %v2996 = vunpack.c.h.b16 %v885
    %v2997 = vunpack.c.l.b16 %v886
    %v2998 = vunpack.c.h.b16 %v886
    %v2999 = vunpack.c.l.b16 %v887
    %v3000 = vunpack.c.h.b16 %v887
    %v3001 = vunpack.c.l.b16 %v888
    %v3002 = vunpack.c.h.b16 %v888
    %v3003 = vunpack.c.l.b16 %v889
    %v3004 = vunpack.c.h.b16 %v889
    %v3005 = vunpack.c.l.b16 %v890
    %v3006 = vunpack.c.h.b16 %v890
    %v3007 = vunpack.c.l.b16 %v891
    %v3008 = vunpack.c.h.b16 %v891
    %v3009 = vunpack.c.l.b16 %v892
    %v3010 = vunpack.c.h.b16 %v892
    %v3011 = vunpack.c.l.b16 %v893
    %v3012 = vunpack.c.h.b16 %v893
    %v3013 = vunpack.c.l.b16 %v894
    %v3014 = vunpack.c.h.b16 %v894
    %v3015 = vunpack.c.l.b16 %v895
    %v3016 = vunpack.c.h.b16 %v895
    %v3017 = vunpack.c.l.b16 %v896
    %v3018 = vunpack.c.h.b16 %v896
    %v3019 = vpack.c.b16 %v1623, %v1619
    %v3020 = vpack.c.b16 %v1624, %v1620
    %v3021 = vpack.c.b16 %v1625, %v1621
    %v3022 = vpack.c.b16 %v1626, %v1622
    %v3023 = vpack.c.b16 %v1631, %v1627
    %v3024 = vpack.c.b16 %v1632, %v1628
    %v3025 = vpack.c.b16 %v1633, %v1629
    %v3026 = vpack.c.b16 %v1634, %v1630
    %v3027 = vpack.c.b16 %v1639, %v1635
    %v3028 = vpack.c.b16 %v1640, %v1636
    %v3029 = vpack.c.b16 %v1641, %v1637
    %v3030 = vpack.c.b16 %v1642, %v1638
    %v3031 = vpack.c.b16 %v1647, %v1643
    %v3032 = vpack.c.b16 %v1648, %v1644
    %v3033 = vpack.c.b16 %v1649, %v1645
    %v3034 = vpack.c.b16 %v1650, %v1646
    %v3035 = vpack.c.b16 %v1655, %v1651
    %v3036 = vpack.c.b16 %v1656, %v1652
    %v3037 = vpack.c.b16 %v1657, %v1653
    %v3038 = vpack.c.b16 %v1658, %v1654
    %v3039 = vpack.c.b16 %v1663, %v1659
    %v3040 = vpack.c.b16 %v1664, %v1660
    %v3041 = vpack.c.b16 %v1665, %v1661
    %v3042 = vpack.c.b16 %v1666, %v1662
    %v3043 = vpack.c.b16 %v1671, %v1667
    %v3044 = vpack.c.b16 %v1672, %v1668
    %v3045 = vpack.c.b16 %v1673, %v1669
    %v3046 = vpack.c.b16 %v1674, %v1670
    %v3047 = vpack.c.b16 %v1679, %v1675
    %v3048 = vpack.c.b16 %v1680, %v1676
    %v3049 = vpack.c.b16 %v1681, %v1677
    %v3050 = vpack.c.b16 %v1682, %v1678
    %v3051 = vpack.c.b16 %v1687, %v1683
    %v3052 = vpack.c.b16 %v1688, %v1684
    %v3053 = vpack.c.b16 %v1689, %v1685
    %v3054 = vpack.c.b16 %v1690, %v1686
    %v3055 = vpack.c.b16 %v1695, %v1691
    %v3056 = vpack.c.b16 %v1696, %v1692
    %v3057 = vpack.c.b16 %v1697, %v1693
    %v3058 = vpack.c.b16 %v1698, %v1694
    %v3059 = vpack.c.b16 %v1703, %v1699
    %v3060 = vpack.c.b16 %v1704, %v1700
    %v3061 = vpack.c.b16 %v1705, %v1701
    %v3062 = vpack.c.b16 %v1706, %v1702
    %v3063 = vpack.c.b16 %v1711, %v1707
    %v3064 = vpack.c.b16 %v1712, %v1708
    %v3065 = vpack.c.b16 %v1713, %v1709
    %v3066 = vpack.c.b16 %v1714, %v1710
    %v3067 = vpack.c.b16 %v1719, %v1715
    %v3068 = vpack.c.b16 %v1720, %v1716
    %v3069 = vpack.c.b16 %v1721, %v1717
    %v3070 = vpack.c.b16 %v1722, %v1718
    %v3071 = vpack.c.b16 %v1727, %v1723
    %v3072 = vpack.c.b16 %v1728, %v1724
    %v3073 = vpack.c.b16 %v1729, %v1725
    %v3074 = vpack.c.b16 %v1730, %v1726
    %v3075 = vpack.c.b16 %v1735, %v1731
    %v3076 = vpack.c.b16 %v1736, %v1732
    %v3077 = vpack.c.b16 %v1737, %v1733
    %v3078 = vpack.c.b16 %v1738, %v1734
    %v3079 = vpack.c.b16 %v1743, %v1739
    %v3080 = vpack.c.b16 %v1744, %v1740
    %v3081 = vpack.c.b16 %v1745, %v1741
    %v3082 = vpack.c.b16 %v1746, %v1742
    %v3083 = vpack.c.b16 %v1751, %v1747
    %v3084 = vpack.c.b16 %v1752, %v1748
    %v3085 = vpack.c.b16 %v1753, %v1749
    %v3086 = vpack.c.b16 %v1754, %v1750
    %v3087 = vpack.c.b16 %v1759, %v1755
    %v3088 = vpack.c.b16 %v1760, %v1756
    %v3089 = vpack.c.b16 %v1761, %v1757
    %v3090 = vpack.c.b16 %v1762, %v1758
    %v3091 = vpack.c.b16 %v1767, %v1763
    %v3092 = vpack.c.b16 %v1768, %v1764
    %v3093 = vpack.c.b16 %v1769, %v1765
    %v3094 = vpack.c.b16 %v1770, %v1766
    %v3095 = vpack.c.b16 %v1775, %v1771
    %v3096 = vpack.c.b16 %v1776, %v1772
    %v3097 = vpack.c.b16 %v1777, %v1773
    %v3098 = vpack.c.b16 %v1778, %v1774
    %v3099 = vpack.c.b16 %v1783, %v1779
    %v3100 = vpack.c.b16 %v1784, %v1780
    %v3101 = vpack.c.b16 %v1785, %v1781
    %v3102 = vpack.c.b16 %v1786, %v1782
    %v3103 = vpack.c.b16 %v1791, %v1787
    %v3104 = vpack.c.b16 %v1792, %v1788
    %v3105 = vpack.c.b16 %v1793, %v1789
    %v3106 = vpack.c.b16 %v1794, %v1790
    %v3107 = vpack.c.b16 %v1799, %v1795
    %v3108 = vpack.c.b16 %v1800, %v1796
    %v3109 = vpack.c.b16 %v1801, %v1797
    %v3110 = vpack.c.b16 %v1802, %v1798
    %v3111 = vpack.c.b16 %v1807, %v1803
    %v3112 = vpack.c.b16 %v1808, %v1804
    %v3113 = vpack.c.b16 %v1809, %v1805
    %v3114 = vpack.c.b16 %v1810, %v1806
    %v3115 = vpack.c.b16 %v1815, %v1811
    %v3116 = vpack.c.b16 %v1816, %v1812
    %v3117 = vpack.c.b16 %v1817, %v1813
    %v3118 = vpack.c.b16 %v1818, %v1814
    %v3119 = vpack.c.b16 %v1823, %v1819
    %v3120 = vpack.c.b16 %v1824, %v1820
    %v3121 = vpack.c.b16 %v1825, %v1821
    %v3122 = vpack.c.b16 %v1826, %v1822
    %v3123 = vpack.c.b16 %v1831, %v1827
    %v3124 = vpack.c.b16 %v1832, %v1828
    %v3125 = vpack.c.b16 %v1833, %v1829
    %v3126 = vpack.c.b16 %v1834, %v1830
    %v3127 = vpack.c.b16 %v1839, %v1835
    %v3128 = vpack.c.b16 %v1840, %v1836
    %v3129 = vpack.c.b16 %v1841, %v1837
    %v3130 = vpack.c.b16 %v1842, %v1838
    %v3131 = vpack.c.b16 %v1847, %v1843
    %v3132 = vpack.c.b16 %v1848, %v1844
    %v3133 = vpack.c.b16 %v1849, %v1845
    %v3134 = vpack.c.b16 %v1850, %v1846
    %v3135 = vpack.c.b16 %v1855, %v1851
    %v3136 = vpack.c.b16 %v1856, %v1852
    %v3137 = vpack.c.b16 %v1857, %v1853
    %v3138 = vpack.c.b16 %v1858, %v1854
    %v3139 = vpack.c.b16 %v1863, %v1859
    %v3140 = vpack.c.b16 %v1864, %v1860
    %v3141 = vpack.c.b16 %v1865, %v1861
    %v3142 = vpack.c.b16 %v1866, %v1862
    %v3143 = vpack.c.b16 %v1871, %v1867
    %v3144 = vpack.c.b16 %v1872, %v1868
    %v3145 = vpack.c.b16 %v1873, %v1869
    %v3146 = vpack.c.b16 %v1874, %v1870
    %v3147 = vpack.c.b16 %v1879, %v1875
    %v3148 = vpack.c.b16 %v1880, %v1876
    %v3149 = vpack.c.b16 %v1881, %v1877
    %v3150 = vpack.c.b16 %v1882, %v1878
    %v3151 = vpack.c.b16 %v1887, %v1883
    %v3152 = vpack.c.b16 %v1888, %v1884
    %v3153 = vpack.c.b16 %v1889, %v1885
    %v3154 = vpack.c.b16 %v1890, %v1886
    %v3155 = vpack.c.b16 %v1895, %v1891
    %v3156 = vpack.c.b16 %v1896, %v1892
    %v3157 = vpack.c.b16 %v1897, %v1893
    %v3158 = vpack.c.b16 %v1898, %v1894
    %v3159 = vpack.c.b16 %v1903, %v1899
    %v3160 = vpack.c.b16 %v1904, %v1900
    %v3161 = vpack.c.b16 %v1905, %v1901
    %v3162 = vpack.c.b16 %v1906, %v1902
    %v3163 = vpack.c.b16 %v1911, %v1907
    %v3164 = vpack.c.b16 %v1912, %v1908
    %v3165 = vpack.c.b16 %v1913, %v1909
    %v3166 = vpack.c.b16 %v1914, %v1910
    %v3167 = vpack.c.b16 %v1919, %v1915
    %v3168 = vpack.c.b16 %v1920, %v1916
    %v3169 = vpack.c.b16 %v1921, %v1917
    %v3170 = vpack.c.b16 %v1922, %v1918
    %v3171 = vpack.c.b16 %v1927, %v1923
    %v3172 = vpack.c.b16 %v1928, %v1924
    %v3173 = vpack.c.b16 %v1929, %v1925
    %v3174 = vpack.c.b16 %v1930, %v1926
    %v3175 = vpack.c.b16 %v1935, %v1931
    %v3176 = vpack.c.b16 %v1936, %v1932
    %v3177 = vpack.c.b16 %v1937, %v1933
    %v3178 = vpack.c.b16 %v1938, %v1934
    %v3179 = vpack.c.b16 %v1943, %v1939
    %v3180 = vpack.c.b16 %v1944, %v1940
    %v3181 = vpack.c.b16 %v1945, %v1941
    %v3182 = vpack.c.b16 %v1946, %v1942
    %v3183 = vpack.c.b16 %v1951, %v1947
    %v3184 = vpack.c.b16 %v1952, %v1948
    %v3185 = vpack.c.b16 %v1953, %v1949
    %v3186 = vpack.c.b16 %v1954, %v1950
    %v3187 = vpack.c.b16 %v1959, %v1955
    %v3188 = vpack.c.b16 %v1960, %v1956
    %v3189 = vpack.c.b16 %v1961, %v1957
    %v3190 = vpack.c.b16 %v1962, %v1958
    %v3191 = vpack.c.b16 %v1967, %v1963
    %v3192 = vpack.c.b16 %v1968, %v1964
    %v3193 = vpack.c.b16 %v1969, %v1965
    %v3194 = vpack.c.b16 %v1970, %v1966
    %v3195 = vpack.c.b16 %v1975, %v1971
    %v3196 = vpack.c.b16 %v1976, %v1972
    %v3197 = vpack.c.b16 %v1977, %v1973
    %v3198 = vpack.c.b16 %v1978, %v1974
    %v3199 = vpack.c.b16 %v1983, %v1979
    %v3200 = vpack.c.b16 %v1984, %v1980
    %v3201 = vpack.c.b16 %v1985, %v1981
    %v3202 = vpack.c.b16 %v1986, %v1982
    %v3203 = vpack.c.b16 %v1991, %v1987
    %v3204 = vpack.c.b16 %v1992, %v1988
    %v3205 = vpack.c.b16 %v1993, %v1989
    %v3206 = vpack.c.b16 %v1994, %v1990
    %v3207 = vpack.c.b16 %v1999, %v1995
    %v3208 = vpack.c.b16 %v2000, %v1996
    %v3209 = vpack.c.b16 %v2001, %v1997
    %v3210 = vpack.c.b16 %v2002, %v1998
    %v3211 = vpack.c.b16 %v2007, %v2003
    %v3212 = vpack.c.b16 %v2008, %v2004
    %v3213 = vpack.c.b16 %v2009, %v2005
    %v3214 = vpack.c.b16 %v2010, %v2006
    %v3215 = vpack.c.b16 %v2015, %v2011
    %v3216 = vpack.c.b16 %v2016, %v2012
    %v3217 = vpack.c.b16 %v2017, %v2013
    %v3218 = vpack.c.b16 %v2018, %v2014
    %v3219 = vpack.c.b16 %v2023, %v2019
    %v3220 = vpack.c.b16 %v2024, %v2020
    %v3221 = vpack.c.b16 %v2025, %v2021
    %v3222 = vpack.c.b16 %v2026, %v2022
    %v3223 = vpack.c.b16 %v2031, %v2027
    %v3224 = vpack.c.b16 %v2032, %v2028
    %v3225 = vpack.c.b16 %v2033, %v2029
    %v3226 = vpack.c.b16 %v2034, %v2030
    %v3227 = vpack.c.b16 %v2039, %v2035
    %v3228 = vpack.c.b16 %v2040, %v2036
    %v3229 = vpack.c.b16 %v2041, %v2037
    %v3230 = vpack.c.b16 %v2042, %v2038
    %v3231 = vpack.c.b16 %v2047, %v2043
    %v3232 = vpack.c.b16 %v2048, %v2044
    %v3233 = vpack.c.b16 %v2049, %v2045
    %v3234 = vpack.c.b16 %v2050, %v2046
    %v3235 = vpack.c.b16 %v2055, %v2051
    %v3236 = vpack.c.b16 %v2056, %v2052
    %v3237 = vpack.c.b16 %v2057, %v2053
    %v3238 = vpack.c.b16 %v2058, %v2054
    %v3239 = vpack.c.b16 %v2063, %v2059
    %v3240 = vpack.c.b16 %v2064, %v2060
    %v3241 = vpack.c.b16 %v2065, %v2061
    %v3242 = vpack.c.b16 %v2066, %v2062
    %v3243 = vpack.c.b16 %v2071, %v2067
    %v3244 = vpack.c.b16 %v2072, %v2068
    %v3245 = vpack.c.b16 %v2073, %v2069
    %v3246 = vpack.c.b16 %v2074, %v2070
    %v3247 = vpack.c.b16 %v2079, %v2075
    %v3248 = vpack.c.b16 %v2080, %v2076
    %v3249 = vpack.c.b16 %v2081, %v2077
    %v3250 = vpack.c.b16 %v2082, %v2078
    %v3251 = vpack.c.b16 %v2087, %v2083
    %v3252 = vpack.c.b16 %v2088, %v2084
    %v3253 = vpack.c.b16 %v2089, %v2085
    %v3254 = vpack.c.b16 %v2090, %v2086
    %v3255 = vpack.c.b16 %v2095, %v2091
    %v3256 = vpack.c.b16 %v2096, %v2092
    %v3257 = vpack.c.b16 %v2097, %v2093
    %v3258 = vpack.c.b16 %v2098, %v2094
    %v3259 = vpack.c.b16 %v2103, %v2099
    %v3260 = vpack.c.b16 %v2104, %v2100
    %v3261 = vpack.c.b16 %v2105, %v2101
    %v3262 = vpack.c.b16 %v2106, %v2102
    %v3263 = vpack.c.b16 %v2111, %v2107
    %v3264 = vpack.c.b16 %v2112, %v2108
    %v3265 = vpack.c.b16 %v2113, %v2109
    %v3266 = vpack.c.b16 %v2114, %v2110
    %v3267 = vpack.c.b16 %v2119, %v2115
    %v3268 = vpack.c.b16 %v2120, %v2116
    %v3269 = vpack.c.b16 %v2121, %v2117
    %v3270 = vpack.c.b16 %v2122, %v2118
    %v3271 = vpack.c.b16 %v2127, %v2123
    %v3272 = vpack.c.b16 %v2128, %v2124
    %v3273 = vpack.c.b16 %v2129, %v2125
    %v3274 = vpack.c.b16 %v2130, %v2126
    %v3275 = vpack.c.b16 %v2135, %v2131
    %v3276 = vpack.c.b16 %v2136, %v2132
    %v3277 = vpack.c.b16 %v2137, %v2133
    %v3278 = vpack.c.b16 %v2138, %v2134
    %v3279 = vpack.c.b16 %v2143, %v2139
    %v3280 = vpack.c.b16 %v2144, %v2140
    %v3281 = vpack.c.b16 %v2145, %v2141
    %v3282 = vpack.c.b16 %v2146, %v2142
    %v3283 = vpack.c.b16 %v2151, %v2147
    %v3284 = vpack.c.b16 %v2152, %v2148
    %v3285 = vpack.c.b16 %v2153, %v2149
    %v3286 = vpack.c.b16 %v2154, %v2150
    %v3287 = vpack.c.b16 %v2159, %v2155
    %v3288 = vpack.c.b16 %v2160, %v2156
    %v3289 = vpack.c.b16 %v2161, %v2157
    %v3290 = vpack.c.b16 %v2162, %v2158
    %v3291 = vpack.c.b16 %v2167, %v2163
    %v3292 = vpack.c.b16 %v2168, %v2164
    %v3293 = vpack.c.b16 %v2169, %v2165
    %v3294 = vpack.c.b16 %v2170, %v2166
    %v3295 = vpack.c.b16 %v2175, %v2171
    %v3296 = vpack.c.b16 %v2176, %v2172
    %v3297 = vpack.c.b16 %v2177, %v2173
    %v3298 = vpack.c.b16 %v2178, %v2174
    %v3299 = vpack.c.b16 %v2183, %v2179
    %v3300 = vpack.c.b16 %v2184, %v2180
    %v3301 = vpack.c.b16 %v2185, %v2181
    %v3302 = vpack.c.b16 %v2186, %v2182
    %v3303 = vpack.c.b16 %v2191, %v2187
    %v3304 = vpack.c.b16 %v2192, %v2188
    %v3305 = vpack.c.b16 %v2193, %v2189
    %v3306 = vpack.c.b16 %v2194, %v2190
    %v3307 = vpack.c.b16 %v2199, %v2195
    %v3308 = vpack.c.b16 %v2200, %v2196
    %v3309 = vpack.c.b16 %v2201, %v2197
    %v3310 = vpack.c.b16 %v2202, %v2198
    %v3311 = vpack.c.b16 %v2207, %v2203
    %v3312 = vpack.c.b16 %v2208, %v2204
    %v3313 = vpack.c.b16 %v2209, %v2205
    %v3314 = vpack.c.b16 %v2210, %v2206
    %v3315 = vpack.c.b16 %v2215, %v2211
    %v3316 = vpack.c.b16 %v2216, %v2212
    %v3317 = vpack.c.b16 %v2217, %v2213
    %v3318 = vpack.c.b16 %v2218, %v2214
    %v3319 = vpack.c.b16 %v2223, %v2219
    %v3320 = vpack.c.b16 %v2224, %v2220
    %v3321 = vpack.c.b16 %v2225, %v2221
    %v3322 = vpack.c.b16 %v2226, %v2222
    %v3323 = vpack.c.b16 %v2231, %v2227
    %v3324 = vpack.c.b16 %v2232, %v2228
    %v3325 = vpack.c.b16 %v2233, %v2229
    %v3326 = vpack.c.b16 %v2234, %v2230
    %v3327 = vpack.c.b16 %v2239, %v2235
    %v3328 = vpack.c.b16 %v2240, %v2236
    %v3329 = vpack.c.b16 %v2241, %v2237
    %v3330 = vpack.c.b16 %v2242, %v2238
    %v3331 = vpack.c.b16 %v2247, %v2243
    %v3332 = vpack.c.b16 %v2248, %v2244
    %v3333 = vpack.c.b16 %v2249, %v2245
    %v3334 = vpack.c.b16 %v2250, %v2246
    %v3335 = vpack.c.b16 %v2255, %v2251
    %v3336 = vpack.c.b16 %v2256, %v2252
    %v3337 = vpack.c.b16 %v2257, %v2253
    %v3338 = vpack.c.b16 %v2258, %v2254
    %v3339 = vpack.c.b16 %v2263, %v2259
    %v3340 = vpack.c.b16 %v2264, %v2260
    %v3341 = vpack.c.b16 %v2265, %v2261
    %v3342 = vpack.c.b16 %v2266, %v2262
    %v3343 = vpack.c.b16 %v2271, %v2267
    %v3344 = vpack.c.b16 %v2272, %v2268
    %v3345 = vpack.c.b16 %v2273, %v2269
    %v3346 = vpack.c.b16 %v2274, %v2270
    %v3347 = vpack.c.b16 %v2279, %v2275
    %v3348 = vpack.c.b16 %v2280, %v2276
    %v3349 = vpack.c.b16 %v2281, %v2277
    %v3350 = vpack.c.b16 %v2282, %v2278
    %v3351 = vpack.c.b16 %v2287, %v2283
    %v3352 = vpack.c.b16 %v2288, %v2284
    %v3353 = vpack.c.b16 %v2289, %v2285
    %v3354 = vpack.c.b16 %v2290, %v2286
    %v3355 = vpack.c.b16 %v2295, %v2291
    %v3356 = vpack.c.b16 %v2296, %v2292
    %v3357 = vpack.c.b16 %v2297, %v2293
    %v3358 = vpack.c.b16 %v2298, %v2294
    %v3359 = vpack.c.b16 %v2303, %v2299
    %v3360 = vpack.c.b16 %v2304, %v2300
    %v3361 = vpack.c.b16 %v2305, %v2301
    %v3362 = vpack.c.b16 %v2306, %v2302
    %v3363 = vpack.c.b16 %v2311, %v2307
    %v3364 = vpack.c.b16 %v2312, %v2308
    %v3365 = vpack.c.b16 %v2313, %v2309
    %v3366 = vpack.c.b16 %v2314, %v2310
    %v3367 = vpack.c.b16 %v2319, %v2315
    %v3368 = vpack.c.b16 %v2320, %v2316
    %v3369 = vpack.c.b16 %v2321, %v2317
    %v3370 = vpack.c.b16 %v2322, %v2318
    %v3371 = vpack.c.b16 %v2327, %v2323
    %v3372 = vpack.c.b16 %v2328, %v2324
    %v3373 = vpack.c.b16 %v2329, %v2325
    %v3374 = vpack.c.b16 %v2330, %v2326
    %v3375 = vpack.c.b16 %v2335, %v2331
    %v3376 = vpack.c.b16 %v2336, %v2332
    %v3377 = vpack.c.b16 %v2337, %v2333
    %v3378 = vpack.c.b16 %v2338, %v2334
    %v3379 = vpack.c.b16 %v2343, %v2339
    %v3380 = vpack.c.b16 %v2344, %v2340
    %v3381 = vpack.c.b16 %v2345, %v2341
    %v3382 = vpack.c.b16 %v2346, %v2342
    %v3383 = vpack.c.b16 %v2351, %v2347
    %v3384 = vpack.c.b16 %v2352, %v2348
    %v3385 = vpack.c.b16 %v2353, %v2349
    %v3386 = vpack.c.b16 %v2354, %v2350
    %v3387 = vpack.c.b16 %v2359, %v2355
    %v3388 = vpack.c.b16 %v2360, %v2356
    %v3389 = vpack.c.b16 %v2361, %v2357
    %v3390 = vpack.c.b16 %v2362, %v2358
    %v3391 = vpack.c.b16 %v2367, %v2363
    %v3392 = vpack.c.b16 %v2368, %v2364
    %v3393 = vpack.c.b16 %v2369, %v2365
    %v3394 = vpack.c.b16 %v2370, %v2366
    %v3395 = vpack.c.b16 %v2375, %v2371
    %v3396 = vpack.c.b16 %v2376, %v2372
    %v3397 = vpack.c.b16 %v2377, %v2373
    %v3398 = vpack.c.b16 %v2378, %v2374
    %v3399 = vpack.c.b16 %v2383, %v2379
    %v3400 = vpack.c.b16 %v2384, %v2380
    %v3401 = vpack.c.b16 %v2385, %v2381
    %v3402 = vpack.c.b16 %v2386, %v2382
    %v3403 = vpack.c.b16 %v2391, %v2387
    %v3404 = vpack.c.b16 %v2392, %v2388
    %v3405 = vpack.c.b16 %v2393, %v2389
    %v3406 = vpack.c.b16 %v2394, %v2390
    %v3407 = vpack.c.b16 %v2399, %v2395
    %v3408 = vpack.c.b16 %v2400, %v2396
    %v3409 = vpack.c.b16 %v2401, %v2397
    %v3410 = vpack.c.b16 %v2402, %v2398
    %v3411 = vpack.c.b16 %v2407, %v2403
    %v3412 = vpack.c.b16 %v2408, %v2404
    %v3413 = vpack.c.b16 %v2409, %v2405
    %v3414 = vpack.c.b16 %v2410, %v2406
    %v3415 = vpack.c.b16 %v2415, %v2411
    %v3416 = vpack.c.b16 %v2416, %v2412
    %v3417 = vpack.c.b16 %v2417, %v2413
    %v3418 = vpack.c.b16 %v2418, %v2414
    %v3419 = vpack.c.b16 %v2423, %v2419
    %v3420 = vpack.c.b16 %v2424, %v2420
    %v3421 = vpack.c.b16 %v2425, %v2421
    %v3422 = vpack.c.b16 %v2426, %v2422
    %v3423 = vpack.c.b16 %v2431, %v2427
    %v3424 = vpack.c.b16 %v2432, %v2428
    %v3425 = vpack.c.b16 %v2433, %v2429
    %v3426 = vpack.c.b16 %v2434, %v2430
    %v3427 = vpack.c.b16 %v2439, %v2435
    %v3428 = vpack.c.b16 %v2440, %v2436
    %v3429 = vpack.c.b16 %v2441, %v2437
    %v3430 = vpack.c.b16 %v2442, %v2438
    %v3431 = vpack.c.b16 %v2447, %v2443
    %v3432 = vpack.c.b16 %v2448, %v2444
    %v3433 = vpack.c.b16 %v2449, %v2445
    %v3434 = vpack.c.b16 %v2450, %v2446
    %v3435 = vpack.c.b16 %v2455, %v2451
    %v3436 = vpack.c.b16 %v2456, %v2452
    %v3437 = vpack.c.b16 %v2457, %v2453
    %v3438 = vpack.c.b16 %v2458, %v2454
    %v3439 = vpack.c.b16 %v2463, %v2459
    %v3440 = vpack.c.b16 %v2464, %v2460
    %v3441 = vpack.c.b16 %v2465, %v2461
    %v3442 = vpack.c.b16 %v2466, %v2462
    %v3443 = vpack.c.b16 %v2471, %v2467
    %v3444 = vpack.c.b16 %v2472, %v2468
    %v3445 = vpack.c.b16 %v2473, %v2469
    %v3446 = vpack.c.b16 %v2474, %v2470
    %v3447 = vpack.c.b16 %v2479, %v2475
    %v3448 = vpack.c.b16 %v2480, %v2476
    %v3449 = vpack.c.b16 %v2481, %v2477
    %v3450 = vpack.c.b16 %v2482, %v2478
    %v3451 = vpack.c.b16 %v2487, %v2483
    %v3452 = vpack.c.b16 %v2488, %v2484
    %v3453 = vpack.c.b16 %v2489, %v2485
    %v3454 = vpack.c.b16 %v2490, %v2486
    %v3455 = vpack.c.b16 %v2495, %v2491
    %v3456 = vpack.c.b16 %v2496, %v2492
    %v3457 = vpack.c.b16 %v2497, %v2493
    %v3458 = vpack.c.b16 %v2498, %v2494
    %v3459 = vpack.c.b16 %v2503, %v2499
    %v3460 = vpack.c.b16 %v2504, %v2500
    %v3461 = vpack.c.b16 %v2505, %v2501
    %v3462 = vpack.c.b16 %v2506, %v2502
    %v3463 = vpack.c.b16 %v2511, %v2507
    %v3464 = vpack.c.b16 %v2512, %v2508
    %v3465 = vpack.c.b16 %v2513, %v2509
    %v3466 = vpack.c.b16 %v2514, %v2510
    %v3467 = vpack.c.b16 %v2519, %v2515
    %v3468 = vpack.c.b16 %v2520, %v2516
    %v3469 = vpack.c.b16 %v2521, %v2517
    %v3470 = vpack.c.b16 %v2522, %v2518
    %v3471 = vpack.c.b16 %v2527, %v2523
    %v3472 = vpack.c.b16 %v2528, %v2524
    %v3473 = vpack.c.b16 %v2529, %v2525
    %v3474 = vpack.c.b16 %v2530, %v2526
    %v3475 = vpack.c.b16 %v2535, %v2531
    %v3476 = vpack.c.b16 %v2536, %v2532
    %v3477 = vpack.c.b16 %v2537, %v2533
    %v3478 = vpack.c.b16 %v2538, %v2534
    %v3479 = vpack.c.b16 %v2543, %v2539
    %v3480 = vpack.c.b16 %v2544, %v2540
    %v3481 = vpack.c.b16 %v2545, %v2541
    %v3482 = vpack.c.b16 %v2546, %v2542
    %v3483 = vpack.c.b16 %v2551, %v2547
    %v3484 = vpack.c.b16 %v2552, %v2548
    %v3485 = vpack.c.b16 %v2553, %v2549
    %v3486 = vpack.c.b16 %v2554, %v2550
    %v3487 = vpack.c.b16 %v2559, %v2555
    %v3488 = vpack.c.b16 %v2560, %v2556
    %v3489 = vpack.c.b16 %v2561, %v2557
    %v3490 = vpack.c.b16 %v2562, %v2558
    %v3491 = vpack.c.b16 %v2567, %v2563
    %v3492 = vpack.c.b16 %v2568, %v2564
    %v3493 = vpack.c.b16 %v2569, %v2565
    %v3494 = vpack.c.b16 %v2570, %v2566
    %v3495 = vpack.c.b16 %v2575, %v2571
    %v3496 = vpack.c.b16 %v2576, %v2572
    %v3497 = vpack.c.b16 %v2577, %v2573
    %v3498 = vpack.c.b16 %v2578, %v2574
    %v3499 = vpack.c.b16 %v2583, %v2579
    %v3500 = vpack.c.b16 %v2584, %v2580
    %v3501 = vpack.c.b16 %v2585, %v2581
    %v3502 = vpack.c.b16 %v2586, %v2582
    %v3503 = vpack.c.b16 %v2591, %v2587
    %v3504 = vpack.c.b16 %v2592, %v2588
    %v3505 = vpack.c.b16 %v2593, %v2589
    %v3506 = vpack.c.b16 %v2594, %v2590
    %v3507 = vpack.c.b16 %v2599, %v2595
    %v3508 = vpack.c.b16 %v2600, %v2596
    %v3509 = vpack.c.b16 %v2601, %v2597
    %v3510 = vpack.c.b16 %v2602, %v2598
    %v3511 = vpack.c.b16 %v2607, %v2603
    %v3512 = vpack.c.b16 %v2608, %v2604
    %v3513 = vpack.c.b16 %v2609, %v2605
    %v3514 = vpack.c.b16 %v2610, %v2606
    %v3515 = vpack.c.b16 %v2615, %v2611
    %v3516 = vpack.c.b16 %v2616, %v2612
    %v3517 = vpack.c.b16 %v2617, %v2613
    %v3518 = vpack.c.b16 %v2618, %v2614
    %v3519 = vpack.c.b16 %v2623, %v2619
    %v3520 = vpack.c.b16 %v2624, %v2620
    %v3521 = vpack.c.b16 %v2625, %v2621
    %v3522 = vpack.c.b16 %v2626, %v2622
    %v3523 = vpack.c.b16 %v2631, %v2627
    %v3524 = vpack.c.b16 %v2632, %v2628
    %v3525 = vpack.c.b16 %v2633, %v2629
    %v3526 = vpack.c.b16 %v2634, %v2630
    %v3527 = vpack.c.b16 %v2639, %v2635
    %v3528 = vpack.c.b16 %v2640, %v2636
    %v3529 = vpack.c.b16 %v2641, %v2637
    %v3530 = vpack.c.b16 %v2642, %v2638
    %v3531 = vpack.c.b16 %v2647, %v2643
    %v3532 = vpack.c.b16 %v2648, %v2644
    %v3533 = vpack.c.b16 %v2649, %v2645
    %v3534 = vpack.c.b16 %v2650, %v2646
    %v3535 = vpack.c.b16 %v2655, %v2651
    %v3536 = vpack.c.b16 %v2656, %v2652
    %v3537 = vpack.c.b16 %v2657, %v2653
    %v3538 = vpack.c.b16 %v2658, %v2654
    %v3539 = vpack.c.b16 %v2663, %v2659
    %v3540 = vpack.c.b16 %v2664, %v2660
    %v3541 = vpack.c.b16 %v2665, %v2661
    %v3542 = vpack.c.b16 %v2666, %v2662
    %v3543 = vpack.c.b16 %v2671, %v2667
    %v3544 = vpack.c.b16 %v2672, %v2668
    %v3545 = vpack.c.b16 %v2673, %v2669
    %v3546 = vpack.c.b16 %v2674, %v2670
    %v3547 = vpack.c.b16 %v2679, %v2675
    %v3548 = vpack.c.b16 %v2680, %v2676
    %v3549 = vpack.c.b16 %v2681, %v2677
    %v3550 = vpack.c.b16 %v2682, %v2678
    %v3551 = vpack.c.b16 %v2687, %v2683
    %v3552 = vpack.c.b16 %v2688, %v2684
    %v3553 = vpack.c.b16 %v2689, %v2685
    %v3554 = vpack.c.b16 %v2690, %v2686
    %v3555 = vpack.c.b16 %v2695, %v2691
    %v3556 = vpack.c.b16 %v2696, %v2692
    %v3557 = vpack.c.b16 %v2697, %v2693
    %v3558 = vpack.c.b16 %v2698, %v2694
    %v3559 = vpack.c.b16 %v2703, %v2699
    %v3560 = vpack.c.b16 %v2704, %v2700
    %v3561 = vpack.c.b16 %v2705, %v2701
    %v3562 = vpack.c.b16 %v2706, %v2702
    %v3563 = vpack.c.b16 %v2711, %v2707
    %v3564 = vpack.c.b16 %v2712, %v2708
    %v3565 = vpack.c.b16 %v2713, %v2709
    %v3566 = vpack.c.b16 %v2714, %v2710
    %v3567 = vpack.c.b16 %v2719, %v2715
    %v3568 = vpack.c.b16 %v2720, %v2716
    %v3569 = vpack.c.b16 %v2721, %v2717
    %v3570 = vpack.c.b16 %v2722, %v2718
    %v3571 = vpack.c.b16 %v2727, %v2723
    %v3572 = vpack.c.b16 %v2728, %v2724
    %v3573 = vpack.c.b16 %v2729, %v2725
    %v3574 = vpack.c.b16 %v2730, %v2726
    %v3575 = vpack.c.b16 %v2735, %v2731
    %v3576 = vpack.c.b16 %v2736, %v2732
    %v3577 = vpack.c.b16 %v2737, %v2733
    %v3578 = vpack.c.b16 %v2738, %v2734
    %v3579 = vpack.c.b16 %v2743, %v2739
    %v3580 = vpack.c.b16 %v2744, %v2740
    %v3581 = vpack.c.b16 %v2745, %v2741
    %v3582 = vpack.c.b16 %v2746, %v2742
    %v3583 = vpack.c.b16 %v2751, %v2747
    %v3584 = vpack.c.b16 %v2752, %v2748
    %v3585 = vpack.c.b16 %v2753, %v2749
    %v3586 = vpack.c.b16 %v2754, %v2750
    %v3587 = vpack.c.b16 %v2759, %v2755
    %v3588 = vpack.c.b16 %v2760, %v2756
    %v3589 = vpack.c.b16 %v2761, %v2757
    %v3590 = vpack.c.b16 %v2762, %v2758
    %v3591 = vpack.c.b16 %v2767, %v2763
    %v3592 = vpack.c.b16 %v2768, %v2764
    %v3593 = vpack.c.b16 %v2769, %v2765
    %v3594 = vpack.c.b16 %v2770, %v2766
    %v3595 = vpack.c.b16 %v2775, %v2771
    %v3596 = vpack.c.b16 %v2776, %v2772
    %v3597 = vpack.c.b16 %v2777, %v2773
    %v3598 = vpack.c.b16 %v2778, %v2774
    %v3599 = vpack.c.b16 %v2783, %v2779
    %v3600 = vpack.c.b16 %v2784, %v2780
    %v3601 = vpack.c.b16 %v2785, %v2781
    %v3602 = vpack.c.b16 %v2786, %v2782
    %v3603 = vpack.c.b16 %v2791, %v2787
    %v3604 = vpack.c.b16 %v2792, %v2788
    %v3605 = vpack.c.b16 %v2793, %v2789
    %v3606 = vpack.c.b16 %v2794, %v2790
    %v3607 = vpack.c.b16 %v2799, %v2795
    %v3608 = vpack.c.b16 %v2800, %v2796
    %v3609 = vpack.c.b16 %v2801, %v2797
    %v3610 = vpack.c.b16 %v2802, %v2798
    %v3611 = vpack.c.b16 %v2807, %v2803
    %v3612 = vpack.c.b16 %v2808, %v2804
    %v3613 = vpack.c.b16 %v2809, %v2805
    %v3614 = vpack.c.b16 %v2810, %v2806
    %v3615 = vpack.c.b16 %v2815, %v2811
    %v3616 = vpack.c.b16 %v2816, %v2812
    %v3617 = vpack.c.b16 %v2817, %v2813
    %v3618 = vpack.c.b16 %v2818, %v2814
    %v3619 = vpack.c.b16 %v2823, %v2819
    %v3620 = vpack.c.b16 %v2824, %v2820
    %v3621 = vpack.c.b16 %v2825, %v2821
    %v3622 = vpack.c.b16 %v2826, %v2822
    %v3623 = vpack.c.b16 %v2831, %v2827
    %v3624 = vpack.c.b16 %v2832, %v2828
    %v3625 = vpack.c.b16 %v2833, %v2829
    %v3626 = vpack.c.b16 %v2834, %v2830
    %v3627 = vpack.c.b16 %v2839, %v2835
    %v3628 = vpack.c.b16 %v2840, %v2836
    %v3629 = vpack.c.b16 %v2841, %v2837
    %v3630 = vpack.c.b16 %v2842, %v2838
    %v3631 = vpack.c.b16 %v2847, %v2843
    %v3632 = vpack.c.b16 %v2848, %v2844
    %v3633 = vpack.c.b16 %v2849, %v2845
    %v3634 = vpack.c.b16 %v2850, %v2846
    %v3635 = vpack.c.b16 %v2855, %v2851
    %v3636 = vpack.c.b16 %v2856, %v2852
    %v3637 = vpack.c.b16 %v2857, %v2853
    %v3638 = vpack.c.b16 %v2858, %v2854
    %v3639 = vpack.c.b16 %v2863, %v2859
    %v3640 = vpack.c.b16 %v2864, %v2860
    %v3641 = vpack.c.b16 %v2865, %v2861
    %v3642 = vpack.c.b16 %v2866, %v2862
    %v3643 = vpack.c.b16 %v2871, %v2867
    %v3644 = vpack.c.b16 %v2872, %v2868
    %v3645 = vpack.c.b16 %v2873, %v2869
    %v3646 = vpack.c.b16 %v2874, %v2870
    %v3647 = vpack.c.b16 %v2879, %v2875
    %v3648 = vpack.c.b16 %v2880, %v2876
    %v3649 = vpack.c.b16 %v2881, %v2877
    %v3650 = vpack.c.b16 %v2882, %v2878
    %v3651 = vpack.c.b16 %v2887, %v2883
    %v3652 = vpack.c.b16 %v2888, %v2884
    %v3653 = vpack.c.b16 %v2889, %v2885
    %v3654 = vpack.c.b16 %v2890, %v2886
    %v3655 = vpack.c.b16 %v2895, %v2891
    %v3656 = vpack.c.b16 %v2896, %v2892
    %v3657 = vpack.c.b16 %v2897, %v2893
    %v3658 = vpack.c.b16 %v2898, %v2894
    %v3659 = vpack.c.b16 %v2903, %v2899
    %v3660 = vpack.c.b16 %v2904, %v2900
    %v3661 = vpack.c.b16 %v2905, %v2901
    %v3662 = vpack.c.b16 %v2906, %v2902
    %v3663 = vpack.c.b16 %v2911, %v2907
    %v3664 = vpack.c.b16 %v2912, %v2908
    %v3665 = vpack.c.b16 %v2913, %v2909
    %v3666 = vpack.c.b16 %v2914, %v2910
    %v3667 = vpack.c.b16 %v2919, %v2915
    %v3668 = vpack.c.b16 %v2920, %v2916
    %v3669 = vpack.c.b16 %v2921, %v2917
    %v3670 = vpack.c.b16 %v2922, %v2918
    %v3671 = vpack.c.b16 %v2927, %v2923
    %v3672 = vpack.c.b16 %v2928, %v2924
    %v3673 = vpack.c.b16 %v2929, %v2925
    %v3674 = vpack.c.b16 %v2930, %v2926
    %v3675 = vpack.c.b16 %v2935, %v2931
    %v3676 = vpack.c.b16 %v2936, %v2932
    %v3677 = vpack.c.b16 %v2937, %v2933
    %v3678 = vpack.c.b16 %v2938, %v2934
    %v3679 = vpack.c.b16 %v2943, %v2939
    %v3680 = vpack.c.b16 %v2944, %v2940
    %v3681 = vpack.c.b16 %v2945, %v2941
    %v3682 = vpack.c.b16 %v2946, %v2942
    %v3683 = vpack.c.b16 %v2951, %v2947
    %v3684 = vpack.c.b16 %v2952, %v2948
    %v3685 = vpack.c.b16 %v2953, %v2949
    %v3686 = vpack.c.b16 %v2954, %v2950
    %v3687 = vpack.c.b16 %v2959, %v2955
    %v3688 = vpack.c.b16 %v2960, %v2956
    %v3689 = vpack.c.b16 %v2961, %v2957
    %v3690 = vpack.c.b16 %v2962, %v2958
    %v3691 = vpack.c.b16 %v2967, %v2963
    %v3692 = vpack.c.b16 %v2968, %v2964
    %v3693 = vpack.c.b16 %v2969, %v2965
    %v3694 = vpack.c.b16 %v2970, %v2966
    %v3695 = vpack.c.b16 %v2975, %v2971
    %v3696 = vpack.c.b16 %v2976, %v2972
    %v3697 = vpack.c.b16 %v2977, %v2973
    %v3698 = vpack.c.b16 %v2978, %v2974
    %v3699 = vpack.c.b16 %v2983, %v2979
    %v3700 = vpack.c.b16 %v2984, %v2980
    %v3701 = vpack.c.b16 %v2985, %v2981
    %v3702 = vpack.c.b16 %v2986, %v2982
    %v3703 = vpack.c.b16 %v2991, %v2987
    %v3704 = vpack.c.b16 %v2992, %v2988
    %v3705 = vpack.c.b16 %v2993, %v2989
    %v3706 = vpack.c.b16 %v2994, %v2990
    %v3707 = vpack.c.b16 %v2999, %v2995
    %v3708 = vpack.c.b16 %v3000, %v2996
    %v3709 = vpack.c.b16 %v3001, %v2997
    %v3710 = vpack.c.b16 %v3002, %v2998
    %v3711 = vpack.c.b16 %v3007, %v3003
    %v3712 = vpack.c.b16 %v3008, %v3004
    %v3713 = vpack.c.b16 %v3009, %v3005
    %v3714 = vpack.c.b16 %v3010, %v3006
    %v3715 = vpack.c.b16 %v3015, %v3011
    %v3716 = vpack.c.b16 %v3016, %v3012
    %v3717 = vpack.c.b16 %v3017, %v3013
    %v3718 = vpack.c.b16 %v3018, %v3014
    %vm4419 = vcmask 916480
    %v4421 = vsel %vm4419, %v196, 0
    %4423 = vmatprep.subr.bf16.mxu0 %v3048
    %4424 = vmatpush1.bf16.msra.mxu0 %v3047
    %4425 = vmatprep.subr.bf16.mxu0 %v3044
    %4426 = vmatpush1.bf16.msra.mxu0 %v3043
    %4427 = vmatprep.subr.bf16.mxu0 %v3040
    %4428 = vmatpush1.bf16.msra.mxu0 %v3039
    %4429 = vmatprep.subr.bf16.mxu0 %v3036
    %4430 = vmatpush1.bf16.msra.mxu0 %v3035
    %4431 = vmatprep.subr.bf16.mxu0 %v3032
    %4432 = vmatpush1.bf16.msra.mxu0 %v3031
    %4433 = vmatprep.subr.bf16.mxu0 %v3028
    %4434 = vmatpush1.bf16.msra.mxu0 %v3027
    %4435 = vmatprep.subr.bf16.mxu0 %v3024
    %4436 = vmatpush1.bf16.msra.mxu0 %v3023
    %4437 = vmatprep.subr.bf16.mxu0 %v3020
    %4438 = vmatpush1.bf16.msra.mxu0 %v3019
    %4439 = vmatprep.subr.bf16.mxu0 %v3080
    %4440 = vmatpush2.bf16.msra.mxu0 %v3079
    %4441 = vmatprep.subr.bf16.mxu0 %v3076
    %4442 = vmatpush2.bf16.msra.mxu0 %v3075
    %4443 = vmatprep.subr.bf16.mxu0 %v3072
    %4444 = vmatpush2.bf16.msra.mxu0 %v3071
    %4445 = vmatprep.subr.bf16.mxu0 %v3068
    %4446 = vmatpush2.bf16.msra.mxu0 %v3067
    %4447 = vmatprep.subr.bf16.mxu0 %v3064
    %4448 = vmatpush2.bf16.msra.mxu0 %v3063
    %4449 = vmatprep.subr.bf16.mxu0 %v3060
    %4450 = vmatpush2.bf16.msra.mxu0 %v3059
    %4451 = vmatprep.subr.bf16.mxu0 %v3056
    %4452 = vmatpush2.bf16.msra.mxu0 %v3055
    %4453 = vmatprep.subr.bf16.mxu0 %v3052
    %4454 = vmatpush2.bf16.msra.mxu0 %v3051
    %4455 = vmatprep.mubr.bf16.mxu0 %v176
    %4456 = vmatmul.mubr.bf16.gmra.mxu0 %v175
    %v4457 = vpop.f32.mrf.mxu0
    %v4458 = vadd.f32 %v902, %v4457
    %v4459 = vpop.f32.mrf.mxu0
    %v4460 = vadd.f32 %v906, %v4459
    %v4461 = vpop.f32.mrf.mxu0
    %v4462 = vpop.f32.mrf.mxu0
    %4463 = vdwg.mxu0
    %4464 = vmatprep.subr.bf16.mxu0 %v3112
    %4465 = vmatpush1.bf16.msra.mxu0 %v3111
    %4466 = vmatprep.subr.bf16.mxu0 %v3108
    %4467 = vmatpush1.bf16.msra.mxu0 %v3107
    %4468 = vmatprep.subr.bf16.mxu0 %v3104
    %4469 = vmatpush1.bf16.msra.mxu0 %v3103
    %4470 = vmatprep.subr.bf16.mxu0 %v3100
    %4471 = vmatpush1.bf16.msra.mxu0 %v3099
    %4472 = vmatprep.subr.bf16.mxu0 %v3096
    %4473 = vmatpush1.bf16.msra.mxu0 %v3095
    %4474 = vmatprep.subr.bf16.mxu0 %v3092
    %4475 = vmatpush1.bf16.msra.mxu0 %v3091
    %4476 = vmatprep.subr.bf16.mxu0 %v3088
    %4477 = vmatpush1.bf16.msra.mxu0 %v3087
    %4478 = vmatprep.subr.bf16.mxu0 %v3084
    %4479 = vmatpush1.bf16.msra.mxu0 %v3083
    %4480 = vmatprep.subr.bf16.mxu0 %v3144
    %4481 = vmatpush2.bf16.msra.mxu0 %v3143
    %4482 = vmatprep.subr.bf16.mxu0 %v3140
    %4483 = vmatpush2.bf16.msra.mxu0 %v3139
    %4484 = vmatprep.subr.bf16.mxu0 %v3136
    %4485 = vmatpush2.bf16.msra.mxu0 %v3135
    %4486 = vmatprep.subr.bf16.mxu0 %v3132
    %4487 = vmatpush2.bf16.msra.mxu0 %v3131
    %4488 = vmatprep.subr.bf16.mxu0 %v3128
    %4489 = vmatpush2.bf16.msra.mxu0 %v3127
    %4490 = vmatprep.subr.bf16.mxu0 %v3124
    %4491 = vmatpush2.bf16.msra.mxu0 %v3123
    %4492 = vmatprep.subr.bf16.mxu0 %v3120
    %4493 = vmatpush2.bf16.msra.mxu0 %v3119
    %4494 = vmatprep.subr.bf16.mxu0 %v3116
    %4495 = vmatpush2.bf16.msra.mxu0 %v3115
    %4496 = vmatprep.mubr.bf16.mxu0 %v178
    %4497 = vmatmul.mubr.bf16.gmra.mxu0 %v177
    %v4498 = vpop.f32.mrf.mxu0
    %v4499 = vadd.f32 %v4458, %v4498
    %v4500 = vpop.f32.mrf.mxu0
    %v4501 = vadd.f32 %v4460, %v4500
    %v4502 = vpop.f32.mrf.mxu0
    %v4503 = vpop.f32.mrf.mxu0
    %4504 = vdwg.mxu0
    %4505 = vmatprep.subr.bf16.mxu0 %v3176
    %4506 = vmatpush1.bf16.msra.mxu0 %v3175
    %4507 = vmatprep.subr.bf16.mxu0 %v3172
    %4508 = vmatpush1.bf16.msra.mxu0 %v3171
    %4509 = vmatprep.subr.bf16.mxu0 %v3168
    %4510 = vmatpush1.bf16.msra.mxu0 %v3167
    %4511 = vmatprep.subr.bf16.mxu0 %v3164
    %4512 = vmatpush1.bf16.msra.mxu0 %v3163
    %4513 = vmatprep.subr.bf16.mxu0 %v3160
    %4514 = vmatpush1.bf16.msra.mxu0 %v3159
    %4515 = vmatprep.subr.bf16.mxu0 %v3156
    %4516 = vmatpush1.bf16.msra.mxu0 %v3155
    %4517 = vmatprep.subr.bf16.mxu0 %v3152
    %4518 = vmatpush1.bf16.msra.mxu0 %v3151
    %4519 = vmatprep.subr.bf16.mxu0 %v3148
    %4520 = vmatpush1.bf16.msra.mxu0 %v3147
    %4521 = vmatprep.subr.bf16.mxu0 %v3208
    %4522 = vmatpush2.bf16.msra.mxu0 %v3207
    %4523 = vmatprep.subr.bf16.mxu0 %v3204
    %4524 = vmatpush2.bf16.msra.mxu0 %v3203
    %4525 = vmatprep.subr.bf16.mxu0 %v3200
    %4526 = vmatpush2.bf16.msra.mxu0 %v3199
    %4527 = vmatprep.subr.bf16.mxu0 %v3196
    %4528 = vmatpush2.bf16.msra.mxu0 %v3195
    %4529 = vmatprep.subr.bf16.mxu0 %v3192
    %4530 = vmatpush2.bf16.msra.mxu0 %v3191
    %4531 = vmatprep.subr.bf16.mxu0 %v3188
    %4532 = vmatpush2.bf16.msra.mxu0 %v3187
    %4533 = vmatprep.subr.bf16.mxu0 %v3184
    %4534 = vmatpush2.bf16.msra.mxu0 %v3183
    %4535 = vmatprep.subr.bf16.mxu0 %v3180
    %4536 = vmatpush2.bf16.msra.mxu0 %v3179
    %4537 = vmatprep.mubr.bf16.mxu0 %v180
    %4538 = vmatmul.mubr.bf16.gmra.mxu0 %v179
    %v4539 = vpop.f32.mrf.mxu0
    %v4540 = vadd.f32 %v4499, %v4539
    %v4541 = vpop.f32.mrf.mxu0
    %v4542 = vadd.f32 %v4501, %v4541
    %v4543 = vpop.f32.mrf.mxu0
    %v4544 = vpop.f32.mrf.mxu0
    %4545 = vdwg.mxu0
    %4546 = vmatprep.subr.bf16.mxu0 %v3240
    %4547 = vmatpush1.bf16.msra.mxu0 %v3239
    %4548 = vmatprep.subr.bf16.mxu0 %v3236
    %4549 = vmatpush1.bf16.msra.mxu0 %v3235
    %4550 = vmatprep.subr.bf16.mxu0 %v3232
    %4551 = vmatpush1.bf16.msra.mxu0 %v3231
    %4552 = vmatprep.subr.bf16.mxu0 %v3228
    %4553 = vmatpush1.bf16.msra.mxu0 %v3227
    %4554 = vmatprep.subr.bf16.mxu0 %v3224
    %4555 = vmatpush1.bf16.msra.mxu0 %v3223
    %4556 = vmatprep.subr.bf16.mxu0 %v3220
    %4557 = vmatpush1.bf16.msra.mxu0 %v3219
    %4558 = vmatprep.subr.bf16.mxu0 %v3216
    %4559 = vmatpush1.bf16.msra.mxu0 %v3215
    %4560 = vmatprep.subr.bf16.mxu0 %v3212
    %4561 = vmatpush1.bf16.msra.mxu0 %v3211
    %4562 = vmatprep.subr.bf16.mxu0 %v3272
    %4563 = vmatpush2.bf16.msra.mxu0 %v3271
    %4564 = vmatprep.subr.bf16.mxu0 %v3268
    %4565 = vmatpush2.bf16.msra.mxu0 %v3267
    %4566 = vmatprep.subr.bf16.mxu0 %v3264
    %4567 = vmatpush2.bf16.msra.mxu0 %v3263
    %4568 = vmatprep.subr.bf16.mxu0 %v3260
    %4569 = vmatpush2.bf16.msra.mxu0 %v3259
    %4570 = vmatprep.subr.bf16.mxu0 %v3256
    %4571 = vmatpush2.bf16.msra.mxu0 %v3255
    %4572 = vmatprep.subr.bf16.mxu0 %v3252
    %4573 = vmatpush2.bf16.msra.mxu0 %v3251
    %4574 = vmatprep.subr.bf16.mxu0 %v3248
    %4575 = vmatpush2.bf16.msra.mxu0 %v3247
    %4576 = vmatprep.subr.bf16.mxu0 %v3244
    %4577 = vmatpush2.bf16.msra.mxu0 %v3243
    %4578 = vmatprep.mubr.bf16.mxu0 %v182
    %4579 = vmatmul.mubr.bf16.gmra.mxu0 %v181
    %v4580 = vpop.f32.mrf.mxu0
    %v4581 = vadd.f32 %v4540, %v4580
    %v4582 = vpop.f32.mrf.mxu0
    %v4583 = vadd.f32 %v4542, %v4582
    %v4584 = vpop.f32.mrf.mxu0
    %v4585 = vpop.f32.mrf.mxu0
    %4586 = vdwg.mxu0
    %4587 = vmatprep.subr.bf16.mxu0 %v3304
    %4588 = vmatpush1.bf16.msra.mxu0 %v3303
    %4589 = vmatprep.subr.bf16.mxu0 %v3300
    %4590 = vmatpush1.bf16.msra.mxu0 %v3299
    %4591 = vmatprep.subr.bf16.mxu0 %v3296
    %4592 = vmatpush1.bf16.msra.mxu0 %v3295
    %4593 = vmatprep.subr.bf16.mxu0 %v3292
    %4594 = vmatpush1.bf16.msra.mxu0 %v3291
    %4595 = vmatprep.subr.bf16.mxu0 %v3288
    %4596 = vmatpush1.bf16.msra.mxu0 %v3287
    %4597 = vmatprep.subr.bf16.mxu0 %v3284
    %4598 = vmatpush1.bf16.msra.mxu0 %v3283
    %4599 = vmatprep.subr.bf16.mxu0 %v3280
    %4600 = vmatpush1.bf16.msra.mxu0 %v3279
    %4601 = vmatprep.subr.bf16.mxu0 %v3276
    %4602 = vmatpush1.bf16.msra.mxu0 %v3275
    %4603 = vmatprep.subr.bf16.mxu0 %v3336
    %4604 = vmatpush2.bf16.msra.mxu0 %v3335
    %4605 = vmatprep.subr.bf16.mxu0 %v3332
    %4606 = vmatpush2.bf16.msra.mxu0 %v3331
    %4607 = vmatprep.subr.bf16.mxu0 %v3328
    %4608 = vmatpush2.bf16.msra.mxu0 %v3327
    %4609 = vmatprep.subr.bf16.mxu0 %v3324
    %4610 = vmatpush2.bf16.msra.mxu0 %v3323
    %4611 = vmatprep.subr.bf16.mxu0 %v3320
    %4612 = vmatpush2.bf16.msra.mxu0 %v3319
    %4613 = vmatprep.subr.bf16.mxu0 %v3316
    %4614 = vmatpush2.bf16.msra.mxu0 %v3315
    %4615 = vmatprep.subr.bf16.mxu0 %v3312
    %4616 = vmatpush2.bf16.msra.mxu0 %v3311
    %4617 = vmatprep.subr.bf16.mxu0 %v3308
    %4618 = vmatpush2.bf16.msra.mxu0 %v3307
    %4619 = vmatprep.mubr.bf16.mxu0 %v184
    %4620 = vmatmul.mubr.bf16.gmra.mxu0 %v183
    %v4621 = vpop.f32.mrf.mxu0
    %v4622 = vadd.f32 %v4581, %v4621
    %v4623 = vpop.f32.mrf.mxu0
    %v4624 = vadd.f32 %v4583, %v4623
    %v4625 = vpop.f32.mrf.mxu0
    %v4626 = vpop.f32.mrf.mxu0
    %4627 = vdwg.mxu0
    %4628 = vmatprep.subr.bf16.mxu0 %v3368
    %4629 = vmatpush1.bf16.msra.mxu0 %v3367
    %4630 = vmatprep.subr.bf16.mxu0 %v3364
    %4631 = vmatpush1.bf16.msra.mxu0 %v3363
    %4632 = vmatprep.subr.bf16.mxu0 %v3360
    %4633 = vmatpush1.bf16.msra.mxu0 %v3359
    %4634 = vmatprep.subr.bf16.mxu0 %v3356
    %4635 = vmatpush1.bf16.msra.mxu0 %v3355
    %4636 = vmatprep.subr.bf16.mxu0 %v3352
    %4637 = vmatpush1.bf16.msra.mxu0 %v3351
    %4638 = vmatprep.subr.bf16.mxu0 %v3348
    %4639 = vmatpush1.bf16.msra.mxu0 %v3347
    %4640 = vmatprep.subr.bf16.mxu0 %v3344
    %4641 = vmatpush1.bf16.msra.mxu0 %v3343
    %4642 = vmatprep.subr.bf16.mxu0 %v3340
    %4643 = vmatpush1.bf16.msra.mxu0 %v3339
    %4644 = vmatprep.subr.bf16.mxu0 %v3400
    %4645 = vmatpush2.bf16.msra.mxu0 %v3399
    %4646 = vmatprep.subr.bf16.mxu0 %v3396
    %4647 = vmatpush2.bf16.msra.mxu0 %v3395
    %4648 = vmatprep.subr.bf16.mxu0 %v3392
    %4649 = vmatpush2.bf16.msra.mxu0 %v3391
    %4650 = vmatprep.subr.bf16.mxu0 %v3388
    %4651 = vmatpush2.bf16.msra.mxu0 %v3387
    %4652 = vmatprep.subr.bf16.mxu0 %v3384
    %4653 = vmatpush2.bf16.msra.mxu0 %v3383
    %4654 = vmatprep.subr.bf16.mxu0 %v3380
    %4655 = vmatpush2.bf16.msra.mxu0 %v3379
    %4656 = vmatprep.subr.bf16.mxu0 %v3376
    %4657 = vmatpush2.bf16.msra.mxu0 %v3375
    %4658 = vmatprep.subr.bf16.mxu0 %v3372
    %4659 = vmatpush2.bf16.msra.mxu0 %v3371
    %4660 = vmatprep.mubr.bf16.mxu0 %v186
    %4661 = vmatmul.mubr.bf16.gmra.mxu0 %v185
    %v4662 = vpop.f32.mrf.mxu0
    %v4663 = vadd.f32 %v4622, %v4662
    %v4664 = vpop.f32.mrf.mxu0
    %v4665 = vadd.f32 %v4624, %v4664
    %v4666 = vpop.f32.mrf.mxu0
    %v4667 = vpop.f32.mrf.mxu0
    %4668 = vdwg.mxu0
    %4669 = vmatprep.subr.bf16.mxu0 %v3432
    %4670 = vmatpush1.bf16.msra.mxu0 %v3431
    %4671 = vmatprep.subr.bf16.mxu0 %v3428
    %4672 = vmatpush1.bf16.msra.mxu0 %v3427
    %4673 = vmatprep.subr.bf16.mxu0 %v3424
    %4674 = vmatpush1.bf16.msra.mxu0 %v3423
    %4675 = vmatprep.subr.bf16.mxu0 %v3420
    %4676 = vmatpush1.bf16.msra.mxu0 %v3419
    %4677 = vmatprep.subr.bf16.mxu0 %v3416
    %4678 = vmatpush1.bf16.msra.mxu0 %v3415
    %4679 = vmatprep.subr.bf16.mxu0 %v3412
    %4680 = vmatpush1.bf16.msra.mxu0 %v3411
    %4681 = vmatprep.subr.bf16.mxu0 %v3408
    %4682 = vmatpush1.bf16.msra.mxu0 %v3407
    %4683 = vmatprep.subr.bf16.mxu0 %v3404
    %4684 = vmatpush1.bf16.msra.mxu0 %v3403
    %4685 = vmatprep.subr.bf16.mxu0 %v3464
    %4686 = vmatpush2.bf16.msra.mxu0 %v3463
    %4687 = vmatprep.subr.bf16.mxu0 %v3460
    %4688 = vmatpush2.bf16.msra.mxu0 %v3459
    %4689 = vmatprep.subr.bf16.mxu0 %v3456
    %4690 = vmatpush2.bf16.msra.mxu0 %v3455
    %4691 = vmatprep.subr.bf16.mxu0 %v3452
    %4692 = vmatpush2.bf16.msra.mxu0 %v3451
    %4693 = vmatprep.subr.bf16.mxu0 %v3448
    %4694 = vmatpush2.bf16.msra.mxu0 %v3447
    %4695 = vmatprep.subr.bf16.mxu0 %v3444
    %4696 = vmatpush2.bf16.msra.mxu0 %v3443
    %4697 = vmatprep.subr.bf16.mxu0 %v3440
    %4698 = vmatpush2.bf16.msra.mxu0 %v3439
    %4699 = vmatprep.subr.bf16.mxu0 %v3436
    %4700 = vmatpush2.bf16.msra.mxu0 %v3435
    %4701 = vmatprep.mubr.bf16.mxu0 %v188
    %4702 = vmatmul.mubr.bf16.gmra.mxu0 %v187
    %v4703 = vpop.f32.mrf.mxu0
    %v4704 = vadd.f32 %v4663, %v4703
    %v4705 = vpop.f32.mrf.mxu0
    %v4706 = vadd.f32 %v4665, %v4705
    %v4707 = vpop.f32.mrf.mxu0
    %v4708 = vpop.f32.mrf.mxu0
    %4709 = vdwg.mxu0
    %4710 = vmatprep.subr.bf16.mxu0 %v3496
    %4711 = vmatpush1.bf16.msra.mxu0 %v3495
    %4712 = vmatprep.subr.bf16.mxu0 %v3492
    %4713 = vmatpush1.bf16.msra.mxu0 %v3491
    %4714 = vmatprep.subr.bf16.mxu0 %v3488
    %4715 = vmatpush1.bf16.msra.mxu0 %v3487
    %4716 = vmatprep.subr.bf16.mxu0 %v3484
    %4717 = vmatpush1.bf16.msra.mxu0 %v3483
    %4718 = vmatprep.subr.bf16.mxu0 %v3480
    %4719 = vmatpush1.bf16.msra.mxu0 %v3479
    %4720 = vmatprep.subr.bf16.mxu0 %v3476
    %4721 = vmatpush1.bf16.msra.mxu0 %v3475
    %4722 = vmatprep.subr.bf16.mxu0 %v3472
    %4723 = vmatpush1.bf16.msra.mxu0 %v3471
    %4724 = vmatprep.subr.bf16.mxu0 %v3468
    %4725 = vmatpush1.bf16.msra.mxu0 %v3467
    %4726 = vmatprep.subr.bf16.mxu0 %v3528
    %4727 = vmatpush2.bf16.msra.mxu0 %v3527
    %4728 = vmatprep.subr.bf16.mxu0 %v3524
    %4729 = vmatpush2.bf16.msra.mxu0 %v3523
    %4730 = vmatprep.subr.bf16.mxu0 %v3520
    %4731 = vmatpush2.bf16.msra.mxu0 %v3519
    %4732 = vmatprep.subr.bf16.mxu0 %v3516
    %4733 = vmatpush2.bf16.msra.mxu0 %v3515
    %4734 = vmatprep.subr.bf16.mxu0 %v3512
    %4735 = vmatpush2.bf16.msra.mxu0 %v3511
    %4736 = vmatprep.subr.bf16.mxu0 %v3508
    %4737 = vmatpush2.bf16.msra.mxu0 %v3507
    %4738 = vmatprep.subr.bf16.mxu0 %v3504
    %4739 = vmatpush2.bf16.msra.mxu0 %v3503
    %4740 = vmatprep.subr.bf16.mxu0 %v3500
    %4741 = vmatpush2.bf16.msra.mxu0 %v3499
    %4742 = vmatprep.mubr.bf16.mxu0 %v190
    %4743 = vmatmul.mubr.bf16.gmra.mxu0 %v189
    %v4744 = vpop.f32.mrf.mxu0
    %v4745 = vadd.f32 %v4704, %v4744
    %v4746 = vpop.f32.mrf.mxu0
    %v4747 = vadd.f32 %v4706, %v4746
    %v4748 = vpop.f32.mrf.mxu0
    %v4749 = vpop.f32.mrf.mxu0
    %4750 = vdwg.mxu0
    %4751 = vmatprep.subr.bf16.mxu0 %v3560
    %4752 = vmatpush1.bf16.msra.mxu0 %v3559
    %4753 = vmatprep.subr.bf16.mxu0 %v3556
    %4754 = vmatpush1.bf16.msra.mxu0 %v3555
    %4755 = vmatprep.subr.bf16.mxu0 %v3552
    %4756 = vmatpush1.bf16.msra.mxu0 %v3551
    %4757 = vmatprep.subr.bf16.mxu0 %v3548
    %4758 = vmatpush1.bf16.msra.mxu0 %v3547
    %4759 = vmatprep.subr.bf16.mxu0 %v3544
    %4760 = vmatpush1.bf16.msra.mxu0 %v3543
    %4761 = vmatprep.subr.bf16.mxu0 %v3540
    %4762 = vmatpush1.bf16.msra.mxu0 %v3539
    %4763 = vmatprep.subr.bf16.mxu0 %v3536
    %4764 = vmatpush1.bf16.msra.mxu0 %v3535
    %4765 = vmatprep.subr.bf16.mxu0 %v3532
    %4766 = vmatpush1.bf16.msra.mxu0 %v3531
    %4767 = vmatprep.subr.bf16.mxu0 %v3592
    %4768 = vmatpush2.bf16.msra.mxu0 %v3591
    %4769 = vmatprep.subr.bf16.mxu0 %v3588
    %4770 = vmatpush2.bf16.msra.mxu0 %v3587
    %4771 = vmatprep.subr.bf16.mxu0 %v3584
    %4772 = vmatpush2.bf16.msra.mxu0 %v3583
    %4773 = vmatprep.subr.bf16.mxu0 %v3580
    %4774 = vmatpush2.bf16.msra.mxu0 %v3579
    %4775 = vmatprep.subr.bf16.mxu0 %v3576
    %4776 = vmatpush2.bf16.msra.mxu0 %v3575
    %4777 = vmatprep.subr.bf16.mxu0 %v3572
    %4778 = vmatpush2.bf16.msra.mxu0 %v3571
    %4779 = vmatprep.subr.bf16.mxu0 %v3568
    %4780 = vmatpush2.bf16.msra.mxu0 %v3567
    %4781 = vmatprep.subr.bf16.mxu0 %v3564
    %4782 = vmatpush2.bf16.msra.mxu0 %v3563
    %4783 = vmatprep.mubr.bf16.mxu0 %v192
    %4784 = vmatmul.mubr.bf16.gmra.mxu0 %v191
    %v4785 = vpop.f32.mrf.mxu0
    %v4786 = vadd.f32 %v4745, %v4785
    %v4787 = vpop.f32.mrf.mxu0
    %v4788 = vadd.f32 %v4747, %v4787
    %v4789 = vpop.f32.mrf.mxu0
    %v4790 = vpop.f32.mrf.mxu0
    %4791 = vdwg.mxu0
    %4792 = vmatprep.subr.bf16.mxu0 %v3624
    %4793 = vmatpush1.bf16.msra.mxu0 %v3623
    %4794 = vmatprep.subr.bf16.mxu0 %v3620
    %4795 = vmatpush1.bf16.msra.mxu0 %v3619
    %4796 = vmatprep.subr.bf16.mxu0 %v3616
    %4797 = vmatpush1.bf16.msra.mxu0 %v3615
    %4798 = vmatprep.subr.bf16.mxu0 %v3612
    %4799 = vmatpush1.bf16.msra.mxu0 %v3611
    %4800 = vmatprep.subr.bf16.mxu0 %v3608
    %4801 = vmatpush1.bf16.msra.mxu0 %v3607
    %4802 = vmatprep.subr.bf16.mxu0 %v3604
    %4803 = vmatpush1.bf16.msra.mxu0 %v3603
    %4804 = vmatprep.subr.bf16.mxu0 %v3600
    %4805 = vmatpush1.bf16.msra.mxu0 %v3599
    %4806 = vmatprep.subr.bf16.mxu0 %v3596
    %4807 = vmatpush1.bf16.msra.mxu0 %v3595
    %4808 = vmatprep.subr.bf16.mxu0 %v3656
    %4809 = vmatpush2.bf16.msra.mxu0 %v3655
    %4810 = vmatprep.subr.bf16.mxu0 %v3652
    %4811 = vmatpush2.bf16.msra.mxu0 %v3651
    %4812 = vmatprep.subr.bf16.mxu0 %v3648
    %4813 = vmatpush2.bf16.msra.mxu0 %v3647
    %4814 = vmatprep.subr.bf16.mxu0 %v3644
    %4815 = vmatpush2.bf16.msra.mxu0 %v3643
    %4816 = vmatprep.subr.bf16.mxu0 %v3640
    %4817 = vmatpush2.bf16.msra.mxu0 %v3639
    %4818 = vmatprep.subr.bf16.mxu0 %v3636
    %4819 = vmatpush2.bf16.msra.mxu0 %v3635
    %4820 = vmatprep.subr.bf16.mxu0 %v3632
    %4821 = vmatpush2.bf16.msra.mxu0 %v3631
    %4822 = vmatprep.subr.bf16.mxu0 %v3628
    %4823 = vmatpush2.bf16.msra.mxu0 %v3627
    %4824 = vmatprep.mubr.bf16.mxu0 %v194
    %4825 = vmatmul.mubr.bf16.gmra.mxu0 %v193
    %v4826 = vpop.f32.mrf.mxu0
    %v4827 = vadd.f32 %v4786, %v4826
    %v4828 = vpop.f32.mrf.mxu0
    %v4829 = vadd.f32 %v4788, %v4828
    %v4830 = vpop.f32.mrf.mxu0
    %v4831 = vpop.f32.mrf.mxu0
    %4832 = vdwg.mxu0
    %4833 = vmatprep.subr.bf16.mxu0 %v3688
    %4834 = vmatpush1.bf16.msra.mxu0 %v3687
    %4835 = vmatprep.subr.bf16.mxu0 %v3684
    %4836 = vmatpush1.bf16.msra.mxu0 %v3683
    %4837 = vmatprep.subr.bf16.mxu0 %v3680
    %4838 = vmatpush1.bf16.msra.mxu0 %v3679
    %4839 = vmatprep.subr.bf16.mxu0 %v3676
    %4840 = vmatpush1.bf16.msra.mxu0 %v3675
    %4841 = vmatprep.subr.bf16.mxu0 %v3672
    %4842 = vmatpush1.bf16.msra.mxu0 %v3671
    %4843 = vmatprep.subr.bf16.mxu0 %v3668
    %4844 = vmatpush1.bf16.msra.mxu0 %v3667
    %4845 = vmatprep.subr.bf16.mxu0 %v3664
    %4846 = vmatpush1.bf16.msra.mxu0 %v3663
    %4847 = vmatprep.subr.bf16.mxu0 %v3660
    %4848 = vmatpush1.bf16.msra.mxu0 %v3659
    %4849 = vmatprep.subr.bf16.mxu0 0
    %4850 = vmatpush2.bf16.msra.mxu0 0
    %4851 = vmatprep.subr.bf16.mxu0 %v3716
    %4852 = vmatpush2.bf16.msra.mxu0 %v3715
    %4853 = vmatprep.subr.bf16.mxu0 %v3712
    %4854 = vmatpush2.bf16.msra.mxu0 %v3711
    %4855 = vmatprep.subr.bf16.mxu0 %v3708
    %4856 = vmatpush2.bf16.msra.mxu0 %v3707
    %4857 = vmatprep.subr.bf16.mxu0 %v3704
    %4858 = vmatpush2.bf16.msra.mxu0 %v3703
    %4859 = vmatprep.subr.bf16.mxu0 %v3700
    %4860 = vmatpush2.bf16.msra.mxu0 %v3699
    %4861 = vmatprep.subr.bf16.mxu0 %v3696
    %4862 = vmatpush2.bf16.msra.mxu0 %v3695
    %4863 = vmatprep.subr.bf16.mxu0 %v3692
    %4864 = vmatpush2.bf16.msra.mxu0 %v3691
    %4865 = vmatprep.mubr.bf16.mxu0 %v4421
    %4866 = vmatmul.mubr.bf16.gmra.mxu0 %v195
    %v4867 = vpop.f32.mrf.mxu0
    %v4868 = vadd.f32 %v4827, %v4867
    %v4869 = vpop.f32.mrf.mxu0
    %v4870 = vadd.f32 %v4829, %v4869
    %v4871 = vpop.f32.mrf.mxu0
    %v4872 = vpop.f32.mrf.mxu0
    %4873 = vdwg.mxu0
    %4874 = vmatprep.subr.bf16.mxu0 %v3050
    %4875 = vmatpush1.bf16.msra.mxu0 %v3049
    %4876 = vmatprep.subr.bf16.mxu0 %v3046
    %4877 = vmatpush1.bf16.msra.mxu0 %v3045
    %4878 = vmatprep.subr.bf16.mxu0 %v3042
    %4879 = vmatpush1.bf16.msra.mxu0 %v3041
    %4880 = vmatprep.subr.bf16.mxu0 %v3038
    %4881 = vmatpush1.bf16.msra.mxu0 %v3037
    %4882 = vmatprep.subr.bf16.mxu0 %v3034
    %4883 = vmatpush1.bf16.msra.mxu0 %v3033
    %4884 = vmatprep.subr.bf16.mxu0 %v3030
    %4885 = vmatpush1.bf16.msra.mxu0 %v3029
    %4886 = vmatprep.subr.bf16.mxu0 %v3026
    %4887 = vmatpush1.bf16.msra.mxu0 %v3025
    %4888 = vmatprep.subr.bf16.mxu0 %v3022
    %4889 = vmatpush1.bf16.msra.mxu0 %v3021
    %4890 = vmatprep.subr.bf16.mxu0 %v3082
    %4891 = vmatpush2.bf16.msra.mxu0 %v3081
    %4892 = vmatprep.subr.bf16.mxu0 %v3078
    %4893 = vmatpush2.bf16.msra.mxu0 %v3077
    %4894 = vmatprep.subr.bf16.mxu0 %v3074
    %4895 = vmatpush2.bf16.msra.mxu0 %v3073
    %4896 = vmatprep.subr.bf16.mxu0 %v3070
    %4897 = vmatpush2.bf16.msra.mxu0 %v3069
    %4898 = vmatprep.subr.bf16.mxu0 %v3066
    %4899 = vmatpush2.bf16.msra.mxu0 %v3065
    %4900 = vmatprep.subr.bf16.mxu0 %v3062
    %4901 = vmatpush2.bf16.msra.mxu0 %v3061
    %4902 = vmatprep.subr.bf16.mxu0 %v3058
    %4903 = vmatpush2.bf16.msra.mxu0 %v3057
    %4904 = vmatprep.subr.bf16.mxu0 %v3054
    %4905 = vmatpush2.bf16.msra.mxu0 %v3053
    %4906 = vmatprep.mubr.bf16.mxu0 %v176
    %4907 = vmatmul.mubr.bf16.gmra.mxu0 %v175
    %v4908 = vpop.f32.mrf.mxu0
    %v4909 = vadd.f32 %v910, %v4908
    %v4910 = vpop.f32.mrf.mxu0
    %v4911 = vadd.f32 %v914, %v4910
    %v4912 = vpop.f32.mrf.mxu0
    %v4913 = vpop.f32.mrf.mxu0
    %4914 = vdwg.mxu0
    %4915 = vmatprep.subr.bf16.mxu0 %v3114
    %4916 = vmatpush1.bf16.msra.mxu0 %v3113
    %4917 = vmatprep.subr.bf16.mxu0 %v3110
    %4918 = vmatpush1.bf16.msra.mxu0 %v3109
    %4919 = vmatprep.subr.bf16.mxu0 %v3106
    %4920 = vmatpush1.bf16.msra.mxu0 %v3105
    %4921 = vmatprep.subr.bf16.mxu0 %v3102
    %4922 = vmatpush1.bf16.msra.mxu0 %v3101
    %4923 = vmatprep.subr.bf16.mxu0 %v3098
    %4924 = vmatpush1.bf16.msra.mxu0 %v3097
    %4925 = vmatprep.subr.bf16.mxu0 %v3094
    %4926 = vmatpush1.bf16.msra.mxu0 %v3093
    %4927 = vmatprep.subr.bf16.mxu0 %v3090
    %4928 = vmatpush1.bf16.msra.mxu0 %v3089
    %4929 = vmatprep.subr.bf16.mxu0 %v3086
    %4930 = vmatpush1.bf16.msra.mxu0 %v3085
    %4931 = vmatprep.subr.bf16.mxu0 %v3146
    %4932 = vmatpush2.bf16.msra.mxu0 %v3145
    %4933 = vmatprep.subr.bf16.mxu0 %v3142
    %4934 = vmatpush2.bf16.msra.mxu0 %v3141
    %4935 = vmatprep.subr.bf16.mxu0 %v3138
    %4936 = vmatpush2.bf16.msra.mxu0 %v3137
    %4937 = vmatprep.subr.bf16.mxu0 %v3134
    %4938 = vmatpush2.bf16.msra.mxu0 %v3133
    %4939 = vmatprep.subr.bf16.mxu0 %v3130
    %4940 = vmatpush2.bf16.msra.mxu0 %v3129
    %4941 = vmatprep.subr.bf16.mxu0 %v3126
    %4942 = vmatpush2.bf16.msra.mxu0 %v3125
    %4943 = vmatprep.subr.bf16.mxu0 %v3122
    %4944 = vmatpush2.bf16.msra.mxu0 %v3121
    %4945 = vmatprep.subr.bf16.mxu0 %v3118
    %4946 = vmatpush2.bf16.msra.mxu0 %v3117
    %4947 = vmatprep.mubr.bf16.mxu0 %v178
    %4948 = vmatmul.mubr.bf16.gmra.mxu0 %v177
    %v4949 = vpop.f32.mrf.mxu0
    %v4950 = vadd.f32 %v4909, %v4949
    %v4951 = vpop.f32.mrf.mxu0
    %v4952 = vadd.f32 %v4911, %v4951
    %v4953 = vpop.f32.mrf.mxu0
    %v4954 = vpop.f32.mrf.mxu0
    %4955 = vdwg.mxu0
    %4956 = vmatprep.subr.bf16.mxu0 %v3178
    %4957 = vmatpush1.bf16.msra.mxu0 %v3177
    %4958 = vmatprep.subr.bf16.mxu0 %v3174
    %4959 = vmatpush1.bf16.msra.mxu0 %v3173
    %4960 = vmatprep.subr.bf16.mxu0 %v3170
    %4961 = vmatpush1.bf16.msra.mxu0 %v3169
    %4962 = vmatprep.subr.bf16.mxu0 %v3166
    %4963 = vmatpush1.bf16.msra.mxu0 %v3165
    %4964 = vmatprep.subr.bf16.mxu0 %v3162
    %4965 = vmatpush1.bf16.msra.mxu0 %v3161
    %4966 = vmatprep.subr.bf16.mxu0 %v3158
    %4967 = vmatpush1.bf16.msra.mxu0 %v3157
    %4968 = vmatprep.subr.bf16.mxu0 %v3154
    %4969 = vmatpush1.bf16.msra.mxu0 %v3153
    %4970 = vmatprep.subr.bf16.mxu0 %v3150
    %4971 = vmatpush1.bf16.msra.mxu0 %v3149
    %4972 = vmatprep.subr.bf16.mxu0 %v3210
    %4973 = vmatpush2.bf16.msra.mxu0 %v3209
    %4974 = vmatprep.subr.bf16.mxu0 %v3206
    %4975 = vmatpush2.bf16.msra.mxu0 %v3205
    %4976 = vmatprep.subr.bf16.mxu0 %v3202
    %4977 = vmatpush2.bf16.msra.mxu0 %v3201
    %4978 = vmatprep.subr.bf16.mxu0 %v3198
    %4979 = vmatpush2.bf16.msra.mxu0 %v3197
    %4980 = vmatprep.subr.bf16.mxu0 %v3194
    %4981 = vmatpush2.bf16.msra.mxu0 %v3193
    %4982 = vmatprep.subr.bf16.mxu0 %v3190
    %4983 = vmatpush2.bf16.msra.mxu0 %v3189
    %4984 = vmatprep.subr.bf16.mxu0 %v3186
    %4985 = vmatpush2.bf16.msra.mxu0 %v3185
    %4986 = vmatprep.subr.bf16.mxu0 %v3182
    %4987 = vmatpush2.bf16.msra.mxu0 %v3181
    %4988 = vmatprep.mubr.bf16.mxu0 %v180
    %4989 = vmatmul.mubr.bf16.gmra.mxu0 %v179
    %v4990 = vpop.f32.mrf.mxu0
    %v4991 = vadd.f32 %v4950, %v4990
    %v4992 = vpop.f32.mrf.mxu0
    %v4993 = vadd.f32 %v4952, %v4992
    %v4994 = vpop.f32.mrf.mxu0
    %v4995 = vpop.f32.mrf.mxu0
    %4996 = vdwg.mxu0
    %4997 = vmatprep.subr.bf16.mxu0 %v3242
    %4998 = vmatpush1.bf16.msra.mxu0 %v3241
    %4999 = vmatprep.subr.bf16.mxu0 %v3238
    %5000 = vmatpush1.bf16.msra.mxu0 %v3237
    %5001 = vmatprep.subr.bf16.mxu0 %v3234
    %5002 = vmatpush1.bf16.msra.mxu0 %v3233
    %5003 = vmatprep.subr.bf16.mxu0 %v3230
    %5004 = vmatpush1.bf16.msra.mxu0 %v3229
    %5005 = vmatprep.subr.bf16.mxu0 %v3226
    %5006 = vmatpush1.bf16.msra.mxu0 %v3225
    %5007 = vmatprep.subr.bf16.mxu0 %v3222
    %5008 = vmatpush1.bf16.msra.mxu0 %v3221
    %5009 = vmatprep.subr.bf16.mxu0 %v3218
    %5010 = vmatpush1.bf16.msra.mxu0 %v3217
    %5011 = vmatprep.subr.bf16.mxu0 %v3214
    %5012 = vmatpush1.bf16.msra.mxu0 %v3213
    %5013 = vmatprep.subr.bf16.mxu0 %v3274
    %5014 = vmatpush2.bf16.msra.mxu0 %v3273
    %5015 = vmatprep.subr.bf16.mxu0 %v3270
    %5016 = vmatpush2.bf16.msra.mxu0 %v3269
    %5017 = vmatprep.subr.bf16.mxu0 %v3266
    %5018 = vmatpush2.bf16.msra.mxu0 %v3265
    %5019 = vmatprep.subr.bf16.mxu0 %v3262
    %5020 = vmatpush2.bf16.msra.mxu0 %v3261
    %5021 = vmatprep.subr.bf16.mxu0 %v3258
    %5022 = vmatpush2.bf16.msra.mxu0 %v3257
    %5023 = vmatprep.subr.bf16.mxu0 %v3254
    %5024 = vmatpush2.bf16.msra.mxu0 %v3253
    %5025 = vmatprep.subr.bf16.mxu0 %v3250
    %5026 = vmatpush2.bf16.msra.mxu0 %v3249
    %5027 = vmatprep.subr.bf16.mxu0 %v3246
    %5028 = vmatpush2.bf16.msra.mxu0 %v3245
    %5029 = vmatprep.mubr.bf16.mxu0 %v182
    %5030 = vmatmul.mubr.bf16.gmra.mxu0 %v181
    %v5031 = vpop.f32.mrf.mxu0
    %v5032 = vadd.f32 %v4991, %v5031
    %v5033 = vpop.f32.mrf.mxu0
    %v5034 = vadd.f32 %v4993, %v5033
    %v5035 = vpop.f32.mrf.mxu0
    %v5036 = vpop.f32.mrf.mxu0
    %5037 = vdwg.mxu0
    %5038 = vmatprep.subr.bf16.mxu0 %v3306
    %5039 = vmatpush1.bf16.msra.mxu0 %v3305
    %5040 = vmatprep.subr.bf16.mxu0 %v3302
    %5041 = vmatpush1.bf16.msra.mxu0 %v3301
    %5042 = vmatprep.subr.bf16.mxu0 %v3298
    %5043 = vmatpush1.bf16.msra.mxu0 %v3297
    %5044 = vmatprep.subr.bf16.mxu0 %v3294
    %5045 = vmatpush1.bf16.msra.mxu0 %v3293
    %5046 = vmatprep.subr.bf16.mxu0 %v3290
    %5047 = vmatpush1.bf16.msra.mxu0 %v3289
    %5048 = vmatprep.subr.bf16.mxu0 %v3286
    %5049 = vmatpush1.bf16.msra.mxu0 %v3285
    %5050 = vmatprep.subr.bf16.mxu0 %v3282
    %5051 = vmatpush1.bf16.msra.mxu0 %v3281
    %5052 = vmatprep.subr.bf16.mxu0 %v3278
    %5053 = vmatpush1.bf16.msra.mxu0 %v3277
    %5054 = vmatprep.subr.bf16.mxu0 %v3338
    %5055 = vmatpush2.bf16.msra.mxu0 %v3337
    %5056 = vmatprep.subr.bf16.mxu0 %v3334
    %5057 = vmatpush2.bf16.msra.mxu0 %v3333
    %5058 = vmatprep.subr.bf16.mxu0 %v3330
    %5059 = vmatpush2.bf16.msra.mxu0 %v3329
    %5060 = vmatprep.subr.bf16.mxu0 %v3326
    %5061 = vmatpush2.bf16.msra.mxu0 %v3325
    %5062 = vmatprep.subr.bf16.mxu0 %v3322
    %5063 = vmatpush2.bf16.msra.mxu0 %v3321
    %5064 = vmatprep.subr.bf16.mxu0 %v3318
    %5065 = vmatpush2.bf16.msra.mxu0 %v3317
    %5066 = vmatprep.subr.bf16.mxu0 %v3314
    %5067 = vmatpush2.bf16.msra.mxu0 %v3313
    %5068 = vmatprep.subr.bf16.mxu0 %v3310
    %5069 = vmatpush2.bf16.msra.mxu0 %v3309
    %5070 = vmatprep.mubr.bf16.mxu0 %v184
    %5071 = vmatmul.mubr.bf16.gmra.mxu0 %v183
    %v5072 = vpop.f32.mrf.mxu0
    %v5073 = vadd.f32 %v5032, %v5072
    %v5074 = vpop.f32.mrf.mxu0
    %v5075 = vadd.f32 %v5034, %v5074
    %v5076 = vpop.f32.mrf.mxu0
    %v5077 = vpop.f32.mrf.mxu0
    %5078 = vdwg.mxu0
    %5079 = vmatprep.subr.bf16.mxu0 %v3370
    %5080 = vmatpush1.bf16.msra.mxu0 %v3369
    %5081 = vmatprep.subr.bf16.mxu0 %v3366
    %5082 = vmatpush1.bf16.msra.mxu0 %v3365
    %5083 = vmatprep.subr.bf16.mxu0 %v3362
    %5084 = vmatpush1.bf16.msra.mxu0 %v3361
    %5085 = vmatprep.subr.bf16.mxu0 %v3358
    %5086 = vmatpush1.bf16.msra.mxu0 %v3357
    %5087 = vmatprep.subr.bf16.mxu0 %v3354
    %5088 = vmatpush1.bf16.msra.mxu0 %v3353
    %5089 = vmatprep.subr.bf16.mxu0 %v3350
    %5090 = vmatpush1.bf16.msra.mxu0 %v3349
    %5091 = vmatprep.subr.bf16.mxu0 %v3346
    %5092 = vmatpush1.bf16.msra.mxu0 %v3345
    %5093 = vmatprep.subr.bf16.mxu0 %v3342
    %5094 = vmatpush1.bf16.msra.mxu0 %v3341
    %5095 = vmatprep.subr.bf16.mxu0 %v3402
    %5096 = vmatpush2.bf16.msra.mxu0 %v3401
    %5097 = vmatprep.subr.bf16.mxu0 %v3398
    %5098 = vmatpush2.bf16.msra.mxu0 %v3397
    %5099 = vmatprep.subr.bf16.mxu0 %v3394
    %5100 = vmatpush2.bf16.msra.mxu0 %v3393
    %5101 = vmatprep.subr.bf16.mxu0 %v3390
    %5102 = vmatpush2.bf16.msra.mxu0 %v3389
    %5103 = vmatprep.subr.bf16.mxu0 %v3386
    %5104 = vmatpush2.bf16.msra.mxu0 %v3385
    %5105 = vmatprep.subr.bf16.mxu0 %v3382
    %5106 = vmatpush2.bf16.msra.mxu0 %v3381
    %5107 = vmatprep.subr.bf16.mxu0 %v3378
    %5108 = vmatpush2.bf16.msra.mxu0 %v3377
    %5109 = vmatprep.subr.bf16.mxu0 %v3374
    %5110 = vmatpush2.bf16.msra.mxu0 %v3373
    %5111 = vmatprep.mubr.bf16.mxu0 %v186
    %5112 = vmatmul.mubr.bf16.gmra.mxu0 %v185
    %v5113 = vpop.f32.mrf.mxu0
    %v5114 = vadd.f32 %v5073, %v5113
    %v5115 = vpop.f32.mrf.mxu0
    %v5116 = vadd.f32 %v5075, %v5115
    %v5117 = vpop.f32.mrf.mxu0
    %v5118 = vpop.f32.mrf.mxu0
    %5119 = vdwg.mxu0
    %5120 = vmatprep.subr.bf16.mxu0 %v3434
    %5121 = vmatpush1.bf16.msra.mxu0 %v3433
    %5122 = vmatprep.subr.bf16.mxu0 %v3430
    %5123 = vmatpush1.bf16.msra.mxu0 %v3429
    %5124 = vmatprep.subr.bf16.mxu0 %v3426
    %5125 = vmatpush1.bf16.msra.mxu0 %v3425
    %5126 = vmatprep.subr.bf16.mxu0 %v3422
    %5127 = vmatpush1.bf16.msra.mxu0 %v3421
    %5128 = vmatprep.subr.bf16.mxu0 %v3418
    %5129 = vmatpush1.bf16.msra.mxu0 %v3417
    %5130 = vmatprep.subr.bf16.mxu0 %v3414
    %5131 = vmatpush1.bf16.msra.mxu0 %v3413
    %5132 = vmatprep.subr.bf16.mxu0 %v3410
    %5133 = vmatpush1.bf16.msra.mxu0 %v3409
    %5134 = vmatprep.subr.bf16.mxu0 %v3406
    %5135 = vmatpush1.bf16.msra.mxu0 %v3405
    %5136 = vmatprep.subr.bf16.mxu0 %v3466
    %5137 = vmatpush2.bf16.msra.mxu0 %v3465
    %5138 = vmatprep.subr.bf16.mxu0 %v3462
    %5139 = vmatpush2.bf16.msra.mxu0 %v3461
    %5140 = vmatprep.subr.bf16.mxu0 %v3458
    %5141 = vmatpush2.bf16.msra.mxu0 %v3457
    %5142 = vmatprep.subr.bf16.mxu0 %v3454
    %5143 = vmatpush2.bf16.msra.mxu0 %v3453
    %5144 = vmatprep.subr.bf16.mxu0 %v3450
    %5145 = vmatpush2.bf16.msra.mxu0 %v3449
    %5146 = vmatprep.subr.bf16.mxu0 %v3446
    %5147 = vmatpush2.bf16.msra.mxu0 %v3445
    %5148 = vmatprep.subr.bf16.mxu0 %v3442
    %5149 = vmatpush2.bf16.msra.mxu0 %v3441
    %5150 = vmatprep.subr.bf16.mxu0 %v3438
    %5151 = vmatpush2.bf16.msra.mxu0 %v3437
    %5152 = vmatprep.mubr.bf16.mxu0 %v188
    %5153 = vmatmul.mubr.bf16.gmra.mxu0 %v187
    %v5154 = vpop.f32.mrf.mxu0
    %v5155 = vadd.f32 %v5114, %v5154
    %v5156 = vpop.f32.mrf.mxu0
    %v5157 = vadd.f32 %v5116, %v5156
    %v5158 = vpop.f32.mrf.mxu0
    %v5159 = vpop.f32.mrf.mxu0
    %5160 = vdwg.mxu0
    %5161 = vmatprep.subr.bf16.mxu0 %v3498
    %5162 = vmatpush1.bf16.msra.mxu0 %v3497
    %5163 = vmatprep.subr.bf16.mxu0 %v3494
    %5164 = vmatpush1.bf16.msra.mxu0 %v3493
    %5165 = vmatprep.subr.bf16.mxu0 %v3490
    %5166 = vmatpush1.bf16.msra.mxu0 %v3489
    %5167 = vmatprep.subr.bf16.mxu0 %v3486
    %5168 = vmatpush1.bf16.msra.mxu0 %v3485
    %5169 = vmatprep.subr.bf16.mxu0 %v3482
    %5170 = vmatpush1.bf16.msra.mxu0 %v3481
    %5171 = vmatprep.subr.bf16.mxu0 %v3478
    %5172 = vmatpush1.bf16.msra.mxu0 %v3477
    %5173 = vmatprep.subr.bf16.mxu0 %v3474
    %5174 = vmatpush1.bf16.msra.mxu0 %v3473
    %5175 = vmatprep.subr.bf16.mxu0 %v3470
    %5176 = vmatpush1.bf16.msra.mxu0 %v3469
    %5177 = vmatprep.subr.bf16.mxu0 %v3530
    %5178 = vmatpush2.bf16.msra.mxu0 %v3529
    %5179 = vmatprep.subr.bf16.mxu0 %v3526
    %5180 = vmatpush2.bf16.msra.mxu0 %v3525
    %5181 = vmatprep.subr.bf16.mxu0 %v3522
    %5182 = vmatpush2.bf16.msra.mxu0 %v3521
    %5183 = vmatprep.subr.bf16.mxu0 %v3518
    %5184 = vmatpush2.bf16.msra.mxu0 %v3517
    %5185 = vmatprep.subr.bf16.mxu0 %v3514
    %5186 = vmatpush2.bf16.msra.mxu0 %v3513
    %5187 = vmatprep.subr.bf16.mxu0 %v3510
    %5188 = vmatpush2.bf16.msra.mxu0 %v3509
    %5189 = vmatprep.subr.bf16.mxu0 %v3506
    %5190 = vmatpush2.bf16.msra.mxu0 %v3505
    %5191 = vmatprep.subr.bf16.mxu0 %v3502
    %5192 = vmatpush2.bf16.msra.mxu0 %v3501
    %5193 = vmatprep.mubr.bf16.mxu0 %v190
    %5194 = vmatmul.mubr.bf16.gmra.mxu0 %v189
    %v5195 = vpop.f32.mrf.mxu0
    %v5196 = vadd.f32 %v5155, %v5195
    %v5197 = vpop.f32.mrf.mxu0
    %v5198 = vadd.f32 %v5157, %v5197
    %v5199 = vpop.f32.mrf.mxu0
    %v5200 = vpop.f32.mrf.mxu0
    %5201 = vdwg.mxu0
    %5202 = vmatprep.subr.bf16.mxu0 %v3562
    %5203 = vmatpush1.bf16.msra.mxu0 %v3561
    %5204 = vmatprep.subr.bf16.mxu0 %v3558
    %5205 = vmatpush1.bf16.msra.mxu0 %v3557
    %5206 = vmatprep.subr.bf16.mxu0 %v3554
    %5207 = vmatpush1.bf16.msra.mxu0 %v3553
    %5208 = vmatprep.subr.bf16.mxu0 %v3550
    %5209 = vmatpush1.bf16.msra.mxu0 %v3549
    %5210 = vmatprep.subr.bf16.mxu0 %v3546
    %5211 = vmatpush1.bf16.msra.mxu0 %v3545
    %5212 = vmatprep.subr.bf16.mxu0 %v3542
    %5213 = vmatpush1.bf16.msra.mxu0 %v3541
    %5214 = vmatprep.subr.bf16.mxu0 %v3538
    %5215 = vmatpush1.bf16.msra.mxu0 %v3537
    %5216 = vmatprep.subr.bf16.mxu0 %v3534
    %5217 = vmatpush1.bf16.msra.mxu0 %v3533
    %5218 = vmatprep.subr.bf16.mxu0 %v3594
    %5219 = vmatpush2.bf16.msra.mxu0 %v3593
    %5220 = vmatprep.subr.bf16.mxu0 %v3590
    %5221 = vmatpush2.bf16.msra.mxu0 %v3589
    %5222 = vmatprep.subr.bf16.mxu0 %v3586
    %5223 = vmatpush2.bf16.msra.mxu0 %v3585
    %5224 = vmatprep.subr.bf16.mxu0 %v3582
    %5225 = vmatpush2.bf16.msra.mxu0 %v3581
    %5226 = vmatprep.subr.bf16.mxu0 %v3578
    %5227 = vmatpush2.bf16.msra.mxu0 %v3577
    %5228 = vmatprep.subr.bf16.mxu0 %v3574
    %5229 = vmatpush2.bf16.msra.mxu0 %v3573
    %5230 = vmatprep.subr.bf16.mxu0 %v3570
    %5231 = vmatpush2.bf16.msra.mxu0 %v3569
    %5232 = vmatprep.subr.bf16.mxu0 %v3566
    %5233 = vmatpush2.bf16.msra.mxu0 %v3565
    %5234 = vmatprep.mubr.bf16.mxu0 %v192
    %5235 = vmatmul.mubr.bf16.gmra.mxu0 %v191
    %v5236 = vpop.f32.mrf.mxu0
    %v5237 = vadd.f32 %v5196, %v5236
    %v5238 = vpop.f32.mrf.mxu0
    %v5239 = vadd.f32 %v5198, %v5238
    %v5240 = vpop.f32.mrf.mxu0
    %v5241 = vpop.f32.mrf.mxu0
    %5242 = vdwg.mxu0
    %5243 = vmatprep.subr.bf16.mxu0 %v3626
    %5244 = vmatpush1.bf16.msra.mxu0 %v3625
    %5245 = vmatprep.subr.bf16.mxu0 %v3622
    %5246 = vmatpush1.bf16.msra.mxu0 %v3621
    %5247 = vmatprep.subr.bf16.mxu0 %v3618
    %5248 = vmatpush1.bf16.msra.mxu0 %v3617
    %5249 = vmatprep.subr.bf16.mxu0 %v3614
    %5250 = vmatpush1.bf16.msra.mxu0 %v3613
    %5251 = vmatprep.subr.bf16.mxu0 %v3610
    %5252 = vmatpush1.bf16.msra.mxu0 %v3609
    %5253 = vmatprep.subr.bf16.mxu0 %v3606
    %5254 = vmatpush1.bf16.msra.mxu0 %v3605
    %5255 = vmatprep.subr.bf16.mxu0 %v3602
    %5256 = vmatpush1.bf16.msra.mxu0 %v3601
    %5257 = vmatprep.subr.bf16.mxu0 %v3598
    %5258 = vmatpush1.bf16.msra.mxu0 %v3597
    %5259 = vmatprep.subr.bf16.mxu0 %v3658
    %5260 = vmatpush2.bf16.msra.mxu0 %v3657
    %5261 = vmatprep.subr.bf16.mxu0 %v3654
    %5262 = vmatpush2.bf16.msra.mxu0 %v3653
    %5263 = vmatprep.subr.bf16.mxu0 %v3650
    %5264 = vmatpush2.bf16.msra.mxu0 %v3649
    %5265 = vmatprep.subr.bf16.mxu0 %v3646
    %5266 = vmatpush2.bf16.msra.mxu0 %v3645
    %5267 = vmatprep.subr.bf16.mxu0 %v3642
    %5268 = vmatpush2.bf16.msra.mxu0 %v3641
    %5269 = vmatprep.subr.bf16.mxu0 %v3638
    %5270 = vmatpush2.bf16.msra.mxu0 %v3637
    %5271 = vmatprep.subr.bf16.mxu0 %v3634
    %5272 = vmatpush2.bf16.msra.mxu0 %v3633
    %5273 = vmatprep.subr.bf16.mxu0 %v3630
    %5274 = vmatpush2.bf16.msra.mxu0 %v3629
    %5275 = vmatprep.mubr.bf16.mxu0 %v194
    %5276 = vmatmul.mubr.bf16.gmra.mxu0 %v193
    %v5277 = vpop.f32.mrf.mxu0
    %v5278 = vadd.f32 %v5237, %v5277
    %v5279 = vpop.f32.mrf.mxu0
    %v5280 = vadd.f32 %v5239, %v5279
    %v5281 = vpop.f32.mrf.mxu0
    %v5282 = vpop.f32.mrf.mxu0
    %5283 = vdwg.mxu0
    %5284 = vmatprep.subr.bf16.mxu0 %v3690
    %5285 = vmatpush1.bf16.msra.mxu0 %v3689
    %5286 = vmatprep.subr.bf16.mxu0 %v3686
    %5287 = vmatpush1.bf16.msra.mxu0 %v3685
    %5288 = vmatprep.subr.bf16.mxu0 %v3682
    %5289 = vmatpush1.bf16.msra.mxu0 %v3681
    %5290 = vmatprep.subr.bf16.mxu0 %v3678
    %5291 = vmatpush1.bf16.msra.mxu0 %v3677
    %5292 = vmatprep.subr.bf16.mxu0 %v3674
    %5293 = vmatpush1.bf16.msra.mxu0 %v3673
    %5294 = vmatprep.subr.bf16.mxu0 %v3670
    %5295 = vmatpush1.bf16.msra.mxu0 %v3669
    %5296 = vmatprep.subr.bf16.mxu0 %v3666
    %5297 = vmatpush1.bf16.msra.mxu0 %v3665
    %5298 = vmatprep.subr.bf16.mxu0 %v3662
    %5299 = vmatpush1.bf16.msra.mxu0 %v3661
    %5300 = vmatprep.subr.bf16.mxu0 0
    %5301 = vmatpush2.bf16.msra.mxu0 0
    %5302 = vmatprep.subr.bf16.mxu0 %v3718
    %5303 = vmatpush2.bf16.msra.mxu0 %v3717
    %5304 = vmatprep.subr.bf16.mxu0 %v3714
    %5305 = vmatpush2.bf16.msra.mxu0 %v3713
    %5306 = vmatprep.subr.bf16.mxu0 %v3710
    %5307 = vmatpush2.bf16.msra.mxu0 %v3709
    %5308 = vmatprep.subr.bf16.mxu0 %v3706
    %5309 = vmatpush2.bf16.msra.mxu0 %v3705
    %5310 = vmatprep.subr.bf16.mxu0 %v3702
    %5311 = vmatpush2.bf16.msra.mxu0 %v3701
    %5312 = vmatprep.subr.bf16.mxu0 %v3698
    %5313 = vmatpush2.bf16.msra.mxu0 %v3697
    %5314 = vmatprep.subr.bf16.mxu0 %v3694
    %5315 = vmatpush2.bf16.msra.mxu0 %v3693
    %5316 = vmatprep.mubr.bf16.mxu0 %v4421
    %5317 = vmatmul.mubr.bf16.gmra.mxu0 %v195
    %v5318 = vpop.f32.mrf.mxu0
    %v5319 = vadd.f32 %v5278, %v5318
    %v5320 = vpop.f32.mrf.mxu0
    %v5321 = vadd.f32 %v5280, %v5320
    %v5322 = vpop.f32.mrf.mxu0
    %v5323 = vpop.f32.mrf.mxu0
    %5324 = vdwg.mxu0
    %vm5325 = vcmp.ge.f32.partialorder %v4868, 0.0
    %vm5326 = vcmp.ge.f32.partialorder %v4870, 0.0
    %vm5327 = vcmp.ge.f32.partialorder %v5319, 0.0
    %vm5328 = vcmp.ge.f32.partialorder %v5321, 0.0
    %v5329 = vstv %s150
    %v5330 = vmul.f32 %v5329, %v4868
    %v5331 = vmul.f32 %v5329, %v4870
    %v5332 = vmul.f32 %v5329, %v5319
    %v5333 = vmul.f32 %v5329, %v5321
    %v5334 = vsel %vm5325, %v4868, %v5330
    %v5335 = vsel %vm5326, %v4870, %v5331
    %v5336 = vsel %vm5327, %v5319, %v5332
    %v5337 = vsel %vm5328, %v5321, %v5333
    %v5338 = vpack.c.bf16 %v5334, %v5334
    %v5339 = vpack.c.bf16 %v5335, %v5335
    %v5340 = vpack.c.bf16 %v5336, %v5336
    %v5341 = vpack.c.bf16 %v5337, %v5337
    %v5342 = vld [vmem:[#allocation9] sm:$0xff]
    %v5343 = vld [vmem:[#allocation9 + $0x8] sm:$0xff]
    %v5344 = vld [vmem:[#allocation9 + $0x10] sm:$0xff]
    %v5345 = vld [vmem:[#allocation9 + $0x18] sm:$0xff]
    %v5346 = vld [vmem:[#allocation9 + $0x20] sm:$0xff]
    %v5347 = vld [vmem:[#allocation9 + $0x28] sm:$0xff]
    %v5348 = vld [vmem:[#allocation9 + $0x30] sm:$0xff]
    %v5349 = vld [vmem:[#allocation9 + $0x38] sm:$0xff]
    %v5350 = vld [vmem:[#allocation9 + $0x40] sm:$0xff]
    %v5351 = vld [vmem:[#allocation9 + $0x48] sm:$0xff]
    %v5352 = vld [vmem:[#allocation9 + $0x50] sm:$0xff]
    %v5353 = vld [vmem:[#allocation9 + $0x58] sm:$0xff]
    %v5354 = vld [vmem:[#allocation9 + $0x60] sm:$0xff]
    %v5355 = vld [vmem:[#allocation9 + $0x68] sm:$0xff]
    %v5356 = vld [vmem:[#allocation9 + $0x70] sm:$0xff]
    %v5357 = vld [vmem:[#allocation9 + $0x78] sm:$0xff]
    %v5358 = vld [vmem:[#allocation9 + $0x80] sm:$0xff]
    %v5359 = vld [vmem:[#allocation9 + $0x88] sm:$0xff]
    %v5360 = vld [vmem:[#allocation9 + $0x90] sm:$0xff]
    %v5361 = vld [vmem:[#allocation9 + $0x98] sm:$0xff]
    %v5362 = vld [vmem:[#allocation9 + $0xa0] sm:$0xff]
    %v5363 = vld [vmem:[#allocation9 + $0xa8] sm:$0xff]
    %v5364 = vld [vmem:[#allocation9 + $0xb0] sm:$0xff]
    %v5365 = vld [vmem:[#allocation9 + $0xb8] sm:$0xff]
    %v5366 = vld [vmem:[#allocation9 + $0xc0] sm:$0xff]
    %v5367 = vld [vmem:[#allocation9 + $0xc8] sm:$0xff]
    %v5368 = vld [vmem:[#allocation9 + $0xd0] sm:$0xff]
    %v5369 = vld [vmem:[#allocation9 + $0xd8] sm:$0xff]
    %v5370 = vld [vmem:[#allocation9 + $0xe0] sm:$0xff]
    %v5371 = vld [vmem:[#allocation9 + $0xe8] sm:$0xff]
    %v5372 = vld [vmem:[#allocation9 + $0xf0] sm:$0xff]
    %v5373 = vld [vmem:[#allocation9 + $0xf8] sm:$0xff]
    %v5374 = vld [vmem:[#allocation9 + $0x100] sm:$0xff]
    %v5375 = vld [vmem:[#allocation9 + $0x108] sm:$0xff]
    %v5376 = vld [vmem:[#allocation9 + $0x110] sm:$0xff]
    %v5377 = vld [vmem:[#allocation9 + $0x118] sm:$0xff]
    %v5378 = vld [vmem:[#allocation9 + $0x120] sm:$0xff]
    %v5379 = vld [vmem:[#allocation9 + $0x128] sm:$0xff]
    %v5380 = vld [vmem:[#allocation9 + $0x130] sm:$0xff]
    %v5381 = vld [vmem:[#allocation9 + $0x138] sm:$0xff]
    %v5382 = vld [vmem:[#allocation9 + $0x140] sm:$0xff]
    %v5383 = vld [vmem:[#allocation9 + $0x148] sm:$0xff]
    %v5384 = vld [vmem:[#allocation9 + $0x150] sm:$0xff]
    %v5385 = vld [vmem:[#allocation9 + $0x158] sm:$0xff]
    %v5386 = vld [vmem:[#allocation9 + $0x160] sm:$0xff]
    %v5387 = vld [vmem:[#allocation9 + $0x168] sm:$0xff]
    %v5388 = vld [vmem:[#allocation9 + $0x170] sm:$0xff]
    %v5389 = vld [vmem:[#allocation9 + $0x178] sm:$0xff]
    %v5390 = vld [vmem:[#allocation9 + $0x180] sm:$0xff]
    %v5391 = vld [vmem:[#allocation9 + $0x188] sm:$0xff]
    %v5392 = vld [vmem:[#allocation9 + $0x190] sm:$0xff]
    %v5393 = vld [vmem:[#allocation9 + $0x198] sm:$0xff]
    %v5394 = vld [vmem:[#allocation9 + $0x1a0] sm:$0xff]
    %v5395 = vld [vmem:[#allocation9 + $0x1a8] sm:$0xff]
    %v5396 = vld [vmem:[#allocation9 + $0x1b0] sm:$0xff]
    %v5397 = vld [vmem:[#allocation9 + $0x1b8] sm:$0xff]
    %v5398 = vld [vmem:[#allocation9 + $0x1c0] sm:$0xff]
    %v5399 = vld [vmem:[#allocation9 + $0x1c8] sm:$0xff]
    %v5400 = vld [vmem:[#allocation9 + $0x1d0] sm:$0xff]
    %v5401 = vld [vmem:[#allocation9 + $0x1d8] sm:$0xff]
    %v5402 = vld [vmem:[#allocation9 + $0x1e0] sm:$0xff]
    %v5403 = vld [vmem:[#allocation9 + $0x1e8] sm:$0xff]
    %v5404 = vld [vmem:[#allocation9 + $0x1f0] sm:$0xff]
    %v5405 = vld [vmem:[#allocation9 + $0x1f8] sm:$0xff]
    %v5406 = vld [vmem:[#allocation11] sm:$0x3]
    %v5408 = vlaneseq
    %v5409 = vshrl.u32 %v5408, 7
    %v5410 = vsub.s32 0, %v5409
    %v5411 = vrot.slane %v5406, %v5410
    %v5412 = vlaneseq
    %v5413 = vshrl.u32 %v5412, 7
    %v5414 = vsub.s32 1, %v5413
    %v5415 = vrot.slane %v5406, %v5414
    %v5482 = vunpack.c.l.b16 %v5342
    %v5483 = vunpack.c.h.b16 %v5342
    %v5484 = vunpack.c.l.b16 %v5343
    %v5485 = vunpack.c.h.b16 %v5343
    %v5486 = vunpack.c.l.b16 %v5344
    %v5487 = vunpack.c.h.b16 %v5344
    %v5488 = vunpack.c.l.b16 %v5345
    %v5489 = vunpack.c.h.b16 %v5345
    %v5490 = vunpack.c.l.b16 %v5346
    %v5491 = vunpack.c.h.b16 %v5346
    %v5492 = vunpack.c.l.b16 %v5347
    %v5493 = vunpack.c.h.b16 %v5347
    %v5494 = vunpack.c.l.b16 %v5348
    %v5495 = vunpack.c.h.b16 %v5348
    %v5496 = vunpack.c.l.b16 %v5349
    %v5497 = vunpack.c.h.b16 %v5349
    %v5498 = vunpack.c.l.b16 %v5350
    %v5499 = vunpack.c.h.b16 %v5350
    %v5500 = vunpack.c.l.b16 %v5351
    %v5501 = vunpack.c.h.b16 %v5351
    %v5502 = vunpack.c.l.b16 %v5352
    %v5503 = vunpack.c.h.b16 %v5352
    %v5504 = vunpack.c.l.b16 %v5353
    %v5505 = vunpack.c.h.b16 %v5353
    %v5506 = vunpack.c.l.b16 %v5354
    %v5507 = vunpack.c.h.b16 %v5354
    %v5508 = vunpack.c.l.b16 %v5355
    %v5509 = vunpack.c.h.b16 %v5355
    %v5510 = vunpack.c.l.b16 %v5356
    %v5511 = vunpack.c.h.b16 %v5356
    %v5512 = vunpack.c.l.b16 %v5357
    %v5513 = vunpack.c.h.b16 %v5357
    %v5514 = vunpack.c.l.b16 %v5358
    %v5515 = vunpack.c.h.b16 %v5358
    %v5516 = vunpack.c.l.b16 %v5359
    %v5517 = vunpack.c.h.b16 %v5359
    %v5518 = vunpack.c.l.b16 %v5360
    %v5519 = vunpack.c.h.b16 %v5360
    %v5520 = vunpack.c.l.b16 %v5361
    %v5521 = vunpack.c.h.b16 %v5361
    %v5522 = vunpack.c.l.b16 %v5362
    %v5523 = vunpack.c.h.b16 %v5362
    %v5524 = vunpack.c.l.b16 %v5363
    %v5525 = vunpack.c.h.b16 %v5363
    %v5526 = vunpack.c.l.b16 %v5364
    %v5527 = vunpack.c.h.b16 %v5364
    %v5528 = vunpack.c.l.b16 %v5365
    %v5529 = vunpack.c.h.b16 %v5365
    %v5530 = vunpack.c.l.b16 %v5366
    %v5531 = vunpack.c.h.b16 %v5366
    %v5532 = vunpack.c.l.b16 %v5367
    %v5533 = vunpack.c.h.b16 %v5367
    %v5534 = vunpack.c.l.b16 %v5368
    %v5535 = vunpack.c.h.b16 %v5368
    %v5536 = vunpack.c.l.b16 %v5369
    %v5537 = vunpack.c.h.b16 %v5369
    %v5538 = vunpack.c.l.b16 %v5370
    %v5539 = vunpack.c.h.b16 %v5370
    %v5540 = vunpack.c.l.b16 %v5371
    %v5541 = vunpack.c.h.b16 %v5371
    %v5542 = vunpack.c.l.b16 %v5372
    %v5543 = vunpack.c.h.b16 %v5372
    %v5544 = vunpack.c.l.b16 %v5373
    %v5545 = vunpack.c.h.b16 %v5373
    %v5546 = vunpack.c.l.b16 %v5374
    %v5547 = vunpack.c.h.b16 %v5374
    %v5548 = vunpack.c.l.b16 %v5375
    %v5549 = vunpack.c.h.b16 %v5375
    %v5550 = vunpack.c.l.b16 %v5376
    %v5551 = vunpack.c.h.b16 %v5376
    %v5552 = vunpack.c.l.b16 %v5377
    %v5553 = vunpack.c.h.b16 %v5377
    %v5554 = vunpack.c.l.b16 %v5378
    %v5555 = vunpack.c.h.b16 %v5378
    %v5556 = vunpack.c.l.b16 %v5379
    %v5557 = vunpack.c.h.b16 %v5379
    %v5558 = vunpack.c.l.b16 %v5380
    %v5559 = vunpack.c.h.b16 %v5380
    %v5560 = vunpack.c.l.b16 %v5381
    %v5561 = vunpack.c.h.b16 %v5381
    %v5562 = vunpack.c.l.b16 %v5382
    %v5563 = vunpack.c.h.b16 %v5382
    %v5564 = vunpack.c.l.b16 %v5383
    %v5565 = vunpack.c.h.b16 %v5383
    %v5566 = vunpack.c.l.b16 %v5384
    %v5567 = vunpack.c.h.b16 %v5384
    %v5568 = vunpack.c.l.b16 %v5385
    %v5569 = vunpack.c.h.b16 %v5385
    %v5570 = vunpack.c.l.b16 %v5386
    %v5571 = vunpack.c.h.b16 %v5386
    %v5572 = vunpack.c.l.b16 %v5387
    %v5573 = vunpack.c.h.b16 %v5387
    %v5574 = vunpack.c.l.b16 %v5388
    %v5575 = vunpack.c.h.b16 %v5388
    %v5576 = vunpack.c.l.b16 %v5389
    %v5577 = vunpack.c.h.b16 %v5389
    %v5578 = vunpack.c.l.b16 %v5390
    %v5579 = vunpack.c.h.b16 %v5390
    %v5580 = vunpack.c.l.b16 %v5391
    %v5581 = vunpack.c.h.b16 %v5391
    %v5582 = vunpack.c.l.b16 %v5392
    %v5583 = vunpack.c.h.b16 %v5392
    %v5584 = vunpack.c.l.b16 %v5393
    %v5585 = vunpack.c.h.b16 %v5393
    %v5586 = vunpack.c.l.b16 %v5394
    %v5587 = vunpack.c.h.b16 %v5394
    %v5588 = vunpack.c.l.b16 %v5395
    %v5589 = vunpack.c.h.b16 %v5395
    %v5590 = vunpack.c.l.b16 %v5396
    %v5591 = vunpack.c.h.b16 %v5396
    %v5592 = vunpack.c.l.b16 %v5397
    %v5593 = vunpack.c.h.b16 %v5397
    %v5594 = vunpack.c.l.b16 %v5398
    %v5595 = vunpack.c.h.b16 %v5398
    %v5596 = vunpack.c.l.b16 %v5399
    %v5597 = vunpack.c.h.b16 %v5399
    %v5598 = vunpack.c.l.b16 %v5400
    %v5599 = vunpack.c.h.b16 %v5400
    %v5600 = vunpack.c.l.b16 %v5401
    %v5601 = vunpack.c.h.b16 %v5401
    %v5602 = vunpack.c.l.b16 %v5402
    %v5603 = vunpack.c.h.b16 %v5402
    %v5604 = vunpack.c.l.b16 %v5403
    %v5605 = vunpack.c.h.b16 %v5403
    %v5606 = vunpack.c.l.b16 %v5404
    %v5607 = vunpack.c.h.b16 %v5404
    %v5608 = vunpack.c.l.b16 %v5405
    %v5609 = vunpack.c.h.b16 %v5405
    %v5610 = vpack.c.b16 %v5484, %v5482
    %v5611 = vpack.c.b16 %v5485, %v5483
    %v5612 = vpack.c.b16 %v5488, %v5486
    %v5613 = vpack.c.b16 %v5489, %v5487
    %v5614 = vpack.c.b16 %v5492, %v5490
    %v5615 = vpack.c.b16 %v5493, %v5491
    %v5616 = vpack.c.b16 %v5496, %v5494
    %v5617 = vpack.c.b16 %v5497, %v5495
    %v5618 = vpack.c.b16 %v5500, %v5498
    %v5619 = vpack.c.b16 %v5501, %v5499
    %v5620 = vpack.c.b16 %v5504, %v5502
    %v5621 = vpack.c.b16 %v5505, %v5503
    %v5622 = vpack.c.b16 %v5508, %v5506
    %v5623 = vpack.c.b16 %v5509, %v5507
    %v5624 = vpack.c.b16 %v5512, %v5510
    %v5625 = vpack.c.b16 %v5513, %v5511
    %v5626 = vpack.c.b16 %v5516, %v5514
    %v5627 = vpack.c.b16 %v5517, %v5515
    %v5628 = vpack.c.b16 %v5520, %v5518
    %v5629 = vpack.c.b16 %v5521, %v5519
    %v5630 = vpack.c.b16 %v5524, %v5522
    %v5631 = vpack.c.b16 %v5525, %v5523
    %v5632 = vpack.c.b16 %v5528, %v5526
    %v5633 = vpack.c.b16 %v5529, %v5527
    %v5634 = vpack.c.b16 %v5532, %v5530
    %v5635 = vpack.c.b16 %v5533, %v5531
    %v5636 = vpack.c.b16 %v5536, %v5534
    %v5637 = vpack.c.b16 %v5537, %v5535
    %v5638 = vpack.c.b16 %v5540, %v5538
    %v5639 = vpack.c.b16 %v5541, %v5539
    %v5640 = vpack.c.b16 %v5544, %v5542
    %v5641 = vpack.c.b16 %v5545, %v5543
    %v5642 = vpack.c.b16 %v5548, %v5546
    %v5643 = vpack.c.b16 %v5549, %v5547
    %v5644 = vpack.c.b16 %v5552, %v5550
    %v5645 = vpack.c.b16 %v5553, %v5551
    %v5646 = vpack.c.b16 %v5556, %v5554
    %v5647 = vpack.c.b16 %v5557, %v5555
    %v5648 = vpack.c.b16 %v5560, %v5558
    %v5649 = vpack.c.b16 %v5561, %v5559
    %v5650 = vpack.c.b16 %v5564, %v5562
    %v5651 = vpack.c.b16 %v5565, %v5563
    %v5652 = vpack.c.b16 %v5568, %v5566
    %v5653 = vpack.c.b16 %v5569, %v5567
    %v5654 = vpack.c.b16 %v5572, %v5570
    %v5655 = vpack.c.b16 %v5573, %v5571
    %v5656 = vpack.c.b16 %v5576, %v5574
    %v5657 = vpack.c.b16 %v5577, %v5575
    %v5658 = vpack.c.b16 %v5580, %v5578
    %v5659 = vpack.c.b16 %v5581, %v5579
    %v5660 = vpack.c.b16 %v5584, %v5582
    %v5661 = vpack.c.b16 %v5585, %v5583
    %v5662 = vpack.c.b16 %v5588, %v5586
    %v5663 = vpack.c.b16 %v5589, %v5587
    %v5664 = vpack.c.b16 %v5592, %v5590
    %v5665 = vpack.c.b16 %v5593, %v5591
    %v5666 = vpack.c.b16 %v5596, %v5594
    %v5667 = vpack.c.b16 %v5597, %v5595
    %v5668 = vpack.c.b16 %v5600, %v5598
    %v5669 = vpack.c.b16 %v5601, %v5599
    %v5670 = vpack.c.b16 %v5604, %v5602
    %v5671 = vpack.c.b16 %v5605, %v5603
    %v5672 = vpack.c.b16 %v5608, %v5606
    %v5673 = vpack.c.b16 %v5609, %v5607
    %5738 = vmatprep.subr.bf16.mxu0 %v5625
    %5739 = vmatpush1.bf16.msra.mxu0 %v5624
    %5740 = vmatprep.subr.bf16.mxu0 %v5623
    %5741 = vmatpush1.bf16.msra.mxu0 %v5622
    %5742 = vmatprep.subr.bf16.mxu0 %v5621
    %5743 = vmatpush1.bf16.msra.mxu0 %v5620
    %5744 = vmatprep.subr.bf16.mxu0 %v5619
    %5745 = vmatpush1.bf16.msra.mxu0 %v5618
    %5746 = vmatprep.subr.bf16.mxu0 %v5617
    %5747 = vmatpush1.bf16.msra.mxu0 %v5616
    %5748 = vmatprep.subr.bf16.mxu0 %v5615
    %5749 = vmatpush1.bf16.msra.mxu0 %v5614
    %5750 = vmatprep.subr.bf16.mxu0 %v5613
    %5751 = vmatpush1.bf16.msra.mxu0 %v5612
    %5752 = vmatprep.subr.bf16.mxu0 %v5611
    %5753 = vmatpush1.bf16.msra.mxu0 %v5610
    %5754 = vmatprep.subr.bf16.mxu0 %v5641
    %5755 = vmatpush2.bf16.msra.mxu0 %v5640
    %5756 = vmatprep.subr.bf16.mxu0 %v5639
    %5757 = vmatpush2.bf16.msra.mxu0 %v5638
    %5758 = vmatprep.subr.bf16.mxu0 %v5637
    %5759 = vmatpush2.bf16.msra.mxu0 %v5636
    %5760 = vmatprep.subr.bf16.mxu0 %v5635
    %5761 = vmatpush2.bf16.msra.mxu0 %v5634
    %5762 = vmatprep.subr.bf16.mxu0 %v5633
    %5763 = vmatpush2.bf16.msra.mxu0 %v5632
    %5764 = vmatprep.subr.bf16.mxu0 %v5631
    %5765 = vmatpush2.bf16.msra.mxu0 %v5630
    %5766 = vmatprep.subr.bf16.mxu0 %v5629
    %5767 = vmatpush2.bf16.msra.mxu0 %v5628
    %5768 = vmatprep.subr.bf16.mxu0 %v5627
    %5769 = vmatpush2.bf16.msra.mxu0 %v5626
    %5770 = vmatprep.mubr.bf16.mxu0 %v5339
    %5771 = vmatmul.mubr.bf16.gmra.mxu0 %v5338
    %v5772 = vpop.f32.mrf.mxu0
    %v5773 = vadd.f32 %v5411, %v5772
    %v5774 = vpop.f32.mrf.mxu0
    %v5775 = vadd.f32 %v5415, %v5774
    %v5776 = vpop.f32.mrf.mxu0
    %v5777 = vpop.f32.mrf.mxu0
    %5778 = vdwg.mxu0
    %5779 = vmatprep.subr.bf16.mxu0 %v5657
    %5780 = vmatpush1.bf16.msra.mxu0 %v5656
    %5781 = vmatprep.subr.bf16.mxu0 %v5655
    %5782 = vmatpush1.bf16.msra.mxu0 %v5654
    %5783 = vmatprep.subr.bf16.mxu0 %v5653
    %5784 = vmatpush1.bf16.msra.mxu0 %v5652
    %5785 = vmatprep.subr.bf16.mxu0 %v5651
    %5786 = vmatpush1.bf16.msra.mxu0 %v5650
    %5787 = vmatprep.subr.bf16.mxu0 %v5649
    %5788 = vmatpush1.bf16.msra.mxu0 %v5648
    %5789 = vmatprep.subr.bf16.mxu0 %v5647
    %5790 = vmatpush1.bf16.msra.mxu0 %v5646
    %5791 = vmatprep.subr.bf16.mxu0 %v5645
    %5792 = vmatpush1.bf16.msra.mxu0 %v5644
    %5793 = vmatprep.subr.bf16.mxu0 %v5643
    %5794 = vmatpush1.bf16.msra.mxu0 %v5642
    %5795 = vmatprep.subr.bf16.mxu0 %v5673
    %5796 = vmatpush2.bf16.msra.mxu0 %v5672
    %5797 = vmatprep.subr.bf16.mxu0 %v5671
    %5798 = vmatpush2.bf16.msra.mxu0 %v5670
    %5799 = vmatprep.subr.bf16.mxu0 %v5669
    %5800 = vmatpush2.bf16.msra.mxu0 %v5668
    %5801 = vmatprep.subr.bf16.mxu0 %v5667
    %5802 = vmatpush2.bf16.msra.mxu0 %v5666
    %5803 = vmatprep.subr.bf16.mxu0 %v5665
    %5804 = vmatpush2.bf16.msra.mxu0 %v5664
    %5805 = vmatprep.subr.bf16.mxu0 %v5663
    %5806 = vmatpush2.bf16.msra.mxu0 %v5662
    %5807 = vmatprep.subr.bf16.mxu0 %v5661
    %5808 = vmatpush2.bf16.msra.mxu0 %v5660
    %5809 = vmatprep.subr.bf16.mxu0 %v5659
    %5810 = vmatpush2.bf16.msra.mxu0 %v5658
    %5811 = vmatprep.mubr.bf16.mxu0 %v5341
    %5812 = vmatmul.mubr.bf16.gmra.mxu0 %v5340
    %v5813 = vpop.f32.mrf.mxu0
    %v5814 = vadd.f32 %v5773, %v5813
    %v5815 = vpop.f32.mrf.mxu0
    %v5816 = vadd.f32 %v5775, %v5815
    %v5817 = vpop.f32.mrf.mxu0
    %v5818 = vpop.f32.mrf.mxu0
    %5819 = vdwg.mxu0
    %vm5820 = vcmp.ge.f32.partialorder %v5814, 0.0
    %vm5821 = vcmp.ge.f32.partialorder %v5816, 0.0
    %v5822 = vstv %s151
    %v5823 = vmul.f32 %v5822, %v5814
    %v5824 = vmul.f32 %v5822, %v5816
    %v5825 = vsel %vm5820, %v5814, %v5823
    %v5826 = vsel %vm5821, %v5816, %v5824
    %v5827 = vpack.c.bf16 %v5825, %v5825
    %v5828 = vpack.c.bf16 %v5826, %v5826
    %v5829 = vld [vmem:[#allocation12] sm:$0xf]
    %v5830 = vld [vmem:[#allocation12 + $0x4] sm:$0xf]
    %v5831 = vld [vmem:[#allocation12 + $0x8] sm:$0xf]
    %v5832 = vld [vmem:[#allocation12 + $0xc] sm:$0xf]
    %v5833 = vld [vmem:[#allocation12 + $0x10] sm:$0xf]
    %v5834 = vld [vmem:[#allocation12 + $0x14] sm:$0xf]
    %v5835 = vld [vmem:[#allocation12 + $0x18] sm:$0xf]
    %v5836 = vld [vmem:[#allocation12 + $0x1c] sm:$0xf]
    %v5837 = vld [vmem:[#allocation12 + $0x20] sm:$0xf]
    %v5838 = vld [vmem:[#allocation12 + $0x24] sm:$0xf]
    %v5839 = vld [vmem:[#allocation12 + $0x28] sm:$0xf]
    %v5840 = vld [vmem:[#allocation12 + $0x2c] sm:$0xf]
    %v5841 = vld [vmem:[#allocation12 + $0x30] sm:$0xf]
    %v5842 = vld [vmem:[#allocation12 + $0x34] sm:$0xf]
    %v5843 = vld [vmem:[#allocation12 + $0x38] sm:$0xf]
    %v5844 = vld [vmem:[#allocation12 + $0x3c] sm:$0xf]
    %v5845 = vld [vmem:[#allocation12 + $0x40] sm:$0xf]
    %v5846 = vld [vmem:[#allocation12 + $0x44] sm:$0xf]
    %v5847 = vld [vmem:[#allocation12 + $0x48] sm:$0xf]
    %v5848 = vld [vmem:[#allocation12 + $0x4c] sm:$0xf]
    %v5849 = vld [vmem:[#allocation12 + $0x50] sm:$0xf]
    %v5850 = vld [vmem:[#allocation12 + $0x54] sm:$0xf]
    %v5851 = vld [vmem:[#allocation12 + $0x58] sm:$0xf]
    %v5852 = vld [vmem:[#allocation12 + $0x5c] sm:$0xf]
    %v5853 = vld [vmem:[#allocation12 + $0x60] sm:$0xf]
    %v5854 = vld [vmem:[#allocation12 + $0x64] sm:$0xf]
    %v5855 = vld [vmem:[#allocation12 + $0x68] sm:$0xf]
    %v5856 = vld [vmem:[#allocation12 + $0x6c] sm:$0xf]
    %v5857 = vld [vmem:[#allocation12 + $0x70] sm:$0xf]
    %v5858 = vld [vmem:[#allocation12 + $0x74] sm:$0xf]
    %v5859 = vld [vmem:[#allocation12 + $0x78] sm:$0xf]
    %v5860 = vld [vmem:[#allocation12 + $0x7c] sm:$0xf]
    %v5861 = vld [vmem:[#allocation14] sm:$0x1]
    %v5863 = vlaneseq
    %v5864 = vshrl.u32 %v5863, 7
    %v5865 = vsub.s32 0, %v5864
    %v5866 = vrot.slane %v5861, %v5865
    %v5900 = vunpack.c.l.b16 %v5829
    %v5901 = vunpack.c.l.b16 %v5830
    %v5902 = vunpack.c.l.b16 %v5831
    %v5903 = vunpack.c.l.b16 %v5832
    %v5904 = vunpack.c.l.b16 %v5833
    %v5905 = vunpack.c.l.b16 %v5834
    %v5906 = vunpack.c.l.b16 %v5835
    %v5907 = vunpack.c.l.b16 %v5836
    %v5908 = vunpack.c.l.b16 %v5837
    %v5909 = vunpack.c.l.b16 %v5838
    %v5910 = vunpack.c.l.b16 %v5839
    %v5911 = vunpack.c.l.b16 %v5840
    %v5912 = vunpack.c.l.b16 %v5841
    %v5913 = vunpack.c.l.b16 %v5842
    %v5914 = vunpack.c.l.b16 %v5843
    %v5915 = vunpack.c.l.b16 %v5844
    %v5916 = vunpack.c.l.b16 %v5845
    %v5917 = vunpack.c.l.b16 %v5846
    %v5918 = vunpack.c.l.b16 %v5847
    %v5919 = vunpack.c.l.b16 %v5848
    %v5920 = vunpack.c.l.b16 %v5849
    %v5921 = vunpack.c.l.b16 %v5850
    %v5922 = vunpack.c.l.b16 %v5851
    %v5923 = vunpack.c.l.b16 %v5852
    %v5924 = vunpack.c.l.b16 %v5853
    %v5925 = vunpack.c.l.b16 %v5854
    %v5926 = vunpack.c.l.b16 %v5855
    %v5927 = vunpack.c.l.b16 %v5856
    %v5928 = vunpack.c.l.b16 %v5857
    %v5929 = vunpack.c.l.b16 %v5858
    %v5930 = vunpack.c.l.b16 %v5859
    %v5931 = vunpack.c.l.b16 %v5860
    %v5932 = vpack.c.b16 %v5901, %v5900
    %v5933 = vpack.c.b16 %v5903, %v5902
    %v5934 = vpack.c.b16 %v5905, %v5904
    %v5935 = vpack.c.b16 %v5907, %v5906
    %v5936 = vpack.c.b16 %v5909, %v5908
    %v5937 = vpack.c.b16 %v5911, %v5910
    %v5938 = vpack.c.b16 %v5913, %v5912
    %v5939 = vpack.c.b16 %v5915, %v5914
    %v5940 = vpack.c.b16 %v5917, %v5916
    %v5941 = vpack.c.b16 %v5919, %v5918
    %v5942 = vpack.c.b16 %v5921, %v5920
    %v5943 = vpack.c.b16 %v5923, %v5922
    %v5944 = vpack.c.b16 %v5925, %v5924
    %v5945 = vpack.c.b16 %v5927, %v5926
    %v5946 = vpack.c.b16 %v5929, %v5928
    %v5947 = vpack.c.b16 %v5931, %v5930
    %5964 = vmatprep.subr.bf16.mxu0 0
    %5965 = vmatpush1.bf16.msra.mxu0 %v5939
    %5966 = vmatprep.subr.bf16.mxu0 0
    %5967 = vmatpush1.bf16.msra.mxu0 %v5938
    %5968 = vmatprep.subr.bf16.mxu0 0
    %5969 = vmatpush1.bf16.msra.mxu0 %v5937
    %5970 = vmatprep.subr.bf16.mxu0 0
    %5971 = vmatpush1.bf16.msra.mxu0 %v5936
    %5972 = vmatprep.subr.bf16.mxu0 0
    %5973 = vmatpush1.bf16.msra.mxu0 %v5935
    %5974 = vmatprep.subr.bf16.mxu0 0
    %5975 = vmatpush1.bf16.msra.mxu0 %v5934
    %5976 = vmatprep.subr.bf16.mxu0 0
    %5977 = vmatpush1.bf16.msra.mxu0 %v5933
    %5978 = vmatprep.subr.bf16.mxu0 0
    %5979 = vmatpush1.bf16.msra.mxu0 %v5932
    %5980 = vmatprep.subr.bf16.mxu0 0
    %5981 = vmatpush2.bf16.msra.mxu0 %v5947
    %5982 = vmatprep.subr.bf16.mxu0 0
    %5983 = vmatpush2.bf16.msra.mxu0 %v5946
    %5984 = vmatprep.subr.bf16.mxu0 0
    %5985 = vmatpush2.bf16.msra.mxu0 %v5945
    %5986 = vmatprep.subr.bf16.mxu0 0
    %5987 = vmatpush2.bf16.msra.mxu0 %v5944
    %5988 = vmatprep.subr.bf16.mxu0 0
    %5989 = vmatpush2.bf16.msra.mxu0 %v5943
    %5990 = vmatprep.subr.bf16.mxu0 0
    %5991 = vmatpush2.bf16.msra.mxu0 %v5942
    %5992 = vmatprep.subr.bf16.mxu0 0
    %5993 = vmatpush2.bf16.msra.mxu0 %v5941
    %5994 = vmatprep.subr.bf16.mxu0 0
    %5995 = vmatpush2.bf16.msra.mxu0 %v5940
    %5996 = vmatprep.mubr.bf16.mxu0 %v5828
    %5997 = vmatmul.mubr.bf16.gmra.mxu0 %v5827
    %v5998 = vpop.f32.mrf.mxu0
    %v5999 = vadd.f32 %v5866, %v5998
    %v6000 = vpop.f32.mrf.mxu0
    %v6001 = vpop.f32.mrf.mxu0
    %v6002 = vpop.f32.mrf.mxu0
    %6003 = vdwg.mxu0
    %vm6004 = vcmp.ge.f32.partialorder %v5999, 0.0
    %v6005 = vstv %s152
    %v6006 = vmul.f32 %v6005, %v5999
    %v6007 = vsel %vm6004, %v5999, %v6006
    %v6008 = vpack.c.bf16 %v6007, %v6007
    %v6009 = vld [vmem:[#allocation15] sm:$0xf]
    %v6010 = vld [vmem:[#allocation15 + $0x4] sm:$0xf]
    %v6011 = vld [vmem:[#allocation15 + $0x8] sm:$0xf]
    %v6012 = vld [vmem:[#allocation15 + $0xc] sm:$0xf]
    %v6013 = vld [vmem:[#allocation15 + $0x10] sm:$0xf]
    %v6014 = vld [vmem:[#allocation15 + $0x14] sm:$0xf]
    %v6015 = vld [vmem:[#allocation15 + $0x18] sm:$0xf]
    %v6016 = vld [vmem:[#allocation15 + $0x1c] sm:$0xf]
    %v6017 = vld [vmem:[#allocation15 + $0x20] sm:$0xf]
    %v6018 = vld [vmem:[#allocation15 + $0x24] sm:$0xf]
    %v6019 = vld [vmem:[#allocation15 + $0x28] sm:$0xf]
    %v6020 = vld [vmem:[#allocation15 + $0x2c] sm:$0xf]
    %v6021 = vld [vmem:[#allocation15 + $0x30] sm:$0xf]
    %v6022 = vld [vmem:[#allocation15 + $0x34] sm:$0xf]
    %v6023 = vld [vmem:[#allocation15 + $0x38] sm:$0xf]
    %v6024 = vld [vmem:[#allocation15 + $0x3c] sm:$0xf]
    %v6025 = vld [vmem:[#allocation17] sm:$0x1]
    %v6027 = vlaneseq
    %v6028 = vshrl.u32 %v6027, 7
    %v6029 = vsub.s32 0, %v6028
    %v6030 = vrot.slane %v6025, %v6029
    %v6048 = vunpack.c.l.b16 %v6009
    %v6049 = vunpack.c.l.b16 %v6010
    %v6050 = vunpack.c.l.b16 %v6011
    %v6051 = vunpack.c.l.b16 %v6012
    %v6052 = vunpack.c.l.b16 %v6013
    %v6053 = vunpack.c.l.b16 %v6014
    %v6054 = vunpack.c.l.b16 %v6015
    %v6055 = vunpack.c.l.b16 %v6016
    %v6056 = vunpack.c.l.b16 %v6017
    %v6057 = vunpack.c.l.b16 %v6018
    %v6058 = vunpack.c.l.b16 %v6019
    %v6059 = vunpack.c.l.b16 %v6020
    %v6060 = vunpack.c.l.b16 %v6021
    %v6061 = vunpack.c.l.b16 %v6022
    %v6062 = vunpack.c.l.b16 %v6023
    %v6063 = vunpack.c.l.b16 %v6024
    %v6064 = vpack.c.b16 %v6049, %v6048
    %v6065 = vpack.c.b16 %v6051, %v6050
    %v6066 = vpack.c.b16 %v6053, %v6052
    %v6067 = vpack.c.b16 %v6055, %v6054
    %v6068 = vpack.c.b16 %v6057, %v6056
    %v6069 = vpack.c.b16 %v6059, %v6058
    %v6070 = vpack.c.b16 %v6061, %v6060
    %v6071 = vpack.c.b16 %v6063, %v6062
    %6080 = vmatprep.subr.bf16.mxu0 0
    %6081 = vmatpush1.bf16.msra.mxu0 %v6071
    %6082 = vmatprep.subr.bf16.mxu0 0
    %6083 = vmatpush1.bf16.msra.mxu0 %v6070
    %6084 = vmatprep.subr.bf16.mxu0 0
    %6085 = vmatpush1.bf16.msra.mxu0 %v6069
    %6086 = vmatprep.subr.bf16.mxu0 0
    %6087 = vmatpush1.bf16.msra.mxu0 %v6068
    %6088 = vmatprep.subr.bf16.mxu0 0
    %6089 = vmatpush1.bf16.msra.mxu0 %v6067
    %6090 = vmatprep.subr.bf16.mxu0 0
    %6091 = vmatpush1.bf16.msra.mxu0 %v6066
    %6092 = vmatprep.subr.bf16.mxu0 0
    %6093 = vmatpush1.bf16.msra.mxu0 %v6065
    %6094 = vmatprep.subr.bf16.mxu0 0
    %6095 = vmatpush1.bf16.msra.mxu0 %v6064
    %6096 = vmatprep.subr.bf16.mxu0 0
    %6097 = vmatpush2.bf16.msra.mxu0 0
    %6098 = vmatprep.subr.bf16.mxu0 0
    %6099 = vmatpush2.bf16.msra.mxu0 0
    %6100 = vmatprep.subr.bf16.mxu0 0
    %6101 = vmatpush2.bf16.msra.mxu0 0
    %6102 = vmatprep.subr.bf16.mxu0 0
    %6103 = vmatpush2.bf16.msra.mxu0 0
    %6104 = vmatprep.subr.bf16.mxu0 0
    %6105 = vmatpush2.bf16.msra.mxu0 0
    %6106 = vmatprep.subr.bf16.mxu0 0
    %6107 = vmatpush2.bf16.msra.mxu0 0
    %6108 = vmatprep.subr.bf16.mxu0 0
    %6109 = vmatpush2.bf16.msra.mxu0 0
    %6110 = vmatprep.subr.bf16.mxu0 0
    %6111 = vmatpush2.bf16.msra.mxu0 0
    %6112 = vmatprep.mubr.bf16.mxu0 0
    %6113 = vmatmul.mubr.bf16.gmra.mxu0 %v6008
    %v6114 = vpop.f32.mrf.mxu0
    %v6115 = vadd.f32 %v6030, %v6114
    %v6116 = vpop.f32.mrf.mxu0
    %v6117 = vpop.f32.mrf.mxu0
    %v6118 = vpop.f32.mrf.mxu0
    %6119 = vdwg.mxu0
    %v6120 = vpack.c.bf16 %v6115, %v6115
    %6121 = vst [vmem:[%s10] sm:$0xf] %v6120
    // Predicated region
    $region74: #{encoder_forward.1} parent=1 // pred_check
      _
    $region75: #{encoder_forward.1} parent=1 // pred_check_branch
      %6123 = sbr.rel (0) target = $region77
    $region76: #{encoder_forward.1} parent=1 // pred_region
      _
    $region77: #{encoder_forward.1} parent=1 // pred_fallthru
      _
    // Predicated region
    $region78: #{encoder_forward.1} parent=1 // pred_check
      _
    $region79: #{encoder_forward.1} parent=1 // pred_check_branch
      %6125 = sbr.rel (0) target = $region81
    $region80: #{encoder_forward.1} parent=1 // pred_region
      _
    $region81: #{encoder_forward.1} parent=1 // pred_fallthru
      _
    %6126 = vsyncpa [#allocation5], 1
    %6127 = vsyncpa [#allocation7], 1
    %6128 = vsyncpa [#allocation10], 1
    %6129 = vsyncpa [#allocation13], 1
    %6130 = vsyncpa [#allocation16], 1

</llo_original>
